<compile_context>
chip_gen: v6e
topology: v6e:2x2x1
jax: 0.10.0
libtpu: 0.0.40
codegen_flags: <defaults>
</compile_context>

<pallas_src>
import jax
import jax.numpy as jnp
from jax.experimental import pallas as pl
from jax.experimental.pallas import tpu as pltpu


# ------------------------------ Fused decoder kernel ------------------------------
def _make_decoder_kernel(num_layers, seq_len, padded_batch, hidden):
    """Kernel args (in order):
      inputs : x(T*BP, D) bf16,
               wih0_t(D,4H) bf16, whh0_t(H,4H) bf16, b0(1,4H) f32,
               b_l(1,4H) f32 for l=1..L-1,
               fc1_w_t(H,F) bf16, fc1_b(1,F) f32, fc2_w_t(F,O) bf16, fc2_b(1,O) f32,
               wih_l_t(H,4H) bf16 + whh_l_t(H,4H) bf16 for l=1..L-1   [HBM / pl.ANY]
      output : (T*BP, O) f32
      scratch: seq_scr(T*BP,H) f32, per-(l>=1) VMEM weight buffers, DMA semaphores.
    Gate columns are pre-packed [i|f|o|g]."""
    L, T, BP, H = num_layers, seq_len, padded_batch, hidden
    n_vmem_in = 1 + 3 + (L - 1) + 4
    n_hbm_in = 2 * (L - 1)

    def kernel(*refs):
        x_ref = refs[0]
        wih0_ref, whh0_ref, b0_ref = refs[1:4]
        b_refs = (b0_ref,) + tuple(refs[4:4 + (L - 1)])
        fc1w_ref, fc1b_ref, fc2w_ref, fc2b_ref = refs[3 + L:7 + L]
        hbm_w = refs[n_vmem_in:n_vmem_in + n_hbm_in]
        o_ref = refs[n_vmem_in + n_hbm_in]
        scratch = refs[n_vmem_in + n_hbm_in + 1:]
        seq_scr = scratch[0]
        w_bufs = scratch[1:1 + n_hbm_in]
        sem = scratch[1 + n_hbm_in] if n_hbm_in else None

        # Kick off layer>=1 recurrent-weight DMAs now so they overlap layer-0
        # compute; we only wait right before each later layer needs them.
        copies = []
        for i in range(n_hbm_in):
            cp = pltpu.make_async_copy(hbm_w[i], w_bufs[i], sem.at[i])
            cp.start()
            copies.append(cp)

        def lstm_layer(seq_bf16, wih, whh, b):
            # Hoisted input projection for ALL timesteps: one wide bf16 MXU
            # matmul with f32 accumulation; folded (b_ih+b_hh) bias added once.
            gx = jnp.dot(seq_bf16, wih, preferred_element_type=jnp.float32) + b
            h = jnp.zeros((BP, H), jnp.float32)
            c = jnp.zeros((BP, H), jnp.float32)
            # Fully unrolled static recurrence (T small & static); h/c carry in
            # vregs, gate/cell math in f32 (only MXU operands are bf16).
            for t in range(T):
                gates = gx[t * BP:(t + 1) * BP, :] + jnp.dot(
                    h.astype(jnp.bfloat16), whh,
                    preferred_element_type=jnp.float32)
                # Gates pre-packed [i|f|o|g]: one 3H sigmoid slab + one H tanh.
                sig = jax.nn.sigmoid(gates[:, 0:3 * H])
                g = jnp.tanh(gates[:, 3 * H:4 * H])
                c = sig[:, H:2 * H] * c + sig[:, 0:H] * g
                h = sig[:, 2 * H:3 * H] * jnp.tanh(c)
                # Write h straight into the VMEM sequence scratch: bounds vreg
                # live ranges and removes the old list + concatenate copy.
                seq_scr[pl.ds(t * BP, BP), :] = h
            return seq_scr[...]

        seq = lstm_layer(x_ref[...], wih0_ref[...], whh0_ref[...], b0_ref[...])
        for l in range(1, L):
            # Weights for this layer were streamed during the previous layer.
            copies[2 * (l - 1)].wait()
            copies[2 * (l - 1) + 1].wait()
            seq = lstm_layer(seq.astype(jnp.bfloat16),
                             w_bufs[2 * (l - 1)][...],
                             w_bufs[2 * (l - 1) + 1][...],
                             b_refs[l][...])
            # TODO(synk): nn.LSTM inter-layer dropout is train-mode only;
            # inference semantics here (no dropout).

        # Fused FC head: fc1 -> ReLU -> fc2, all timesteps at once.
        z = jnp.dot(seq.astype(jnp.bfloat16), fc1w_ref[...],
                    preferred_element_type=jnp.float32) + fc1b_ref[...]
        z = jnp.maximum(z, 0.0)
        o_ref[...] = jnp.dot(z.astype(jnp.bfloat16), fc2w_ref[...],
                             preferred_element_type=jnp.float32) + fc2b_ref[...]

    return kernel


# ------------------------------- Parameter preparation -------------------------------
def prepare_params(params):
    """One-time prep: transpose weights to (in, out), repack gate columns from
    PyTorch [i|f|g|o] to [i|f|o|g], fold the two LSTM bias vectors, and cast the
    MXU weight operands to bf16. Biases stay f32 (added post-accumulation)."""
    H = params["lstm"][0][1].shape[1]                      # w_hh is (4H, H)
    perm = jnp.concatenate([jnp.arange(0, 2 * H),          # i, f
                            jnp.arange(3 * H, 4 * H),      # o
                            jnp.arange(2 * H, 3 * H)])     # g
    prepped = {"lstm": []}
    for (w_ih, w_hh, b_ih, b_hh) in params["lstm"]:
        prepped["lstm"].append((
            jnp.asarray(w_ih).T[:, perm].astype(jnp.bfloat16),
            jnp.asarray(w_hh).T[:, perm].astype(jnp.bfloat16),
            (b_ih + b_hh)[perm][None, :].astype(jnp.float32),
        ))
    prepped["fc1_w_t"] = jnp.asarray(params["fc1_w"]).T.astype(jnp.bfloat16)
    prepped["fc1_b"] = params["fc1_b"][None, :].astype(jnp.float32)
    prepped["fc2_w_t"] = jnp.asarray(params["fc2_w"]).T.astype(jnp.bfloat16)
    prepped["fc2_b"] = params["fc2_b"][None, :].astype(jnp.float32)
    return prepped


# ---------------------------------- Forward pass ----------------------------------
def rnn_decoder_forward(x, prepped):
    """x: (B, T, D) batch-first (as nn.LSTM(batch_first=True)). Returns (B, T, num_outputs)."""
    B, T, D = x.shape
    BP = max(8, ((B + 7) // 8) * 8)       # pad batch to the 8-row sublane tile
    L = len(prepped["lstm"])
    H = prepped["lstm"][0][1].shape[0]    # w_hh_t is (H, 4H)

    # Fused pad + bf16 cast + time-major relayout + leading-dim merge of x, all
    # outside the kernel (tiny: T*BP*D elements << per-call weight traffic).
    x_tm = jnp.zeros((T, BP, D), jnp.bfloat16).at[:, :B, :].set(
        jnp.swapaxes(x, 0, 1).astype(jnp.bfloat16)).reshape(T * BP, D)

    wih0, whh0, b0 = prepped["lstm"][0]
    flat = [x_tm, wih0, whh0, b0]
    flat += [prepped["lstm"][l][2] for l in range(1, L)]          # later-layer biases
    flat += [prepped["fc1_w_t"], prepped["fc1_b"],
             prepped["fc2_w_t"], prepped["fc2_b"]]
    hbm_ws = []
    for l in range(1, L):
        hbm_ws += [prepped["lstm"][l][0], prepped["lstm"][l][1]]  # streamed manually
    flat += hbm_ws

    n_vmem_in = len(flat) - len(hbm_ws)
    in_specs = ([pl.BlockSpec(memory_space=pltpu.MemorySpace.VMEM)] * n_vmem_in
                + [pl.BlockSpec(memory_space=pl.ANY)] * len(hbm_ws))

    scratch = [pltpu.VMEM((T * BP, H), jnp.float32)]              # per-layer sequence
    for l in range(1, L):
        in_dim_l = prepped["lstm"][l][0].shape[0]
        scratch += [pltpu.VMEM((in_dim_l, 4 * H), jnp.bfloat16),
                    pltpu.VMEM((H, 4 * H), jnp.bfloat16)]
    if L > 1:
        scratch.append(pltpu.SemaphoreType.DMA((2 * (L - 1),)))

    num_out = prepped["fc2_w_t"].shape[1]
    out = pl.pallas_call(
        _make_decoder_kernel(L, T, BP, H),
        out_shape=jax.ShapeDtypeStruct((T * BP, num_out), jnp.float32),
        in_specs=in_specs,
        out_specs=pl.BlockSpec(memory_space=pltpu.MemorySpace.VMEM),
        scratch_shapes=scratch,
        compiler_params=pltpu.CompilerParams(vmem_limit_bytes=32 * 1024 * 1024),
    )(*flat)

    # (T*BP, O) time-major -> (B, T, O); tiny.
    return jnp.swapaxes(out.reshape(T, BP, num_out), 0, 1)[:B]


# ------------------------------------ References ------------------------------------
def _lstm_layer_ref(x, w_ih, w_hh, b_ih, b_hh, dot_dtype):
    B = x.shape[0]
    H = w_hh.shape[1]
    bias = (b_ih + b_hh).astype(jnp.float32)
    w_ih_t = w_ih.T.astype(dot_dtype)
    w_hh_t = w_hh.T.astype(dot_dtype)

    def step(carry, x_t):
        h, c = carry
        gates = (jnp.dot(x_t.astype(dot_dtype), w_ih_t,
                         preferred_element_type=jnp.float32)
                 + jnp.dot(h.astype(dot_dtype), w_hh_t,
                           preferred_element_type=jnp.float32) + bias)
        i, f, g, o = jnp.split(gates, 4, axis=-1)           # PyTorch gate order
        i, f, o = jax.nn.sigmoid(i), jax.nn.sigmoid(f), jax.nn.sigmoid(o)
        g = jnp.tanh(g)
        c = f * c + i * g
        h = o * jnp.tanh(c)
        return (h, c), h

    init = (jnp.zeros((B, H), jnp.float32), jnp.zeros((B, H), jnp.float32))
    _, hs = jax.lax.scan(step, init, jnp.swapaxes(x, 0, 1))
    return jnp.swapaxes(hs, 0, 1)


def rnn_decoder_ref(x, params, dot_dtype=jnp.float32):
    """Plain-JAX reference. dot_dtype=bf16 mimics the kernel's bf16 MXU operands
    (f32 accumulation, f32 gate/cell math) for a tight numerical check."""
    h = x.astype(jnp.float32)
    for (w_ih, w_hh, b_ih, b_hh) in params["lstm"]:
        h = _lstm_layer_ref(h, w_ih, w_hh, b_ih, b_hh, dot_dtype)
    z = jnp.maximum(
        jnp.dot(h.astype(dot_dtype), params["fc1_w"].T.astype(dot_dtype),
                preferred_element_type=jnp.float32) + params["fc1_b"], 0.0)
    return (jnp.dot(z.astype(dot_dtype), params["fc2_w"].T.astype(dot_dtype),
                    preferred_element_type=jnp.float32) + params["fc2_b"])


# -------------------------------------- Main --------------------------------------
if __name__ == "__main__":
    # Small shapes consistent with the module's forward.
    B, T = 2, 8
    CNN_EMBED_DIM = 64       # RNN_input_size (default 1500; shrunk for the demo)
    H_RNN = 128
    H_RNN_LAYERS = 2
    H_FC = 32
    NUM_OUTPUTS = 2

    key = jax.random.PRNGKey(0)

    def uni(k, shape, bound):
        return jax.random.uniform(k, shape, jnp.float32, -bound, bound)

    keys = iter(jax.random.split(key, 32))
    k_lstm = 1.0 / (H_RNN ** 0.5)
    lstm_params = []
    in_dim = CNN_EMBED_DIM
    for _ in range(H_RNN_LAYERS):
        w_ih = uni(next(keys), (4 * H_RNN, in_dim), k_lstm)
        w_hh = uni(next(keys), (4 * H_RNN, H_RNN), k_lstm)
        b_ih = uni(next(keys), (4 * H_RNN,), k_lstm)
        b_hh = uni(next(keys), (4 * H_RNN,), k_lstm)
        lstm_params.append((w_ih, w_hh, b_ih, b_hh))
        in_dim = H_RNN

    params = {
        "lstm": lstm_params,
        "fc1_w": uni(next(keys), (H_FC, H_RNN), 1.0 / (H_RNN ** 0.5)),
        "fc1_b": uni(next(keys), (H_FC,), 1.0 / (H_RNN ** 0.5)),
        "fc2_w": uni(next(keys), (NUM_OUTPUTS, H_FC), 1.0 / (H_FC ** 0.5)),
        "fc2_b": uni(next(keys), (NUM_OUTPUTS,), 1.0 / (H_FC ** 0.5)),
    }

    x = jax.random.normal(next(keys), (B, T, CNN_EMBED_DIM), jnp.float32)

    prepped = prepare_params(params)        # one-time transpose / repack / bf16 cast
    fwd = jax.jit(rnn_decoder_forward)

    out = jax.block_until_ready(fwd(x, prepped))
    assert out.shape == (B, T, NUM_OUTPUTS), out.shape

    # Tight check vs a reference that mimics the kernel's bf16 MXU operands:
    # catches gate-repack / bias-fold / transpose bugs without bf16 rounding
    # noise masking them.
    ref_bf16 = jax.block_until_ready(
        rnn_decoder_ref(x, params, dot_dtype=jnp.bfloat16))
    assert jnp.allclose(out, ref_bf16, atol=1e-3, rtol=1e-3), \
        "mismatch vs bf16-operand JAX reference"

    # Looser sanity check vs the exact-f32 reference (expected bf16-operand noise).
    ref_f32 = jax.block_until_ready(rnn_decoder_ref(x, params))
    assert jnp.allclose(out, ref_f32, atol=3e-2, rtol=3e-2), \
        "mismatch vs f32 JAX reference"

    print("KERNEL_OK")
</pallas_src>

<mosaic_0001>
module attributes {stable_mosaic.version = 11 : i64} {
  func.func @kernel(%arg0: memref<64x64xbf16, #tpu.memory_space<vmem>>, %arg1: memref<64x512xbf16, #tpu.memory_space<vmem>>, %arg2: memref<128x512xbf16, #tpu.memory_space<vmem>>, %arg3: memref<1x512xf32, #tpu.memory_space<vmem>>, %arg4: memref<1x512xf32, #tpu.memory_space<vmem>>, %arg5: memref<128x32xbf16, #tpu.memory_space<vmem>>, %arg6: memref<1x32xf32, #tpu.memory_space<vmem>>, %arg7: memref<32x2xbf16, #tpu.memory_space<vmem>>, %arg8: memref<1x2xf32, #tpu.memory_space<vmem>>, %arg9: memref<128x512xbf16, #tpu.memory_space<any>>, %arg10: memref<128x512xbf16, #tpu.memory_space<any>>, %arg11: memref<64x2xf32, #tpu.memory_space<vmem>>, %arg12: memref<64x128xf32, #tpu.memory_space<vmem>>, %arg13: memref<128x512xbf16, #tpu.memory_space<vmem>>, %arg14: memref<128x512xbf16, #tpu.memory_space<vmem>>, %arg15: memref<2x!tpu.dma_semaphore, #tpu.memory_space<semaphore_mem>>) attributes {dimension_semantics = [], scalar_prefetch = 0 : i64, scratch_operands = 4 : i64, tpu.core_type = #tpu.core_type<tc>} {
    %c0_i32 = arith.constant 0 : i32
    %0 = tpu.memref_slice %arg15[%c0_i32] : memref<2x!tpu.dma_semaphore, #tpu.memory_space<semaphore_mem>> -> memref<1x!tpu.dma_semaphore, #tpu.memory_space<semaphore_mem>>
    %1 = tpu.memref_squeeze %0 : memref<1x!tpu.dma_semaphore, #tpu.memory_space<semaphore_mem>> -> memref<!tpu.dma_semaphore, #tpu.memory_space<semaphore_mem>>
    tpu.enqueue_dma source(%arg9 : memref<128x512xbf16, #tpu.memory_space<any>>) target(%arg13 : memref<128x512xbf16, #tpu.memory_space<vmem>>) target_semaphore(%1 : memref<!tpu.dma_semaphore, #tpu.memory_space<semaphore_mem>>)
    %c1_i32 = arith.constant 1 : i32
    %2 = tpu.memref_slice %arg15[%c1_i32] : memref<2x!tpu.dma_semaphore, #tpu.memory_space<semaphore_mem>> -> memref<1x!tpu.dma_semaphore, #tpu.memory_space<semaphore_mem>>
    %3 = tpu.memref_squeeze %2 : memref<1x!tpu.dma_semaphore, #tpu.memory_space<semaphore_mem>> -> memref<!tpu.dma_semaphore, #tpu.memory_space<semaphore_mem>>
    tpu.enqueue_dma source(%arg10 : memref<128x512xbf16, #tpu.memory_space<any>>) target(%arg14 : memref<128x512xbf16, #tpu.memory_space<vmem>>) target_semaphore(%3 : memref<!tpu.dma_semaphore, #tpu.memory_space<semaphore_mem>>)
    %c0 = arith.constant 0 : index
    %c0_0 = arith.constant 0 : index
    %4 = vector.load %arg0[%c0, %c0_0] : memref<64x64xbf16, #tpu.memory_space<vmem>>, vector<64x64xbf16>
    %c0_1 = arith.constant 0 : index
    %c0_2 = arith.constant 0 : index
    %5 = vector.load %arg1[%c0_1, %c0_2] : memref<64x512xbf16, #tpu.memory_space<vmem>>, vector<64x512xbf16>
    %c0_3 = arith.constant 0 : index
    %c0_4 = arith.constant 0 : index
    %6 = vector.load %arg2[%c0_3, %c0_4] : memref<128x512xbf16, #tpu.memory_space<vmem>>, vector<128x512xbf16>
    %c0_5 = arith.constant 0 : index
    %c0_6 = arith.constant 0 : index
    %7 = vector.load %arg3[%c0_5, %c0_6] : memref<1x512xf32, #tpu.memory_space<vmem>>, vector<1x512xf32>
    %cst = arith.constant dense<0.000000e+00> : vector<64x512xf32>
    %8 = tpu.matmul %4, %5, %cst {dimension_numbers = #tpu.dot_dimension_numbers<[1], [0], [0], [1], [0, 0, 1, 1], [], []>} : vector<64x64xbf16>, vector<64x512xbf16>, vector<64x512xf32> -> vector<64x512xf32>
    %9 = vector.broadcast %7 : vector<1x512xf32> to vector<64x512xf32>
    %10 = arith.addf %8, %9 : vector<64x512xf32>
    %cst_7 = arith.constant 0.000000e+00 : f32
    %11 = vector.broadcast %cst_7 : f32 to vector<8x128xf32>
    %cst_8 = arith.constant 0.000000e+00 : f32
    %12 = vector.broadcast %cst_8 : f32 to vector<8x128xf32>
    %13 = vector.extract_strided_slice %10 {offsets = [0, 0], sizes = [8, 512], strides = [1, 1]} : vector<64x512xf32> to vector<8x512xf32>
    %14 = arith.truncf %11 : vector<8x128xf32> to vector<8x128xbf16>
    %cst_9 = arith.constant dense<0.000000e+00> : vector<8x512xf32>
    %15 = tpu.matmul %14, %6, %cst_9 {dimension_numbers = #tpu.dot_dimension_numbers<[1], [0], [0], [1], [0, 0, 1, 1], [], []>} : vector<8x128xbf16>, vector<128x512xbf16>, vector<8x512xf32> -> vector<8x512xf32>
    %16 = arith.addf %13, %15 : vector<8x512xf32>
    %17 = vector.extract_strided_slice %16 {offsets = [0, 0], sizes = [8, 384], strides = [1, 1]} : vector<8x512xf32> to vector<8x384xf32>
    %18 = arith.negf %17 : vector<8x384xf32>
    %19 = math.exp %18 : vector<8x384xf32>
    %cst_10 = arith.constant 1.000000e+00 : f32
    %20 = vector.broadcast %cst_10 : f32 to vector<8x384xf32>
    %21 = arith.addf %20, %19 : vector<8x384xf32>
    %22 = arith.divf %20, %21 : vector<8x384xf32>
    %23 = vector.extract_strided_slice %16 {offsets = [0, 384], sizes = [8, 128], strides = [1, 1]} : vector<8x512xf32> to vector<8x128xf32>
    %24 = math.tanh %23 : vector<8x128xf32>
    %25 = vector.extract_strided_slice %22 {offsets = [0, 128], sizes = [8, 128], strides = [1, 1]} : vector<8x384xf32> to vector<8x128xf32>
    %26 = arith.mulf %25, %12 : vector<8x128xf32>
    %27 = vector.extract_strided_slice %22 {offsets = [0, 0], sizes = [8, 128], strides = [1, 1]} : vector<8x384xf32> to vector<8x128xf32>
    %28 = arith.mulf %27, %24 : vector<8x128xf32>
    %29 = arith.addf %26, %28 : vector<8x128xf32>
    %30 = vector.extract_strided_slice %22 {offsets = [0, 256], sizes = [8, 128], strides = [1, 1]} : vector<8x384xf32> to vector<8x128xf32>
    %31 = math.tanh %29 : vector<8x128xf32>
    %32 = arith.mulf %30, %31 : vector<8x128xf32>
    %c0_11 = arith.constant 0 : index
    %c0_12 = arith.constant 0 : index
    %33 = vector.load %arg12[%c0_11, %c0_12] : memref<64x128xf32, #tpu.memory_space<vmem>>, vector<8x128xf32>
    tpu.vector_store %arg12[%c0_11, %c0_12], %32 {strides = array<i32>} : memref<64x128xf32, #tpu.memory_space<vmem>>, vector<8x128xf32>,
    %34 = vector.extract_strided_slice %10 {offsets = [8, 0], sizes = [8, 512], strides = [1, 1]} : vector<64x512xf32> to vector<8x512xf32>
    %35 = arith.truncf %32 : vector<8x128xf32> to vector<8x128xbf16>
    %cst_13 = arith.constant dense<0.000000e+00> : vector<8x512xf32>
    %36 = tpu.matmul %35, %6, %cst_13 {dimension_numbers = #tpu.dot_dimension_numbers<[1], [0], [0], [1], [0, 0, 1, 1], [], []>} : vector<8x128xbf16>, vector<128x512xbf16>, vector<8x512xf32> -> vector<8x512xf32>
    %37 = arith.addf %34, %36 : vector<8x512xf32>
    %38 = vector.extract_strided_slice %37 {offsets = [0, 0], sizes = [8, 384], strides = [1, 1]} : vector<8x512xf32> to vector<8x384xf32>
    %39 = arith.negf %38 : vector<8x384xf32>
    %40 = math.exp %39 : vector<8x384xf32>
    %cst_14 = arith.constant 1.000000e+00 : f32
    %41 = vector.broadcast %cst_14 : f32 to vector<8x384xf32>
    %42 = arith.addf %41, %40 : vector<8x384xf32>
    %43 = arith.divf %41, %42 : vector<8x384xf32>
    %44 = vector.extract_strided_slice %37 {offsets = [0, 384], sizes = [8, 128], strides = [1, 1]} : vector<8x512xf32> to vector<8x128xf32>
    %45 = math.tanh %44 : vector<8x128xf32>
    %46 = vector.extract_strided_slice %43 {offsets = [0, 128], sizes = [8, 128], strides = [1, 1]} : vector<8x384xf32> to vector<8x128xf32>
    %47 = arith.mulf %46, %29 : vector<8x128xf32>
    %48 = vector.extract_strided_slice %43 {offsets = [0, 0], sizes = [8, 128], strides = [1, 1]} : vector<8x384xf32> to vector<8x128xf32>
    %49 = arith.mulf %48, %45 : vector<8x128xf32>
    %50 = arith.addf %47, %49 : vector<8x128xf32>
    %51 = vector.extract_strided_slice %43 {offsets = [0, 256], sizes = [8, 128], strides = [1, 1]} : vector<8x384xf32> to vector<8x128xf32>
    %52 = math.tanh %50 : vector<8x128xf32>
    %53 = arith.mulf %51, %52 : vector<8x128xf32>
    %c8 = arith.constant 8 : index
    %c0_15 = arith.constant 0 : index
    %54 = vector.load %arg12[%c8, %c0_15] : memref<64x128xf32, #tpu.memory_space<vmem>>, vector<8x128xf32>
    tpu.vector_store %arg12[%c8, %c0_15], %53 {strides = array<i32>} : memref<64x128xf32, #tpu.memory_space<vmem>>, vector<8x128xf32>,
    %55 = vector.extract_strided_slice %10 {offsets = [16, 0], sizes = [8, 512], strides = [1, 1]} : vector<64x512xf32> to vector<8x512xf32>
    %56 = arith.truncf %53 : vector<8x128xf32> to vector<8x128xbf16>
    %cst_16 = arith.constant dense<0.000000e+00> : vector<8x512xf32>
    %57 = tpu.matmul %56, %6, %cst_16 {dimension_numbers = #tpu.dot_dimension_numbers<[1], [0], [0], [1], [0, 0, 1, 1], [], []>} : vector<8x128xbf16>, vector<128x512xbf16>, vector<8x512xf32> -> vector<8x512xf32>
    %58 = arith.addf %55, %57 : vector<8x512xf32>
    %59 = vector.extract_strided_slice %58 {offsets = [0, 0], sizes = [8, 384], strides = [1, 1]} : vector<8x512xf32> to vector<8x384xf32>
    %60 = arith.negf %59 : vector<8x384xf32>
    %61 = math.exp %60 : vector<8x384xf32>
    %cst_17 = arith.constant 1.000000e+00 : f32
    %62 = vector.broadcast %cst_17 : f32 to vector<8x384xf32>
    %63 = arith.addf %62, %61 : vector<8x384xf32>
    %64 = arith.divf %62, %63 : vector<8x384xf32>
    %65 = vector.extract_strided_slice %58 {offsets = [0, 384], sizes = [8, 128], strides = [1, 1]} : vector<8x512xf32> to vector<8x128xf32>
    %66 = math.tanh %65 : vector<8x128xf32>
    %67 = vector.extract_strided_slice %64 {offsets = [0, 128], sizes = [8, 128], strides = [1, 1]} : vector<8x384xf32> to vector<8x128xf32>
    %68 = arith.mulf %67, %50 : vector<8x128xf32>
    %69 = vector.extract_strided_slice %64 {offsets = [0, 0], sizes = [8, 128], strides = [1, 1]} : vector<8x384xf32> to vector<8x128xf32>
    %70 = arith.mulf %69, %66 : vector<8x128xf32>
    %71 = arith.addf %68, %70 : vector<8x128xf32>
    %72 = vector.extract_strided_slice %64 {offsets = [0, 256], sizes = [8, 128], strides = [1, 1]} : vector<8x384xf32> to vector<8x128xf32>
    %73 = math.tanh %71 : vector<8x128xf32>
    %74 = arith.mulf %72, %73 : vector<8x128xf32>
    %c16 = arith.constant 16 : index
    %c0_18 = arith.constant 0 : index
    %75 = vector.load %arg12[%c16, %c0_18] : memref<64x128xf32, #tpu.memory_space<vmem>>, vector<8x128xf32>
    tpu.vector_store %arg12[%c16, %c0_18], %74 {strides = array<i32>} : memref<64x128xf32, #tpu.memory_space<vmem>>, vector<8x128xf32>,
    %76 = vector.extract_strided_slice %10 {offsets = [24, 0], sizes = [8, 512], strides = [1, 1]} : vector<64x512xf32> to vector<8x512xf32>
    %77 = arith.truncf %74 : vector<8x128xf32> to vector<8x128xbf16>
    %cst_19 = arith.constant dense<0.000000e+00> : vector<8x512xf32>
    %78 = tpu.matmul %77, %6, %cst_19 {dimension_numbers = #tpu.dot_dimension_numbers<[1], [0], [0], [1], [0, 0, 1, 1], [], []>} : vector<8x128xbf16>, vector<128x512xbf16>, vector<8x512xf32> -> vector<8x512xf32>
    %79 = arith.addf %76, %78 : vector<8x512xf32>
    %80 = vector.extract_strided_slice %79 {offsets = [0, 0], sizes = [8, 384], strides = [1, 1]} : vector<8x512xf32> to vector<8x384xf32>
    %81 = arith.negf %80 : vector<8x384xf32>
    %82 = math.exp %81 : vector<8x384xf32>
    %cst_20 = arith.constant 1.000000e+00 : f32
    %83 = vector.broadcast %cst_20 : f32 to vector<8x384xf32>
    %84 = arith.addf %83, %82 : vector<8x384xf32>
    %85 = arith.divf %83, %84 : vector<8x384xf32>
    %86 = vector.extract_strided_slice %79 {offsets = [0, 384], sizes = [8, 128], strides = [1, 1]} : vector<8x512xf32> to vector<8x128xf32>
    %87 = math.tanh %86 : vector<8x128xf32>
    %88 = vector.extract_strided_slice %85 {offsets = [0, 128], sizes = [8, 128], strides = [1, 1]} : vector<8x384xf32> to vector<8x128xf32>
    %89 = arith.mulf %88, %71 : vector<8x128xf32>
    %90 = vector.extract_strided_slice %85 {offsets = [0, 0], sizes = [8, 128], strides = [1, 1]} : vector<8x384xf32> to vector<8x128xf32>
    %91 = arith.mulf %90, %87 : vector<8x128xf32>
    %92 = arith.addf %89, %91 : vector<8x128xf32>
    %93 = vector.extract_strided_slice %85 {offsets = [0, 256], sizes = [8, 128], strides = [1, 1]} : vector<8x384xf32> to vector<8x128xf32>
    %94 = math.tanh %92 : vector<8x128xf32>
    %95 = arith.mulf %93, %94 : vector<8x128xf32>
    %c24 = arith.constant 24 : index
    %c0_21 = arith.constant 0 : index
    %96 = vector.load %arg12[%c24, %c0_21] : memref<64x128xf32, #tpu.memory_space<vmem>>, vector<8x128xf32>
    tpu.vector_store %arg12[%c24, %c0_21], %95 {strides = array<i32>} : memref<64x128xf32, #tpu.memory_space<vmem>>, vector<8x128xf32>,
    %97 = vector.extract_strided_slice %10 {offsets = [32, 0], sizes = [8, 512], strides = [1, 1]} : vector<64x512xf32> to vector<8x512xf32>
    %98 = arith.truncf %95 : vector<8x128xf32> to vector<8x128xbf16>
    %cst_22 = arith.constant dense<0.000000e+00> : vector<8x512xf32>
    %99 = tpu.matmul %98, %6, %cst_22 {dimension_numbers = #tpu.dot_dimension_numbers<[1], [0], [0], [1], [0, 0, 1, 1], [], []>} : vector<8x128xbf16>, vector<128x512xbf16>, vector<8x512xf32> -> vector<8x512xf32>
    %100 = arith.addf %97, %99 : vector<8x512xf32>
    %101 = vector.extract_strided_slice %100 {offsets = [0, 0], sizes = [8, 384], strides = [1, 1]} : vector<8x512xf32> to vector<8x384xf32>
    %102 = arith.negf %101 : vector<8x384xf32>
    %103 = math.exp %102 : vector<8x384xf32>
    %cst_23 = arith.constant 1.000000e+00 : f32
    %104 = vector.broadcast %cst_23 : f32 to vector<8x384xf32>
    %105 = arith.addf %104, %103 : vector<8x384xf32>
    %106 = arith.divf %104, %105 : vector<8x384xf32>
    %107 = vector.extract_strided_slice %100 {offsets = [0, 384], sizes = [8, 128], strides = [1, 1]} : vector<8x512xf32> to vector<8x128xf32>
    %108 = math.tanh %107 : vector<8x128xf32>
    %109 = vector.extract_strided_slice %106 {offsets = [0, 128], sizes = [8, 128], strides = [1, 1]} : vector<8x384xf32> to vector<8x128xf32>
    %110 = arith.mulf %109, %92 : vector<8x128xf32>
    %111 = vector.extract_strided_slice %106 {offsets = [0, 0], sizes = [8, 128], strides = [1, 1]} : vector<8x384xf32> to vector<8x128xf32>
    %112 = arith.mulf %111, %108 : vector<8x128xf32>
    %113 = arith.addf %110, %112 : vector<8x128xf32>
    %114 = vector.extract_strided_slice %106 {offsets = [0, 256], sizes = [8, 128], strides = [1, 1]} : vector<8x384xf32> to vector<8x128xf32>
    %115 = math.tanh %113 : vector<8x128xf32>
    %116 = arith.mulf %114, %115 : vector<8x128xf32>
    %c32 = arith.constant 32 : index
    %c0_24 = arith.constant 0 : index
    %117 = vector.load %arg12[%c32, %c0_24] : memref<64x128xf32, #tpu.memory_space<vmem>>, vector<8x128xf32>
    tpu.vector_store %arg12[%c32, %c0_24], %116 {strides = array<i32>} : memref<64x128xf32, #tpu.memory_space<vmem>>, vector<8x128xf32>,
    %118 = vector.extract_strided_slice %10 {offsets = [40, 0], sizes = [8, 512], strides = [1, 1]} : vector<64x512xf32> to vector<8x512xf32>
    %119 = arith.truncf %116 : vector<8x128xf32> to vector<8x128xbf16>
    %cst_25 = arith.constant dense<0.000000e+00> : vector<8x512xf32>
    %120 = tpu.matmul %119, %6, %cst_25 {dimension_numbers = #tpu.dot_dimension_numbers<[1], [0], [0], [1], [0, 0, 1, 1], [], []>} : vector<8x128xbf16>, vector<128x512xbf16>, vector<8x512xf32> -> vector<8x512xf32>
    %121 = arith.addf %118, %120 : vector<8x512xf32>
    %122 = vector.extract_strided_slice %121 {offsets = [0, 0], sizes = [8, 384], strides = [1, 1]} : vector<8x512xf32> to vector<8x384xf32>
    %123 = arith.negf %122 : vector<8x384xf32>
    %124 = math.exp %123 : vector<8x384xf32>
    %cst_26 = arith.constant 1.000000e+00 : f32
    %125 = vector.broadcast %cst_26 : f32 to vector<8x384xf32>
    %126 = arith.addf %125, %124 : vector<8x384xf32>
    %127 = arith.divf %125, %126 : vector<8x384xf32>
    %128 = vector.extract_strided_slice %121 {offsets = [0, 384], sizes = [8, 128], strides = [1, 1]} : vector<8x512xf32> to vector<8x128xf32>
    %129 = math.tanh %128 : vector<8x128xf32>
    %130 = vector.extract_strided_slice %127 {offsets = [0, 128], sizes = [8, 128], strides = [1, 1]} : vector<8x384xf32> to vector<8x128xf32>
    %131 = arith.mulf %130, %113 : vector<8x128xf32>
    %132 = vector.extract_strided_slice %127 {offsets = [0, 0], sizes = [8, 128], strides = [1, 1]} : vector<8x384xf32> to vector<8x128xf32>
    %133 = arith.mulf %132, %129 : vector<8x128xf32>
    %134 = arith.addf %131, %133 : vector<8x128xf32>
    %135 = vector.extract_strided_slice %127 {offsets = [0, 256], sizes = [8, 128], strides = [1, 1]} : vector<8x384xf32> to vector<8x128xf32>
    %136 = math.tanh %134 : vector<8x128xf32>
    %137 = arith.mulf %135, %136 : vector<8x128xf32>
    %c40 = arith.constant 40 : index
    %c0_27 = arith.constant 0 : index
    %138 = vector.load %arg12[%c40, %c0_27] : memref<64x128xf32, #tpu.memory_space<vmem>>, vector<8x128xf32>
    tpu.vector_store %arg12[%c40, %c0_27], %137 {strides = array<i32>} : memref<64x128xf32, #tpu.memory_space<vmem>>, vector<8x128xf32>,
    %139 = vector.extract_strided_slice %10 {offsets = [48, 0], sizes = [8, 512], strides = [1, 1]} : vector<64x512xf32> to vector<8x512xf32>
    %140 = arith.truncf %137 : vector<8x128xf32> to vector<8x128xbf16>
    %cst_28 = arith.constant dense<0.000000e+00> : vector<8x512xf32>
    %141 = tpu.matmul %140, %6, %cst_28 {dimension_numbers = #tpu.dot_dimension_numbers<[1], [0], [0], [1], [0, 0, 1, 1], [], []>} : vector<8x128xbf16>, vector<128x512xbf16>, vector<8x512xf32> -> vector<8x512xf32>
    %142 = arith.addf %139, %141 : vector<8x512xf32>
    %143 = vector.extract_strided_slice %142 {offsets = [0, 0], sizes = [8, 384], strides = [1, 1]} : vector<8x512xf32> to vector<8x384xf32>
    %144 = arith.negf %143 : vector<8x384xf32>
    %145 = math.exp %144 : vector<8x384xf32>
    %cst_29 = arith.constant 1.000000e+00 : f32
    %146 = vector.broadcast %cst_29 : f32 to vector<8x384xf32>
    %147 = arith.addf %146, %145 : vector<8x384xf32>
    %148 = arith.divf %146, %147 : vector<8x384xf32>
    %149 = vector.extract_strided_slice %142 {offsets = [0, 384], sizes = [8, 128], strides = [1, 1]} : vector<8x512xf32> to vector<8x128xf32>
    %150 = math.tanh %149 : vector<8x128xf32>
    %151 = vector.extract_strided_slice %148 {offsets = [0, 128], sizes = [8, 128], strides = [1, 1]} : vector<8x384xf32> to vector<8x128xf32>
    %152 = arith.mulf %151, %134 : vector<8x128xf32>
    %153 = vector.extract_strided_slice %148 {offsets = [0, 0], sizes = [8, 128], strides = [1, 1]} : vector<8x384xf32> to vector<8x128xf32>
    %154 = arith.mulf %153, %150 : vector<8x128xf32>
    %155 = arith.addf %152, %154 : vector<8x128xf32>
    %156 = vector.extract_strided_slice %148 {offsets = [0, 256], sizes = [8, 128], strides = [1, 1]} : vector<8x384xf32> to vector<8x128xf32>
    %157 = math.tanh %155 : vector<8x128xf32>
    %158 = arith.mulf %156, %157 : vector<8x128xf32>
    %c48 = arith.constant 48 : index
    %c0_30 = arith.constant 0 : index
    %159 = vector.load %arg12[%c48, %c0_30] : memref<64x128xf32, #tpu.memory_space<vmem>>, vector<8x128xf32>
    tpu.vector_store %arg12[%c48, %c0_30], %158 {strides = array<i32>} : memref<64x128xf32, #tpu.memory_space<vmem>>, vector<8x128xf32>,
    %160 = vector.extract_strided_slice %10 {offsets = [56, 0], sizes = [8, 512], strides = [1, 1]} : vector<64x512xf32> to vector<8x512xf32>
    %161 = arith.truncf %158 : vector<8x128xf32> to vector<8x128xbf16>
    %cst_31 = arith.constant dense<0.000000e+00> : vector<8x512xf32>
    %162 = tpu.matmul %161, %6, %cst_31 {dimension_numbers = #tpu.dot_dimension_numbers<[1], [0], [0], [1], [0, 0, 1, 1], [], []>} : vector<8x128xbf16>, vector<128x512xbf16>, vector<8x512xf32> -> vector<8x512xf32>
    %163 = arith.addf %160, %162 : vector<8x512xf32>
    %164 = vector.extract_strided_slice %163 {offsets = [0, 0], sizes = [8, 384], strides = [1, 1]} : vector<8x512xf32> to vector<8x384xf32>
    %165 = arith.negf %164 : vector<8x384xf32>
    %166 = math.exp %165 : vector<8x384xf32>
    %cst_32 = arith.constant 1.000000e+00 : f32
    %167 = vector.broadcast %cst_32 : f32 to vector<8x384xf32>
    %168 = arith.addf %167, %166 : vector<8x384xf32>
    %169 = arith.divf %167, %168 : vector<8x384xf32>
    %170 = vector.extract_strided_slice %163 {offsets = [0, 384], sizes = [8, 128], strides = [1, 1]} : vector<8x512xf32> to vector<8x128xf32>
    %171 = math.tanh %170 : vector<8x128xf32>
    %172 = vector.extract_strided_slice %169 {offsets = [0, 128], sizes = [8, 128], strides = [1, 1]} : vector<8x384xf32> to vector<8x128xf32>
    %173 = arith.mulf %172, %155 : vector<8x128xf32>
    %174 = vector.extract_strided_slice %169 {offsets = [0, 0], sizes = [8, 128], strides = [1, 1]} : vector<8x384xf32> to vector<8x128xf32>
    %175 = arith.mulf %174, %171 : vector<8x128xf32>
    %176 = arith.addf %173, %175 : vector<8x128xf32>
    %177 = vector.extract_strided_slice %169 {offsets = [0, 256], sizes = [8, 128], strides = [1, 1]} : vector<8x384xf32> to vector<8x128xf32>
    %178 = math.tanh %176 : vector<8x128xf32>
    %179 = arith.mulf %177, %178 : vector<8x128xf32>
    %c56 = arith.constant 56 : index
    %c0_33 = arith.constant 0 : index
    %180 = vector.load %arg12[%c56, %c0_33] : memref<64x128xf32, #tpu.memory_space<vmem>>, vector<8x128xf32>
    tpu.vector_store %arg12[%c56, %c0_33], %179 {strides = array<i32>} : memref<64x128xf32, #tpu.memory_space<vmem>>, vector<8x128xf32>,
    %c0_34 = arith.constant 0 : index
    %c0_35 = arith.constant 0 : index
    %181 = vector.load %arg12[%c0_34, %c0_35] : memref<64x128xf32, #tpu.memory_space<vmem>>, vector<64x128xf32>
    %c0_i32_36 = arith.constant 0 : i32
    %182 = tpu.memref_slice %arg15[%c0_i32_36] : memref<2x!tpu.dma_semaphore, #tpu.memory_space<semaphore_mem>> -> memref<1x!tpu.dma_semaphore, #tpu.memory_space<semaphore_mem>>
    %183 = tpu.memref_squeeze %182 : memref<1x!tpu.dma_semaphore, #tpu.memory_space<semaphore_mem>> -> memref<!tpu.dma_semaphore, #tpu.memory_space<semaphore_mem>>
    tpu.wait_dma2 semaphore(%183 : memref<!tpu.dma_semaphore, #tpu.memory_space<semaphore_mem>>) src(%arg9 : memref<128x512xbf16, #tpu.memory_space<any>>) dst(%arg13 : memref<128x512xbf16, #tpu.memory_space<vmem>>)
    %c1_i32_37 = arith.constant 1 : i32
    %184 = tpu.memref_slice %arg15[%c1_i32_37] : memref<2x!tpu.dma_semaphore, #tpu.memory_space<semaphore_mem>> -> memref<1x!tpu.dma_semaphore, #tpu.memory_space<semaphore_mem>>
    %185 = tpu.memref_squeeze %184 : memref<1x!tpu.dma_semaphore, #tpu.memory_space<semaphore_mem>> -> memref<!tpu.dma_semaphore, #tpu.memory_space<semaphore_mem>>
    tpu.wait_dma2 semaphore(%185 : memref<!tpu.dma_semaphore, #tpu.memory_space<semaphore_mem>>) src(%arg10 : memref<128x512xbf16, #tpu.memory_space<any>>) dst(%arg14 : memref<128x512xbf16, #tpu.memory_space<vmem>>)
    %186 = arith.truncf %181 : vector<64x128xf32> to vector<64x128xbf16>
    %c0_38 = arith.constant 0 : index
    %c0_39 = arith.constant 0 : index
    %187 = vector.load %arg13[%c0_38, %c0_39] : memref<128x512xbf16, #tpu.memory_space<vmem>>, vector<128x512xbf16>
    %c0_40 = arith.constant 0 : index
    %c0_41 = arith.constant 0 : index
    %188 = vector.load %arg14[%c0_40, %c0_41] : memref<128x512xbf16, #tpu.memory_space<vmem>>, vector<128x512xbf16>
    %c0_42 = arith.constant 0 : index
    %c0_43 = arith.constant 0 : index
    %189 = vector.load %arg4[%c0_42, %c0_43] : memref<1x512xf32, #tpu.memory_space<vmem>>, vector<1x512xf32>
    %cst_44 = arith.constant dense<0.000000e+00> : vector<64x512xf32>
    %190 = tpu.matmul %186, %187, %cst_44 {dimension_numbers = #tpu.dot_dimension_numbers<[1], [0], [0], [1], [0, 0, 1, 1], [], []>} : vector<64x128xbf16>, vector<128x512xbf16>, vector<64x512xf32> -> vector<64x512xf32>
    %191 = vector.broadcast %189 : vector<1x512xf32> to vector<64x512xf32>
    %192 = arith.addf %190, %191 : vector<64x512xf32>
    %cst_45 = arith.constant 0.000000e+00 : f32
    %193 = vector.broadcast %cst_45 : f32 to vector<8x128xf32>
    %cst_46 = arith.constant 0.000000e+00 : f32
    %194 = vector.broadcast %cst_46 : f32 to vector<8x128xf32>
    %195 = vector.extract_strided_slice %192 {offsets = [0, 0], sizes = [8, 512], strides = [1, 1]} : vector<64x512xf32> to vector<8x512xf32>
    %196 = arith.truncf %193 : vector<8x128xf32> to vector<8x128xbf16>
    %cst_47 = arith.constant dense<0.000000e+00> : vector<8x512xf32>
    %197 = tpu.matmul %196, %188, %cst_47 {dimension_numbers = #tpu.dot_dimension_numbers<[1], [0], [0], [1], [0, 0, 1, 1], [], []>} : vector<8x128xbf16>, vector<128x512xbf16>, vector<8x512xf32> -> vector<8x512xf32>
    %198 = arith.addf %195, %197 : vector<8x512xf32>
    %199 = vector.extract_strided_slice %198 {offsets = [0, 0], sizes = [8, 384], strides = [1, 1]} : vector<8x512xf32> to vector<8x384xf32>
    %200 = arith.negf %199 : vector<8x384xf32>
    %201 = math.exp %200 : vector<8x384xf32>
    %cst_48 = arith.constant 1.000000e+00 : f32
    %202 = vector.broadcast %cst_48 : f32 to vector<8x384xf32>
    %203 = arith.addf %202, %201 : vector<8x384xf32>
    %204 = arith.divf %202, %203 : vector<8x384xf32>
    %205 = vector.extract_strided_slice %198 {offsets = [0, 384], sizes = [8, 128], strides = [1, 1]} : vector<8x512xf32> to vector<8x128xf32>
    %206 = math.tanh %205 : vector<8x128xf32>
    %207 = vector.extract_strided_slice %204 {offsets = [0, 128], sizes = [8, 128], strides = [1, 1]} : vector<8x384xf32> to vector<8x128xf32>
    %208 = arith.mulf %207, %194 : vector<8x128xf32>
    %209 = vector.extract_strided_slice %204 {offsets = [0, 0], sizes = [8, 128], strides = [1, 1]} : vector<8x384xf32> to vector<8x128xf32>
    %210 = arith.mulf %209, %206 : vector<8x128xf32>
    %211 = arith.addf %208, %210 : vector<8x128xf32>
    %212 = vector.extract_strided_slice %204 {offsets = [0, 256], sizes = [8, 128], strides = [1, 1]} : vector<8x384xf32> to vector<8x128xf32>
    %213 = math.tanh %211 : vector<8x128xf32>
    %214 = arith.mulf %212, %213 : vector<8x128xf32>
    %c0_49 = arith.constant 0 : index
    %c0_50 = arith.constant 0 : index
    %215 = vector.load %arg12[%c0_49, %c0_50] : memref<64x128xf32, #tpu.memory_space<vmem>>, vector<8x128xf32>
    tpu.vector_store %arg12[%c0_49, %c0_50], %214 {strides = array<i32>} : memref<64x128xf32, #tpu.memory_space<vmem>>, vector<8x128xf32>,
    %216 = vector.extract_strided_slice %192 {offsets = [8, 0], sizes = [8, 512], strides = [1, 1]} : vector<64x512xf32> to vector<8x512xf32>
    %217 = arith.truncf %214 : vector<8x128xf32> to vector<8x128xbf16>
    %cst_51 = arith.constant dense<0.000000e+00> : vector<8x512xf32>
    %218 = tpu.matmul %217, %188, %cst_51 {dimension_numbers = #tpu.dot_dimension_numbers<[1], [0], [0], [1], [0, 0, 1, 1], [], []>} : vector<8x128xbf16>, vector<128x512xbf16>, vector<8x512xf32> -> vector<8x512xf32>
    %219 = arith.addf %216, %218 : vector<8x512xf32>
    %220 = vector.extract_strided_slice %219 {offsets = [0, 0], sizes = [8, 384], strides = [1, 1]} : vector<8x512xf32> to vector<8x384xf32>
    %221 = arith.negf %220 : vector<8x384xf32>
    %222 = math.exp %221 : vector<8x384xf32>
    %cst_52 = arith.constant 1.000000e+00 : f32
    %223 = vector.broadcast %cst_52 : f32 to vector<8x384xf32>
    %224 = arith.addf %223, %222 : vector<8x384xf32>
    %225 = arith.divf %223, %224 : vector<8x384xf32>
    %226 = vector.extract_strided_slice %219 {offsets = [0, 384], sizes = [8, 128], strides = [1, 1]} : vector<8x512xf32> to vector<8x128xf32>
    %227 = math.tanh %226 : vector<8x128xf32>
    %228 = vector.extract_strided_slice %225 {offsets = [0, 128], sizes = [8, 128], strides = [1, 1]} : vector<8x384xf32> to vector<8x128xf32>
    %229 = arith.mulf %228, %211 : vector<8x128xf32>
    %230 = vector.extract_strided_slice %225 {offsets = [0, 0], sizes = [8, 128], strides = [1, 1]} : vector<8x384xf32> to vector<8x128xf32>
    %231 = arith.mulf %230, %227 : vector<8x128xf32>
    %232 = arith.addf %229, %231 : vector<8x128xf32>
    %233 = vector.extract_strided_slice %225 {offsets = [0, 256], sizes = [8, 128], strides = [1, 1]} : vector<8x384xf32> to vector<8x128xf32>
    %234 = math.tanh %232 : vector<8x128xf32>
    %235 = arith.mulf %233, %234 : vector<8x128xf32>
    %c8_53 = arith.constant 8 : index
    %c0_54 = arith.constant 0 : index
    %236 = vector.load %arg12[%c8_53, %c0_54] : memref<64x128xf32, #tpu.memory_space<vmem>>, vector<8x128xf32>
    tpu.vector_store %arg12[%c8_53, %c0_54], %235 {strides = array<i32>} : memref<64x128xf32, #tpu.memory_space<vmem>>, vector<8x128xf32>,
    %237 = vector.extract_strided_slice %192 {offsets = [16, 0], sizes = [8, 512], strides = [1, 1]} : vector<64x512xf32> to vector<8x512xf32>
    %238 = arith.truncf %235 : vector<8x128xf32> to vector<8x128xbf16>
    %cst_55 = arith.constant dense<0.000000e+00> : vector<8x512xf32>
    %239 = tpu.matmul %238, %188, %cst_55 {dimension_numbers = #tpu.dot_dimension_numbers<[1], [0], [0], [1], [0, 0, 1, 1], [], []>} : vector<8x128xbf16>, vector<128x512xbf16>, vector<8x512xf32> -> vector<8x512xf32>
    %240 = arith.addf %237, %239 : vector<8x512xf32>
    %241 = vector.extract_strided_slice %240 {offsets = [0, 0], sizes = [8, 384], strides = [1, 1]} : vector<8x512xf32> to vector<8x384xf32>
    %242 = arith.negf %241 : vector<8x384xf32>
    %243 = math.exp %242 : vector<8x384xf32>
    %cst_56 = arith.constant 1.000000e+00 : f32
    %244 = vector.broadcast %cst_56 : f32 to vector<8x384xf32>
    %245 = arith.addf %244, %243 : vector<8x384xf32>
    %246 = arith.divf %244, %245 : vector<8x384xf32>
    %247 = vector.extract_strided_slice %240 {offsets = [0, 384], sizes = [8, 128], strides = [1, 1]} : vector<8x512xf32> to vector<8x128xf32>
    %248 = math.tanh %247 : vector<8x128xf32>
    %249 = vector.extract_strided_slice %246 {offsets = [0, 128], sizes = [8, 128], strides = [1, 1]} : vector<8x384xf32> to vector<8x128xf32>
    %250 = arith.mulf %249, %232 : vector<8x128xf32>
    %251 = vector.extract_strided_slice %246 {offsets = [0, 0], sizes = [8, 128], strides = [1, 1]} : vector<8x384xf32> to vector<8x128xf32>
    %252 = arith.mulf %251, %248 : vector<8x128xf32>
    %253 = arith.addf %250, %252 : vector<8x128xf32>
    %254 = vector.extract_strided_slice %246 {offsets = [0, 256], sizes = [8, 128], strides = [1, 1]} : vector<8x384xf32> to vector<8x128xf32>
    %255 = math.tanh %253 : vector<8x128xf32>
    %256 = arith.mulf %254, %255 : vector<8x128xf32>
    %c16_57 = arith.constant 16 : index
    %c0_58 = arith.constant 0 : index
    %257 = vector.load %arg12[%c16_57, %c0_58] : memref<64x128xf32, #tpu.memory_space<vmem>>, vector<8x128xf32>
    tpu.vector_store %arg12[%c16_57, %c0_58], %256 {strides = array<i32>} : memref<64x128xf32, #tpu.memory_space<vmem>>, vector<8x128xf32>,
    %258 = vector.extract_strided_slice %192 {offsets = [24, 0], sizes = [8, 512], strides = [1, 1]} : vector<64x512xf32> to vector<8x512xf32>
    %259 = arith.truncf %256 : vector<8x128xf32> to vector<8x128xbf16>
    %cst_59 = arith.constant dense<0.000000e+00> : vector<8x512xf32>
    %260 = tpu.matmul %259, %188, %cst_59 {dimension_numbers = #tpu.dot_dimension_numbers<[1], [0], [0], [1], [0, 0, 1, 1], [], []>} : vector<8x128xbf16>, vector<128x512xbf16>, vector<8x512xf32> -> vector<8x512xf32>
    %261 = arith.addf %258, %260 : vector<8x512xf32>
    %262 = vector.extract_strided_slice %261 {offsets = [0, 0], sizes = [8, 384], strides = [1, 1]} : vector<8x512xf32> to vector<8x384xf32>
    %263 = arith.negf %262 : vector<8x384xf32>
    %264 = math.exp %263 : vector<8x384xf32>
    %cst_60 = arith.constant 1.000000e+00 : f32
    %265 = vector.broadcast %cst_60 : f32 to vector<8x384xf32>
    %266 = arith.addf %265, %264 : vector<8x384xf32>
    %267 = arith.divf %265, %266 : vector<8x384xf32>
    %268 = vector.extract_strided_slice %261 {offsets = [0, 384], sizes = [8, 128], strides = [1, 1]} : vector<8x512xf32> to vector<8x128xf32>
    %269 = math.tanh %268 : vector<8x128xf32>
    %270 = vector.extract_strided_slice %267 {offsets = [0, 128], sizes = [8, 128], strides = [1, 1]} : vector<8x384xf32> to vector<8x128xf32>
    %271 = arith.mulf %270, %253 : vector<8x128xf32>
    %272 = vector.extract_strided_slice %267 {offsets = [0, 0], sizes = [8, 128], strides = [1, 1]} : vector<8x384xf32> to vector<8x128xf32>
    %273 = arith.mulf %272, %269 : vector<8x128xf32>
    %274 = arith.addf %271, %273 : vector<8x128xf32>
    %275 = vector.extract_strided_slice %267 {offsets = [0, 256], sizes = [8, 128], strides = [1, 1]} : vector<8x384xf32> to vector<8x128xf32>
    %276 = math.tanh %274 : vector<8x128xf32>
    %277 = arith.mulf %275, %276 : vector<8x128xf32>
    %c24_61 = arith.constant 24 : index
    %c0_62 = arith.constant 0 : index
    %278 = vector.load %arg12[%c24_61, %c0_62] : memref<64x128xf32, #tpu.memory_space<vmem>>, vector<8x128xf32>
    tpu.vector_store %arg12[%c24_61, %c0_62], %277 {strides = array<i32>} : memref<64x128xf32, #tpu.memory_space<vmem>>, vector<8x128xf32>,
    %279 = vector.extract_strided_slice %192 {offsets = [32, 0], sizes = [8, 512], strides = [1, 1]} : vector<64x512xf32> to vector<8x512xf32>
    %280 = arith.truncf %277 : vector<8x128xf32> to vector<8x128xbf16>
    %cst_63 = arith.constant dense<0.000000e+00> : vector<8x512xf32>
    %281 = tpu.matmul %280, %188, %cst_63 {dimension_numbers = #tpu.dot_dimension_numbers<[1], [0], [0], [1], [0, 0, 1, 1], [], []>} : vector<8x128xbf16>, vector<128x512xbf16>, vector<8x512xf32> -> vector<8x512xf32>
    %282 = arith.addf %279, %281 : vector<8x512xf32>
    %283 = vector.extract_strided_slice %282 {offsets = [0, 0], sizes = [8, 384], strides = [1, 1]} : vector<8x512xf32> to vector<8x384xf32>
    %284 = arith.negf %283 : vector<8x384xf32>
    %285 = math.exp %284 : vector<8x384xf32>
    %cst_64 = arith.constant 1.000000e+00 : f32
    %286 = vector.broadcast %cst_64 : f32 to vector<8x384xf32>
    %287 = arith.addf %286, %285 : vector<8x384xf32>
    %288 = arith.divf %286, %287 : vector<8x384xf32>
    %289 = vector.extract_strided_slice %282 {offsets = [0, 384], sizes = [8, 128], strides = [1, 1]} : vector<8x512xf32> to vector<8x128xf32>
    %290 = math.tanh %289 : vector<8x128xf32>
    %291 = vector.extract_strided_slice %288 {offsets = [0, 128], sizes = [8, 128], strides = [1, 1]} : vector<8x384xf32> to vector<8x128xf32>
    %292 = arith.mulf %291, %274 : vector<8x128xf32>
    %293 = vector.extract_strided_slice %288 {offsets = [0, 0], sizes = [8, 128], strides = [1, 1]} : vector<8x384xf32> to vector<8x128xf32>
    %294 = arith.mulf %293, %290 : vector<8x128xf32>
    %295 = arith.addf %292, %294 : vector<8x128xf32>
    %296 = vector.extract_strided_slice %288 {offsets = [0, 256], sizes = [8, 128], strides = [1, 1]} : vector<8x384xf32> to vector<8x128xf32>
    %297 = math.tanh %295 : vector<8x128xf32>
    %298 = arith.mulf %296, %297 : vector<8x128xf32>
    %c32_65 = arith.constant 32 : index
    %c0_66 = arith.constant 0 : index
    %299 = vector.load %arg12[%c32_65, %c0_66] : memref<64x128xf32, #tpu.memory_space<vmem>>, vector<8x128xf32>
    tpu.vector_store %arg12[%c32_65, %c0_66], %298 {strides = array<i32>} : memref<64x128xf32, #tpu.memory_space<vmem>>, vector<8x128xf32>,
    %300 = vector.extract_strided_slice %192 {offsets = [40, 0], sizes = [8, 512], strides = [1, 1]} : vector<64x512xf32> to vector<8x512xf32>
    %301 = arith.truncf %298 : vector<8x128xf32> to vector<8x128xbf16>
    %cst_67 = arith.constant dense<0.000000e+00> : vector<8x512xf32>
    %302 = tpu.matmul %301, %188, %cst_67 {dimension_numbers = #tpu.dot_dimension_numbers<[1], [0], [0], [1], [0, 0, 1, 1], [], []>} : vector<8x128xbf16>, vector<128x512xbf16>, vector<8x512xf32> -> vector<8x512xf32>
    %303 = arith.addf %300, %302 : vector<8x512xf32>
    %304 = vector.extract_strided_slice %303 {offsets = [0, 0], sizes = [8, 384], strides = [1, 1]} : vector<8x512xf32> to vector<8x384xf32>
    %305 = arith.negf %304 : vector<8x384xf32>
    %306 = math.exp %305 : vector<8x384xf32>
    %cst_68 = arith.constant 1.000000e+00 : f32
    %307 = vector.broadcast %cst_68 : f32 to vector<8x384xf32>
    %308 = arith.addf %307, %306 : vector<8x384xf32>
    %309 = arith.divf %307, %308 : vector<8x384xf32>
    %310 = vector.extract_strided_slice %303 {offsets = [0, 384], sizes = [8, 128], strides = [1, 1]} : vector<8x512xf32> to vector<8x128xf32>
    %311 = math.tanh %310 : vector<8x128xf32>
    %312 = vector.extract_strided_slice %309 {offsets = [0, 128], sizes = [8, 128], strides = [1, 1]} : vector<8x384xf32> to vector<8x128xf32>
    %313 = arith.mulf %312, %295 : vector<8x128xf32>
    %314 = vector.extract_strided_slice %309 {offsets = [0, 0], sizes = [8, 128], strides = [1, 1]} : vector<8x384xf32> to vector<8x128xf32>
    %315 = arith.mulf %314, %311 : vector<8x128xf32>
    %316 = arith.addf %313, %315 : vector<8x128xf32>
    %317 = vector.extract_strided_slice %309 {offsets = [0, 256], sizes = [8, 128], strides = [1, 1]} : vector<8x384xf32> to vector<8x128xf32>
    %318 = math.tanh %316 : vector<8x128xf32>
    %319 = arith.mulf %317, %318 : vector<8x128xf32>
    %c40_69 = arith.constant 40 : index
    %c0_70 = arith.constant 0 : index
    %320 = vector.load %arg12[%c40_69, %c0_70] : memref<64x128xf32, #tpu.memory_space<vmem>>, vector<8x128xf32>
    tpu.vector_store %arg12[%c40_69, %c0_70], %319 {strides = array<i32>} : memref<64x128xf32, #tpu.memory_space<vmem>>, vector<8x128xf32>,
    %321 = vector.extract_strided_slice %192 {offsets = [48, 0], sizes = [8, 512], strides = [1, 1]} : vector<64x512xf32> to vector<8x512xf32>
    %322 = arith.truncf %319 : vector<8x128xf32> to vector<8x128xbf16>
    %cst_71 = arith.constant dense<0.000000e+00> : vector<8x512xf32>
    %323 = tpu.matmul %322, %188, %cst_71 {dimension_numbers = #tpu.dot_dimension_numbers<[1], [0], [0], [1], [0, 0, 1, 1], [], []>} : vector<8x128xbf16>, vector<128x512xbf16>, vector<8x512xf32> -> vector<8x512xf32>
    %324 = arith.addf %321, %323 : vector<8x512xf32>
    %325 = vector.extract_strided_slice %324 {offsets = [0, 0], sizes = [8, 384], strides = [1, 1]} : vector<8x512xf32> to vector<8x384xf32>
    %326 = arith.negf %325 : vector<8x384xf32>
    %327 = math.exp %326 : vector<8x384xf32>
    %cst_72 = arith.constant 1.000000e+00 : f32
    %328 = vector.broadcast %cst_72 : f32 to vector<8x384xf32>
    %329 = arith.addf %328, %327 : vector<8x384xf32>
    %330 = arith.divf %328, %329 : vector<8x384xf32>
    %331 = vector.extract_strided_slice %324 {offsets = [0, 384], sizes = [8, 128], strides = [1, 1]} : vector<8x512xf32> to vector<8x128xf32>
    %332 = math.tanh %331 : vector<8x128xf32>
    %333 = vector.extract_strided_slice %330 {offsets = [0, 128], sizes = [8, 128], strides = [1, 1]} : vector<8x384xf32> to vector<8x128xf32>
    %334 = arith.mulf %333, %316 : vector<8x128xf32>
    %335 = vector.extract_strided_slice %330 {offsets = [0, 0], sizes = [8, 128], strides = [1, 1]} : vector<8x384xf32> to vector<8x128xf32>
    %336 = arith.mulf %335, %332 : vector<8x128xf32>
    %337 = arith.addf %334, %336 : vector<8x128xf32>
    %338 = vector.extract_strided_slice %330 {offsets = [0, 256], sizes = [8, 128], strides = [1, 1]} : vector<8x384xf32> to vector<8x128xf32>
    %339 = math.tanh %337 : vector<8x128xf32>
    %340 = arith.mulf %338, %339 : vector<8x128xf32>
    %c48_73 = arith.constant 48 : index
    %c0_74 = arith.constant 0 : index
    %341 = vector.load %arg12[%c48_73, %c0_74] : memref<64x128xf32, #tpu.memory_space<vmem>>, vector<8x128xf32>
    tpu.vector_store %arg12[%c48_73, %c0_74], %340 {strides = array<i32>} : memref<64x128xf32, #tpu.memory_space<vmem>>, vector<8x128xf32>,
    %342 = vector.extract_strided_slice %192 {offsets = [56, 0], sizes = [8, 512], strides = [1, 1]} : vector<64x512xf32> to vector<8x512xf32>
    %343 = arith.truncf %340 : vector<8x128xf32> to vector<8x128xbf16>
    %cst_75 = arith.constant dense<0.000000e+00> : vector<8x512xf32>
    %344 = tpu.matmul %343, %188, %cst_75 {dimension_numbers = #tpu.dot_dimension_numbers<[1], [0], [0], [1], [0, 0, 1, 1], [], []>} : vector<8x128xbf16>, vector<128x512xbf16>, vector<8x512xf32> -> vector<8x512xf32>
    %345 = arith.addf %342, %344 : vector<8x512xf32>
    %346 = vector.extract_strided_slice %345 {offsets = [0, 0], sizes = [8, 384], strides = [1, 1]} : vector<8x512xf32> to vector<8x384xf32>
    %347 = arith.negf %346 : vector<8x384xf32>
    %348 = math.exp %347 : vector<8x384xf32>
    %cst_76 = arith.constant 1.000000e+00 : f32
    %349 = vector.broadcast %cst_76 : f32 to vector<8x384xf32>
    %350 = arith.addf %349, %348 : vector<8x384xf32>
    %351 = arith.divf %349, %350 : vector<8x384xf32>
    %352 = vector.extract_strided_slice %345 {offsets = [0, 384], sizes = [8, 128], strides = [1, 1]} : vector<8x512xf32> to vector<8x128xf32>
    %353 = math.tanh %352 : vector<8x128xf32>
    %354 = vector.extract_strided_slice %351 {offsets = [0, 128], sizes = [8, 128], strides = [1, 1]} : vector<8x384xf32> to vector<8x128xf32>
    %355 = arith.mulf %354, %337 : vector<8x128xf32>
    %356 = vector.extract_strided_slice %351 {offsets = [0, 0], sizes = [8, 128], strides = [1, 1]} : vector<8x384xf32> to vector<8x128xf32>
    %357 = arith.mulf %356, %353 : vector<8x128xf32>
    %358 = arith.addf %355, %357 : vector<8x128xf32>
    %359 = vector.extract_strided_slice %351 {offsets = [0, 256], sizes = [8, 128], strides = [1, 1]} : vector<8x384xf32> to vector<8x128xf32>
    %360 = math.tanh %358 : vector<8x128xf32>
    %361 = arith.mulf %359, %360 : vector<8x128xf32>
    %c56_77 = arith.constant 56 : index
    %c0_78 = arith.constant 0 : index
    %362 = vector.load %arg12[%c56_77, %c0_78] : memref<64x128xf32, #tpu.memory_space<vmem>>, vector<8x128xf32>
    tpu.vector_store %arg12[%c56_77, %c0_78], %361 {strides = array<i32>} : memref<64x128xf32, #tpu.memory_space<vmem>>, vector<8x128xf32>,
    %c0_79 = arith.constant 0 : index
    %c0_80 = arith.constant 0 : index
    %363 = vector.load %arg12[%c0_79, %c0_80] : memref<64x128xf32, #tpu.memory_space<vmem>>, vector<64x128xf32>
    %364 = arith.truncf %363 : vector<64x128xf32> to vector<64x128xbf16>
    %c0_81 = arith.constant 0 : index
    %c0_82 = arith.constant 0 : index
    %365 = vector.load %arg5[%c0_81, %c0_82] : memref<128x32xbf16, #tpu.memory_space<vmem>>, vector<128x32xbf16>
    %cst_83 = arith.constant dense<0.000000e+00> : vector<64x32xf32>
    %366 = tpu.matmul %364, %365, %cst_83 {dimension_numbers = #tpu.dot_dimension_numbers<[1], [0], [0], [1], [0, 0, 1, 1], [], []>} : vector<64x128xbf16>, vector<128x32xbf16>, vector<64x32xf32> -> vector<64x32xf32>
    %c0_84 = arith.constant 0 : index
    %c0_85 = arith.constant 0 : index
    %367 = vector.load %arg6[%c0_84, %c0_85] : memref<1x32xf32, #tpu.memory_space<vmem>>, vector<1x32xf32>
    %368 = vector.broadcast %367 : vector<1x32xf32> to vector<64x32xf32>
    %369 = arith.addf %366, %368 : vector<64x32xf32>
    %cst_86 = arith.constant 0.000000e+00 : f32
    %370 = vector.broadcast %cst_86 : f32 to vector<64x32xf32>
    %371 = arith.maximumf %369, %370 : vector<64x32xf32>
    %372 = arith.truncf %371 : vector<64x32xf32> to vector<64x32xbf16>
    %c0_87 = arith.constant 0 : index
    %c0_88 = arith.constant 0 : index
    %373 = vector.load %arg7[%c0_87, %c0_88] : memref<32x2xbf16, #tpu.memory_space<vmem>>, vector<32x2xbf16>
    %cst_89 = arith.constant dense<0.000000e+00> : vector<64x2xf32>
    %374 = tpu.matmul %372, %373, %cst_89 {dimension_numbers = #tpu.dot_dimension_numbers<[1], [0], [0], [1], [0, 0, 1, 1], [], []>} : vector<64x32xbf16>, vector<32x2xbf16>, vector<64x2xf32> -> vector<64x2xf32>
    %c0_90 = arith.constant 0 : index
    %c0_91 = arith.constant 0 : index
    %375 = vector.load %arg8[%c0_90, %c0_91] : memref<1x2xf32, #tpu.memory_space<vmem>>, vector<1x2xf32>
    %376 = vector.broadcast %375 : vector<1x2xf32> to vector<64x2xf32>
    %377 = arith.addf %374, %376 : vector<64x2xf32>
    %c0_92 = arith.constant 0 : index
    %c0_93 = arith.constant 0 : index
    %378 = vector.load %arg11[%c0_92, %c0_93] : memref<64x2xf32, #tpu.memory_space<vmem>>, vector<64x2xf32>
    tpu.vector_store %arg11[%c0_92, %c0_93], %377 {strides = array<i32>} : memref<64x2xf32, #tpu.memory_space<vmem>>, vector<64x2xf32>,
    return
  }
}

</mosaic_0001>

<llo_original>
// kernel: rnn_decoder_forward.1
$region0: #{rnn_decoder_forward.1}
  #allocation0 [shape = 'u32[]', space=smem, size = 0x4, offset = 0x4, fixed_abs, tag = 'smem constant byte address 0x4 - core index']
  #allocation1 [shape = 'u32[144,128]{1,0:T(1,128)}', space=vmem, size = 0x12000, scoped, tag = 'internal scratch']
  #allocation2 [shape = 'f32[64,128]{1,0:T(8,128)}', space=vmem, size = 0x8000, scoped, tag = 'scratch operand']
  #allocation3 [shape = 'bf16[128,512]{1,0:T(8,128)(2,1)}', space=vmem, size = 0x20000, scoped, tag = 'scratch operand']
  #allocation4 [shape = 'bf16[128,512]{1,0:T(8,128)(2,1)}', space=vmem, size = 0x20000, scoped, tag = 'scratch operand']
  #allocation5 [shape = 's32[2]{0}', space=sflag, size = 0x8, scoped, tag = 'scratch operand']
  #allocation8 [shape = 's32[]', space=sflag, size = 0x4, offset = 0, fixed_abs, tag = 'sflag constant byte address 0x0 - dummy sync flag']
  #allocation9 [shape = 's32[]', space=sflag, size = 0x4, offset = 0, fixed_abs, tag = 'sflag constant byte address 0x0 - dummy sync flag']
  #allocation10 [shape = 'u32[]', space=smem, size = 0x4, offset = 0x44, fixed_abs, tag = 'smem constant byte address 0x44 - assertion arg 0']
  #allocation11 [shape = 'u32[]', space=smem, size = 0x4, offset = 0x48, fixed_abs, tag = 'smem constant byte address 0x48 - assertion arg 1']
  #allocation12 [shape = 's32[]', space=sflag, size = 0x4, offset = 0, fixed_abs, tag = 'sflag constant byte address 0x0 - dummy sync flag']
  #allocation13 [shape = 's32[]', space=sflag, size = 0x4, offset = 0, fixed_abs, tag = 'sflag constant byte address 0x0 - dummy sync flag']
  %s0 = inlined_call_operand.vmem [shape: bf16[64,64], index: 0, kind: input, shape index: {}]
  %s1 = inlined_call_operand.vmem [shape: bf16[64,512], index: 1, kind: input, shape index: {}]
  %s2 = inlined_call_operand.hbm [shape: bf16[128,512], index: 2, kind: input, shape index: {}]
  %s3 = inlined_call_operand.vmem [shape: f32[1,512], index: 3, kind: input, shape index: {}]
  %s4 = inlined_call_operand.vmem [shape: f32[1,512], index: 4, kind: input, shape index: {}]
  %s5 = inlined_call_operand.vmem [shape: bf16[128,32], index: 5, kind: input, shape index: {}]
  %s6 = inlined_call_operand.vmem [shape: f32[1,32], index: 6, kind: input, shape index: {}]
  %s7 = inlined_call_operand.vmem [shape: bf16[32,2], index: 7, kind: input, shape index: {}]
  %s8 = inlined_call_operand.vmem [shape: f32[1,2], index: 8, kind: input, shape index: {}]
  %s9 = inlined_call_operand.hbm [shape: bf16[128,512], index: 9, kind: input, shape index: {}]
  %s10 = inlined_call_operand.hbm [shape: bf16[128,512], index: 10, kind: input, shape index: {}]
  %s11 = inlined_call_operand.vmem [shape: f32[64,2], index: 11, kind: output, shape index: {}]
  %s12 = sld [smem:[#allocation0]]
  $region58: #{rnn_decoder_forward.1} parent=0
    _
  %s14 = ssub.s32 1, %s12
  %s15 = scalar_select 0, %s14, %s12
  $region1: #{rnn_decoder_forward.1} parent=0
    #allocation6 [shape = 'u8[131072]{0}', space=vmem, size = 0x20000, scoped, tag = 'input window, operand 2, single buffered']
    #allocation7 [shape = 's32[1]{0}', space=sflag, size = 0x4, scoped, tag = 'scoped memory for rnn_decoder_forward.1']
    %16 = vsyncpa [#allocation7], 0
    // Predicated region
    $region2: #{rnn_decoder_forward.1} parent=1 // pred_check
      _
    $region3: #{rnn_decoder_forward.1} parent=1 // pred_check_branch
      %18 = sbr.rel (0) target = $region5
    $region4: #{rnn_decoder_forward.1} parent=1 // pred_region
      _
    $region5: #{rnn_decoder_forward.1} parent=1 // pred_fallthru
      _
    // Predicated region
    $region6: #{rnn_decoder_forward.1} parent=1 // pred_check
      _
    $region7: #{rnn_decoder_forward.1} parent=1 // pred_check_branch
      %20 = sbr.rel (0) target = $region9
    $region8: #{rnn_decoder_forward.1} parent=1 // pred_region
      _
    $region9: #{rnn_decoder_forward.1} parent=1 // pred_fallthru
      _
    // Predicated region
    $region10: #{rnn_decoder_forward.1} parent=1 // pred_check
      _
    $region11: #{rnn_decoder_forward.1} parent=1 // pred_check_branch
      %22 = sbr.rel (0) target = $region13
    $region12: #{rnn_decoder_forward.1} parent=1 // pred_region
      %s24 = ssub.s32 4096, 4096
      %25 = vsyncadd [#allocation7], %s24
      %s26 = sshll.u32 [#allocation6], 4
      %s27 = int_to_ptr.vmem [resolvable:$true] %s26
      %32 = dma.hbm_to_vmem [thread:$0]  %s2, 4096, %s27, [#allocation7], 256, 256, 16
    $region13: #{rnn_decoder_forward.1} parent=1 // pred_fallthru
      _
    // Predicated region
    $region14: #{rnn_decoder_forward.1} parent=1 // pred_check
      _
    $region15: #{rnn_decoder_forward.1} parent=1 // pred_check_branch
      %34 = sbr.rel (0) target = $region17
    $region16: #{rnn_decoder_forward.1} parent=1 // pred_region
      _
    $region17: #{rnn_decoder_forward.1} parent=1 // pred_fallthru
      _
    // Predicated region
    $region18: #{rnn_decoder_forward.1} parent=1 // pred_check
      _
    $region19: #{rnn_decoder_forward.1} parent=1 // pred_check_branch
      %36 = sbr.rel (0) target = $region21
    $region20: #{rnn_decoder_forward.1} parent=1 // pred_region
      _
    $region21: #{rnn_decoder_forward.1} parent=1 // pred_fallthru
      _
    // Predicated region
    $region22: #{rnn_decoder_forward.1} parent=1 // pred_check
      _
    $region23: #{rnn_decoder_forward.1} parent=1 // pred_check_branch
      %38 = sbr.rel (0) target = $region25
    $region24: #{rnn_decoder_forward.1} parent=1 // pred_region
      _
    $region25: #{rnn_decoder_forward.1} parent=1 // pred_fallthru
      _
    // Predicated region
    $region26: #{rnn_decoder_forward.1} parent=1 // pred_check
      _
    $region27: #{rnn_decoder_forward.1} parent=1 // pred_check_branch
      %40 = sbr.rel (0) target = $region29
    $region28: #{rnn_decoder_forward.1} parent=1 // pred_region
      _
    $region29: #{rnn_decoder_forward.1} parent=1 // pred_fallthru
      _
    // Predicated region
    $region30: #{rnn_decoder_forward.1} parent=1 // pred_check
      _
    $region31: #{rnn_decoder_forward.1} parent=1 // pred_check_branch
      %42 = sbr.rel (0) target = $region33
    $region32: #{rnn_decoder_forward.1} parent=1 // pred_region
      _
    $region33: #{rnn_decoder_forward.1} parent=1 // pred_fallthru
      _
    // Predicated region
    $region34: #{rnn_decoder_forward.1} parent=1 // pred_check
      _
    $region35: #{rnn_decoder_forward.1} parent=1 // pred_check_branch
      %44 = sbr.rel (0) target = $region37
    $region36: #{rnn_decoder_forward.1} parent=1 // pred_region
      _
    $region37: #{rnn_decoder_forward.1} parent=1 // pred_fallthru
      _
    // Predicated region
    $region38: #{rnn_decoder_forward.1} parent=1 // pred_check
      _
    $region39: #{rnn_decoder_forward.1} parent=1 // pred_check_branch
      %46 = sbr.rel (0) target = $region41
    $region40: #{rnn_decoder_forward.1} parent=1 // pred_region
      %47 = dma.done [#allocation7], 4096
    $region41: #{rnn_decoder_forward.1} parent=1 // pred_fallthru
      _
    // Predicated region
    $region42: #{rnn_decoder_forward.1} parent=1 // pred_check
      _
    $region43: #{rnn_decoder_forward.1} parent=1 // pred_check_branch
      %50 = sbr.rel target = $region45
    $region44: #{rnn_decoder_forward.1} parent=1 // pred_region
      %51 = sst [smem:[#allocation10]] [#allocation9]
      %52 = sst [smem:[#allocation11]] [#allocation8]
    $region45: #{rnn_decoder_forward.1} parent=1 // pred_fallthru
      _
    %54 = shalt.err (0)
    %s56 = sshll.u32 [#allocation3], 4
    %s57 = int_to_ptr.vmem [resolvable:$true] %s56
    %59 = dma.hbm_to_vmem [thread:$0]  %s9, 4096, %s57, [#allocation5]
    %s60 = scalar_lea.sflag [#allocation5], 1
    // Predicated region
    $region46: #{rnn_decoder_forward.1} parent=1 // pred_check
      _
    $region47: #{rnn_decoder_forward.1} parent=1 // pred_check_branch
      %62 = sbr.rel target = $region49
    $region48: #{rnn_decoder_forward.1} parent=1 // pred_region
      %63 = sst [smem:[#allocation10]] [#allocation13]
      %64 = sst [smem:[#allocation11]] [#allocation12]
    $region49: #{rnn_decoder_forward.1} parent=1 // pred_fallthru
      _
    %66 = shalt.err (0)
    %s68 = sshll.u32 [#allocation4], 4
    %s69 = int_to_ptr.vmem [resolvable:$true] %s68
    %71 = dma.hbm_to_vmem [thread:$0]  %s10, 4096, %s69, %s60
    %v72 = vld [vmem:[%s0] sm:$0xf]
    %v73 = vld [vmem:[%s0 + $0x4] sm:$0xf]
    %v74 = vld [vmem:[%s0 + $0x8] sm:$0xf]
    %v75 = vld [vmem:[%s0 + $0xc] sm:$0xf]
    %v76 = vld [vmem:[%s0 + $0x10] sm:$0xf]
    %v77 = vld [vmem:[%s0 + $0x14] sm:$0xf]
    %v78 = vld [vmem:[%s0 + $0x18] sm:$0xf]
    %v79 = vld [vmem:[%s0 + $0x1c] sm:$0xf]
    %v80 = vld [vmem:[%s1] sm:$0xff]
    %v81 = vld [vmem:[%s1 + $0x8] sm:$0xff]
    %v82 = vld [vmem:[%s1 + $0x10] sm:$0xff]
    %v83 = vld [vmem:[%s1 + $0x18] sm:$0xff]
    %v84 = vld [vmem:[%s1 + $0x20] sm:$0xff]
    %v85 = vld [vmem:[%s1 + $0x28] sm:$0xff]
    %v86 = vld [vmem:[%s1 + $0x30] sm:$0xff]
    %v87 = vld [vmem:[%s1 + $0x38] sm:$0xff]
    %v88 = vld [vmem:[%s1 + $0x40] sm:$0xff]
    %v89 = vld [vmem:[%s1 + $0x48] sm:$0xff]
    %v90 = vld [vmem:[%s1 + $0x50] sm:$0xff]
    %v91 = vld [vmem:[%s1 + $0x58] sm:$0xff]
    %v92 = vld [vmem:[%s1 + $0x60] sm:$0xff]
    %v93 = vld [vmem:[%s1 + $0x68] sm:$0xff]
    %v94 = vld [vmem:[%s1 + $0x70] sm:$0xff]
    %v95 = vld [vmem:[%s1 + $0x78] sm:$0xff]
    %v96 = vld [vmem:[#allocation6] sm:$0xff]
    %v97 = vld [vmem:[#allocation6 + $0x8] sm:$0xff]
    %v98 = vld [vmem:[#allocation6 + $0x10] sm:$0xff]
    %v99 = vld [vmem:[#allocation6 + $0x18] sm:$0xff]
    %v100 = vld [vmem:[#allocation6 + $0x20] sm:$0xff]
    %v101 = vld [vmem:[#allocation6 + $0x28] sm:$0xff]
    %v102 = vld [vmem:[#allocation6 + $0x30] sm:$0xff]
    %v103 = vld [vmem:[#allocation6 + $0x38] sm:$0xff]
    %v104 = vld [vmem:[#allocation6 + $0x40] sm:$0xff]
    %v105 = vld [vmem:[#allocation6 + $0x48] sm:$0xff]
    %v106 = vld [vmem:[#allocation6 + $0x50] sm:$0xff]
    %v107 = vld [vmem:[#allocation6 + $0x58] sm:$0xff]
    %v108 = vld [vmem:[#allocation6 + $0x60] sm:$0xff]
    %v109 = vld [vmem:[#allocation6 + $0x68] sm:$0xff]
    %v110 = vld [vmem:[#allocation6 + $0x70] sm:$0xff]
    %v111 = vld [vmem:[#allocation6 + $0x78] sm:$0xff]
    %v112 = vld [vmem:[#allocation6 + $0x80] sm:$0xff]
    %v113 = vld [vmem:[#allocation6 + $0x88] sm:$0xff]
    %v114 = vld [vmem:[#allocation6 + $0x90] sm:$0xff]
    %v115 = vld [vmem:[#allocation6 + $0x98] sm:$0xff]
    %v116 = vld [vmem:[#allocation6 + $0xa0] sm:$0xff]
    %v117 = vld [vmem:[#allocation6 + $0xa8] sm:$0xff]
    %v118 = vld [vmem:[#allocation6 + $0xb0] sm:$0xff]
    %v119 = vld [vmem:[#allocation6 + $0xb8] sm:$0xff]
    %v120 = vld [vmem:[#allocation6 + $0xc0] sm:$0xff]
    %v121 = vld [vmem:[#allocation6 + $0xc8] sm:$0xff]
    %v122 = vld [vmem:[#allocation6 + $0xd0] sm:$0xff]
    %v123 = vld [vmem:[#allocation6 + $0xd8] sm:$0xff]
    %v124 = vld [vmem:[#allocation6 + $0xe0] sm:$0xff]
    %v125 = vld [vmem:[#allocation6 + $0xe8] sm:$0xff]
    %v126 = vld [vmem:[#allocation6 + $0xf0] sm:$0xff]
    %v127 = vld [vmem:[#allocation6 + $0xf8] sm:$0xff]
    %v128 = vld [vmem:[%s3] sm:$0xf]
    %v130 = vlaneseq
    %v131 = vshrl.u32 %v130, 7
    %v132 = vsub.s32 0, %v131
    %v133 = vrot.slane %v128, %v132
    %v134 = vlaneseq
    %v135 = vshrl.u32 %v134, 7
    %v136 = vsub.s32 1, %v135
    %v137 = vrot.slane %v128, %v136
    %v138 = vlaneseq
    %v139 = vshrl.u32 %v138, 7
    %v140 = vsub.s32 2, %v139
    %v141 = vrot.slane %v128, %v140
    %v142 = vlaneseq
    %v143 = vshrl.u32 %v142, 7
    %v144 = vsub.s32 3, %v143
    %v145 = vrot.slane %v128, %v144
    %v158 = vunpack.c.l.b16 %v72
    %v159 = vunpack.c.l.b16 %v73
    %v160 = vunpack.c.l.b16 %v74
    %v161 = vunpack.c.l.b16 %v75
    %v162 = vunpack.c.l.b16 %v76
    %v163 = vunpack.c.l.b16 %v77
    %v164 = vunpack.c.l.b16 %v78
    %v165 = vunpack.c.l.b16 %v79
    %v166 = vpack.c.b16 %v159, %v158
    %v167 = vpack.c.b16 %v161, %v160
    %v168 = vpack.c.b16 %v163, %v162
    %v169 = vpack.c.b16 %v165, %v164
    %v186 = vunpack.c.l.b16 %v80
    %v187 = vunpack.c.h.b16 %v80
    %v188 = vunpack.c.l.b16 %v81
    %v189 = vunpack.c.h.b16 %v81
    %v190 = vunpack.c.l.b16 %v82
    %v191 = vunpack.c.h.b16 %v82
    %v192 = vunpack.c.l.b16 %v83
    %v193 = vunpack.c.h.b16 %v83
    %v194 = vunpack.c.l.b16 %v84
    %v195 = vunpack.c.h.b16 %v84
    %v196 = vunpack.c.l.b16 %v85
    %v197 = vunpack.c.h.b16 %v85
    %v198 = vunpack.c.l.b16 %v86
    %v199 = vunpack.c.h.b16 %v86
    %v200 = vunpack.c.l.b16 %v87
    %v201 = vunpack.c.h.b16 %v87
    %v202 = vunpack.c.l.b16 %v88
    %v203 = vunpack.c.h.b16 %v88
    %v204 = vunpack.c.l.b16 %v89
    %v205 = vunpack.c.h.b16 %v89
    %v206 = vunpack.c.l.b16 %v90
    %v207 = vunpack.c.h.b16 %v90
    %v208 = vunpack.c.l.b16 %v91
    %v209 = vunpack.c.h.b16 %v91
    %v210 = vunpack.c.l.b16 %v92
    %v211 = vunpack.c.h.b16 %v92
    %v212 = vunpack.c.l.b16 %v93
    %v213 = vunpack.c.h.b16 %v93
    %v214 = vunpack.c.l.b16 %v94
    %v215 = vunpack.c.h.b16 %v94
    %v216 = vunpack.c.l.b16 %v95
    %v217 = vunpack.c.h.b16 %v95
    %v218 = vpack.c.b16 %v190, %v186
    %v219 = vpack.c.b16 %v191, %v187
    %v220 = vpack.c.b16 %v192, %v188
    %v221 = vpack.c.b16 %v193, %v189
    %v222 = vpack.c.b16 %v198, %v194
    %v223 = vpack.c.b16 %v199, %v195
    %v224 = vpack.c.b16 %v200, %v196
    %v225 = vpack.c.b16 %v201, %v197
    %v226 = vpack.c.b16 %v206, %v202
    %v227 = vpack.c.b16 %v207, %v203
    %v228 = vpack.c.b16 %v208, %v204
    %v229 = vpack.c.b16 %v209, %v205
    %v230 = vpack.c.b16 %v214, %v210
    %v231 = vpack.c.b16 %v215, %v211
    %v232 = vpack.c.b16 %v216, %v212
    %v233 = vpack.c.b16 %v217, %v213
    %vm250 = vcmask 523264
    %v252 = vsel %vm250, %v166, 0
    %v255 = vsel %vm250, %v167, 0
    %v258 = vsel %vm250, %v168, 0
    %v261 = vsel %vm250, %v169, 0
    %263 = vmatprep.subr.bf16.mxu0 0
    %264 = vmatpush1.bf16.msra.mxu0 0
    %265 = vmatprep.subr.bf16.mxu0 0
    %266 = vmatpush1.bf16.msra.mxu0 0
    %267 = vmatprep.subr.bf16.mxu0 0
    %268 = vmatpush1.bf16.msra.mxu0 0
    %269 = vmatprep.subr.bf16.mxu0 0
    %270 = vmatpush1.bf16.msra.mxu0 0
    %271 = vmatprep.subr.bf16.mxu0 %v231
    %272 = vmatpush1.bf16.msra.mxu0 %v230
    %273 = vmatprep.subr.bf16.mxu0 %v227
    %274 = vmatpush1.bf16.msra.mxu0 %v226
    %275 = vmatprep.subr.bf16.mxu0 %v223
    %276 = vmatpush1.bf16.msra.mxu0 %v222
    %277 = vmatprep.subr.bf16.mxu0 %v219
    %278 = vmatpush1.bf16.msra.mxu0 %v218
    %279 = vmatprep.subr.bf16.mxu0 0
    %280 = vmatpush2.bf16.msra.mxu0 0
    %281 = vmatprep.subr.bf16.mxu0 0
    %282 = vmatpush2.bf16.msra.mxu0 0
    %283 = vmatprep.subr.bf16.mxu0 0
    %284 = vmatpush2.bf16.msra.mxu0 0
    %285 = vmatprep.subr.bf16.mxu0 0
    %286 = vmatpush2.bf16.msra.mxu0 0
    %287 = vmatprep.subr.bf16.mxu0 0
    %288 = vmatpush2.bf16.msra.mxu0 0
    %289 = vmatprep.subr.bf16.mxu0 0
    %290 = vmatpush2.bf16.msra.mxu0 0
    %291 = vmatprep.subr.bf16.mxu0 0
    %292 = vmatpush2.bf16.msra.mxu0 0
    %293 = vmatprep.subr.bf16.mxu0 0
    %294 = vmatpush2.bf16.msra.mxu0 0
    %295 = vmatprep.mubr.bf16.mxu0 0
    %296 = vmatmul.mubr.bf16.gmra.mxu0 %v252
    %v297 = vpop.f32.mrf.mxu0
    %v298 = vadd.f32 %v133, %v297
    %v299 = vpop.f32.mrf.mxu0
    %v300 = vadd.f32 %v137, %v299
    %v301 = vpop.f32.mrf.mxu0
    %v302 = vadd.f32 %v133, %v301
    %v303 = vpop.f32.mrf.mxu0
    %v304 = vadd.f32 %v137, %v303
    %305 = vmatprep.mubr.bf16.mxu0 0
    %306 = vmatmul.mubr.bf16.gmra.mxu0 %v255
    %v307 = vpop.f32.mrf.mxu0
    %v308 = vadd.f32 %v133, %v307
    %v309 = vpop.f32.mrf.mxu0
    %v310 = vadd.f32 %v137, %v309
    %v311 = vpop.f32.mrf.mxu0
    %v312 = vadd.f32 %v133, %v311
    %v313 = vpop.f32.mrf.mxu0
    %v314 = vadd.f32 %v137, %v313
    %315 = vmatprep.mubr.bf16.mxu0 0
    %316 = vmatmul.mubr.bf16.gmra.mxu0 %v258
    %v317 = vpop.f32.mrf.mxu0
    %v318 = vadd.f32 %v133, %v317
    %v319 = vpop.f32.mrf.mxu0
    %v320 = vadd.f32 %v137, %v319
    %v321 = vpop.f32.mrf.mxu0
    %v322 = vadd.f32 %v133, %v321
    %v323 = vpop.f32.mrf.mxu0
    %v324 = vadd.f32 %v137, %v323
    %325 = vmatprep.mubr.bf16.mxu0 0
    %326 = vmatmul.mubr.bf16.gmra.mxu0 %v261
    %v327 = vpop.f32.mrf.mxu0
    %v328 = vadd.f32 %v133, %v327
    %v329 = vpop.f32.mrf.mxu0
    %v330 = vadd.f32 %v137, %v329
    %v331 = vpop.f32.mrf.mxu0
    %v332 = vadd.f32 %v133, %v331
    %v333 = vpop.f32.mrf.mxu0
    %v334 = vadd.f32 %v137, %v333
    %335 = vdwg.mxu0
    %336 = vmatprep.subr.bf16.mxu0 0
    %337 = vmatpush1.bf16.msra.mxu0 0
    %338 = vmatprep.subr.bf16.mxu0 0
    %339 = vmatpush1.bf16.msra.mxu0 0
    %340 = vmatprep.subr.bf16.mxu0 0
    %341 = vmatpush1.bf16.msra.mxu0 0
    %342 = vmatprep.subr.bf16.mxu0 0
    %343 = vmatpush1.bf16.msra.mxu0 0
    %344 = vmatprep.subr.bf16.mxu0 %v233
    %345 = vmatpush1.bf16.msra.mxu0 %v232
    %346 = vmatprep.subr.bf16.mxu0 %v229
    %347 = vmatpush1.bf16.msra.mxu0 %v228
    %348 = vmatprep.subr.bf16.mxu0 %v225
    %349 = vmatpush1.bf16.msra.mxu0 %v224
    %350 = vmatprep.subr.bf16.mxu0 %v221
    %351 = vmatpush1.bf16.msra.mxu0 %v220
    %352 = vmatprep.subr.bf16.mxu0 0
    %353 = vmatpush2.bf16.msra.mxu0 0
    %354 = vmatprep.subr.bf16.mxu0 0
    %355 = vmatpush2.bf16.msra.mxu0 0
    %356 = vmatprep.subr.bf16.mxu0 0
    %357 = vmatpush2.bf16.msra.mxu0 0
    %358 = vmatprep.subr.bf16.mxu0 0
    %359 = vmatpush2.bf16.msra.mxu0 0
    %360 = vmatprep.subr.bf16.mxu0 0
    %361 = vmatpush2.bf16.msra.mxu0 0
    %362 = vmatprep.subr.bf16.mxu0 0
    %363 = vmatpush2.bf16.msra.mxu0 0
    %364 = vmatprep.subr.bf16.mxu0 0
    %365 = vmatpush2.bf16.msra.mxu0 0
    %366 = vmatprep.subr.bf16.mxu0 0
    %367 = vmatpush2.bf16.msra.mxu0 0
    %368 = vmatprep.mubr.bf16.mxu0 0
    %369 = vmatmul.mubr.bf16.gmra.mxu0 %v252
    %v370 = vpop.f32.mrf.mxu0
    %v371 = vadd.f32 %v141, %v370
    %v372 = vpop.f32.mrf.mxu0
    %v373 = vadd.f32 %v145, %v372
    %v374 = vpop.f32.mrf.mxu0
    %v375 = vadd.f32 %v141, %v374
    %v376 = vpop.f32.mrf.mxu0
    %v377 = vadd.f32 %v145, %v376
    %378 = vmatprep.mubr.bf16.mxu0 0
    %379 = vmatmul.mubr.bf16.gmra.mxu0 %v255
    %v380 = vpop.f32.mrf.mxu0
    %v381 = vadd.f32 %v141, %v380
    %v382 = vpop.f32.mrf.mxu0
    %v383 = vadd.f32 %v145, %v382
    %v384 = vpop.f32.mrf.mxu0
    %v385 = vadd.f32 %v141, %v384
    %v386 = vpop.f32.mrf.mxu0
    %v387 = vadd.f32 %v145, %v386
    %388 = vmatprep.mubr.bf16.mxu0 0
    %389 = vmatmul.mubr.bf16.gmra.mxu0 %v258
    %v390 = vpop.f32.mrf.mxu0
    %v391 = vadd.f32 %v141, %v390
    %v392 = vpop.f32.mrf.mxu0
    %v393 = vadd.f32 %v145, %v392
    %v394 = vpop.f32.mrf.mxu0
    %v395 = vadd.f32 %v141, %v394
    %v396 = vpop.f32.mrf.mxu0
    %v397 = vadd.f32 %v145, %v396
    %398 = vmatprep.mubr.bf16.mxu0 0
    %399 = vmatmul.mubr.bf16.gmra.mxu0 %v261
    %v400 = vpop.f32.mrf.mxu0
    %v401 = vadd.f32 %v141, %v400
    %v402 = vpop.f32.mrf.mxu0
    %v403 = vadd.f32 %v145, %v402
    %v404 = vpop.f32.mrf.mxu0
    %v405 = vadd.f32 %v141, %v404
    %v406 = vpop.f32.mrf.mxu0
    %v407 = vadd.f32 %v145, %v406
    %408 = vdwg.mxu0
    %v441 = vunpack.c.l.b16 %v96
    %v442 = vunpack.c.h.b16 %v96
    %v443 = vunpack.c.l.b16 %v97
    %v444 = vunpack.c.h.b16 %v97
    %v445 = vunpack.c.l.b16 %v98
    %v446 = vunpack.c.h.b16 %v98
    %v447 = vunpack.c.l.b16 %v99
    %v448 = vunpack.c.h.b16 %v99
    %v449 = vunpack.c.l.b16 %v100
    %v450 = vunpack.c.h.b16 %v100
    %v451 = vunpack.c.l.b16 %v101
    %v452 = vunpack.c.h.b16 %v101
    %v453 = vunpack.c.l.b16 %v102
    %v454 = vunpack.c.h.b16 %v102
    %v455 = vunpack.c.l.b16 %v103
    %v456 = vunpack.c.h.b16 %v103
    %v457 = vunpack.c.l.b16 %v104
    %v458 = vunpack.c.h.b16 %v104
    %v459 = vunpack.c.l.b16 %v105
    %v460 = vunpack.c.h.b16 %v105
    %v461 = vunpack.c.l.b16 %v106
    %v462 = vunpack.c.h.b16 %v106
    %v463 = vunpack.c.l.b16 %v107
    %v464 = vunpack.c.h.b16 %v107
    %v465 = vunpack.c.l.b16 %v108
    %v466 = vunpack.c.h.b16 %v108
    %v467 = vunpack.c.l.b16 %v109
    %v468 = vunpack.c.h.b16 %v109
    %v469 = vunpack.c.l.b16 %v110
    %v470 = vunpack.c.h.b16 %v110
    %v471 = vunpack.c.l.b16 %v111
    %v472 = vunpack.c.h.b16 %v111
    %v473 = vunpack.c.l.b16 %v112
    %v474 = vunpack.c.h.b16 %v112
    %v475 = vunpack.c.l.b16 %v113
    %v476 = vunpack.c.h.b16 %v113
    %v477 = vunpack.c.l.b16 %v114
    %v478 = vunpack.c.h.b16 %v114
    %v479 = vunpack.c.l.b16 %v115
    %v480 = vunpack.c.h.b16 %v115
    %v481 = vunpack.c.l.b16 %v116
    %v482 = vunpack.c.h.b16 %v116
    %v483 = vunpack.c.l.b16 %v117
    %v484 = vunpack.c.h.b16 %v117
    %v485 = vunpack.c.l.b16 %v118
    %v486 = vunpack.c.h.b16 %v118
    %v487 = vunpack.c.l.b16 %v119
    %v488 = vunpack.c.h.b16 %v119
    %v489 = vunpack.c.l.b16 %v120
    %v490 = vunpack.c.h.b16 %v120
    %v491 = vunpack.c.l.b16 %v121
    %v492 = vunpack.c.h.b16 %v121
    %v493 = vunpack.c.l.b16 %v122
    %v494 = vunpack.c.h.b16 %v122
    %v495 = vunpack.c.l.b16 %v123
    %v496 = vunpack.c.h.b16 %v123
    %v497 = vunpack.c.l.b16 %v124
    %v498 = vunpack.c.h.b16 %v124
    %v499 = vunpack.c.l.b16 %v125
    %v500 = vunpack.c.h.b16 %v125
    %v501 = vunpack.c.l.b16 %v126
    %v502 = vunpack.c.h.b16 %v126
    %v503 = vunpack.c.l.b16 %v127
    %v504 = vunpack.c.h.b16 %v127
    %v505 = vpack.c.b16 %v445, %v441
    %v506 = vpack.c.b16 %v446, %v442
    %v507 = vpack.c.b16 %v447, %v443
    %v508 = vpack.c.b16 %v448, %v444
    %v509 = vpack.c.b16 %v453, %v449
    %v510 = vpack.c.b16 %v454, %v450
    %v511 = vpack.c.b16 %v455, %v451
    %v512 = vpack.c.b16 %v456, %v452
    %v513 = vpack.c.b16 %v461, %v457
    %v514 = vpack.c.b16 %v462, %v458
    %v515 = vpack.c.b16 %v463, %v459
    %v516 = vpack.c.b16 %v464, %v460
    %v517 = vpack.c.b16 %v469, %v465
    %v518 = vpack.c.b16 %v470, %v466
    %v519 = vpack.c.b16 %v471, %v467
    %v520 = vpack.c.b16 %v472, %v468
    %v521 = vpack.c.b16 %v477, %v473
    %v522 = vpack.c.b16 %v478, %v474
    %v523 = vpack.c.b16 %v479, %v475
    %v524 = vpack.c.b16 %v480, %v476
    %v525 = vpack.c.b16 %v485, %v481
    %v526 = vpack.c.b16 %v486, %v482
    %v527 = vpack.c.b16 %v487, %v483
    %v528 = vpack.c.b16 %v488, %v484
    %v529 = vpack.c.b16 %v493, %v489
    %v530 = vpack.c.b16 %v494, %v490
    %v531 = vpack.c.b16 %v495, %v491
    %v532 = vpack.c.b16 %v496, %v492
    %v533 = vpack.c.b16 %v501, %v497
    %v534 = vpack.c.b16 %v502, %v498
    %v535 = vpack.c.b16 %v503, %v499
    %v536 = vpack.c.b16 %v504, %v500
    %569 = vmatprep.subr.bf16.mxu0 %v534
    %570 = vmatpush1.bf16.msra.mxu0 %v533
    %571 = vmatprep.subr.bf16.mxu0 %v530
    %572 = vmatpush1.bf16.msra.mxu0 %v529
    %573 = vmatprep.subr.bf16.mxu0 %v526
    %574 = vmatpush1.bf16.msra.mxu0 %v525
    %575 = vmatprep.subr.bf16.mxu0 %v522
    %576 = vmatpush1.bf16.msra.mxu0 %v521
    %577 = vmatprep.subr.bf16.mxu0 %v518
    %578 = vmatpush1.bf16.msra.mxu0 %v517
    %579 = vmatprep.subr.bf16.mxu0 %v514
    %580 = vmatpush1.bf16.msra.mxu0 %v513
    %581 = vmatprep.subr.bf16.mxu0 %v510
    %582 = vmatpush1.bf16.msra.mxu0 %v509
    %583 = vmatprep.subr.bf16.mxu0 %v506
    %584 = vmatpush1.bf16.msra.mxu0 %v505
    %585 = vmatprep.subr.bf16.mxu0 0
    %586 = vmatpush2.bf16.msra.mxu0 0
    %587 = vmatprep.subr.bf16.mxu0 0
    %588 = vmatpush2.bf16.msra.mxu0 0
    %589 = vmatprep.subr.bf16.mxu0 0
    %590 = vmatpush2.bf16.msra.mxu0 0
    %591 = vmatprep.subr.bf16.mxu0 0
    %592 = vmatpush2.bf16.msra.mxu0 0
    %593 = vmatprep.subr.bf16.mxu0 0
    %594 = vmatpush2.bf16.msra.mxu0 0
    %595 = vmatprep.subr.bf16.mxu0 0
    %596 = vmatpush2.bf16.msra.mxu0 0
    %597 = vmatprep.subr.bf16.mxu0 0
    %598 = vmatpush2.bf16.msra.mxu0 0
    %599 = vmatprep.subr.bf16.mxu0 0
    %600 = vmatpush2.bf16.msra.mxu0 0
    %601 = vmatprep.mubr.bf16.mxu0 0
    %602 = vmatmul.mubr.bf16.gmra.mxu0 0
    %v603 = vpop.f32.mrf.mxu0
    %v604 = vadd.f32 0.0, %v603
    %v605 = vpop.f32.mrf.mxu0
    %v606 = vadd.f32 0.0, %v605
    %v607 = vpop.f32.mrf.mxu0
    %v608 = vpop.f32.mrf.mxu0
    %609 = vdwg.mxu0
    %610 = vmatprep.subr.bf16.mxu0 %v536
    %611 = vmatpush1.bf16.msra.mxu0 %v535
    %612 = vmatprep.subr.bf16.mxu0 %v532
    %613 = vmatpush1.bf16.msra.mxu0 %v531
    %614 = vmatprep.subr.bf16.mxu0 %v528
    %615 = vmatpush1.bf16.msra.mxu0 %v527
    %616 = vmatprep.subr.bf16.mxu0 %v524
    %617 = vmatpush1.bf16.msra.mxu0 %v523
    %618 = vmatprep.subr.bf16.mxu0 %v520
    %619 = vmatpush1.bf16.msra.mxu0 %v519
    %620 = vmatprep.subr.bf16.mxu0 %v516
    %621 = vmatpush1.bf16.msra.mxu0 %v515
    %622 = vmatprep.subr.bf16.mxu0 %v512
    %623 = vmatpush1.bf16.msra.mxu0 %v511
    %624 = vmatprep.subr.bf16.mxu0 %v508
    %625 = vmatpush1.bf16.msra.mxu0 %v507
    %626 = vmatprep.subr.bf16.mxu0 0
    %627 = vmatpush2.bf16.msra.mxu0 0
    %628 = vmatprep.subr.bf16.mxu0 0
    %629 = vmatpush2.bf16.msra.mxu0 0
    %630 = vmatprep.subr.bf16.mxu0 0
    %631 = vmatpush2.bf16.msra.mxu0 0
    %632 = vmatprep.subr.bf16.mxu0 0
    %633 = vmatpush2.bf16.msra.mxu0 0
    %634 = vmatprep.subr.bf16.mxu0 0
    %635 = vmatpush2.bf16.msra.mxu0 0
    %636 = vmatprep.subr.bf16.mxu0 0
    %637 = vmatpush2.bf16.msra.mxu0 0
    %638 = vmatprep.subr.bf16.mxu0 0
    %639 = vmatpush2.bf16.msra.mxu0 0
    %640 = vmatprep.subr.bf16.mxu0 0
    %641 = vmatpush2.bf16.msra.mxu0 0
    %642 = vmatprep.mubr.bf16.mxu0 0
    %643 = vmatmul.mubr.bf16.gmra.mxu0 0
    %v644 = vpop.f32.mrf.mxu0
    %v645 = vadd.f32 0.0, %v644
    %v646 = vpop.f32.mrf.mxu0
    %v647 = vadd.f32 0.0, %v646
    %v648 = vpop.f32.mrf.mxu0
    %v649 = vpop.f32.mrf.mxu0
    %650 = vdwg.mxu0
    %v651 = vadd.f32 %v298, %v604
    %v652 = vadd.f32 %v300, %v606
    %v653 = vadd.f32 %v371, %v645
    %v654 = vadd.f32 %v373, %v647
    %v655 = vxor.u32 %v651, 2147483648
    %v656 = vxor.u32 %v652, 2147483648
    %v657 = vxor.u32 %v653, 2147483648
    %v658 = vmul.f32 %v655, 1.442695
    %v659 = vpow.pop %v658
    %v660 = vmul.f32 %v656, 1.442695
    %v661 = vpow.pop %v660
    %v662 = vmul.f32 %v657, 1.442695
    %v663 = vpow.pop %v662
    %v664 = vadd.f32 %v659, 1.0
    %v665 = vadd.f32 %v661, 1.0
    %v666 = vadd.f32 %v663, 1.0
    %v667 = vrcp.pop %v664
    %v668 = vmul.f32 1.0, %v667
    %v669 = vrcp.pop %v665
    %v670 = vmul.f32 1.0, %v669
    %v671 = vrcp.pop %v666
    %v672 = vmul.f32 1.0, %v671
    %v673 = vtanh.pop %v654
    %v674 = vmul.f32 %v670, 0.0
    %v675 = vmul.f32 %v668, %v673
    %v676 = vadd.f32 %v674, %v675
    %v677 = vtanh.pop %v676
    %v678 = vmul.f32 %v672, %v677
    %679 = vst [vmem:[#allocation2] sm:$0xff] %v678
    %v680 = vpack.c.bf16 %v678, %v678
    %681 = vmatprep.subr.bf16.mxu0 %v534
    %682 = vmatpush1.bf16.msra.mxu0 %v533
    %683 = vmatprep.subr.bf16.mxu0 %v530
    %684 = vmatpush1.bf16.msra.mxu0 %v529
    %685 = vmatprep.subr.bf16.mxu0 %v526
    %686 = vmatpush1.bf16.msra.mxu0 %v525
    %687 = vmatprep.subr.bf16.mxu0 %v522
    %688 = vmatpush1.bf16.msra.mxu0 %v521
    %689 = vmatprep.subr.bf16.mxu0 %v518
    %690 = vmatpush1.bf16.msra.mxu0 %v517
    %691 = vmatprep.subr.bf16.mxu0 %v514
    %692 = vmatpush1.bf16.msra.mxu0 %v513
    %693 = vmatprep.subr.bf16.mxu0 %v510
    %694 = vmatpush1.bf16.msra.mxu0 %v509
    %695 = vmatprep.subr.bf16.mxu0 %v506
    %696 = vmatpush1.bf16.msra.mxu0 %v505
    %697 = vmatprep.subr.bf16.mxu0 0
    %698 = vmatpush2.bf16.msra.mxu0 0
    %699 = vmatprep.subr.bf16.mxu0 0
    %700 = vmatpush2.bf16.msra.mxu0 0
    %701 = vmatprep.subr.bf16.mxu0 0
    %702 = vmatpush2.bf16.msra.mxu0 0
    %703 = vmatprep.subr.bf16.mxu0 0
    %704 = vmatpush2.bf16.msra.mxu0 0
    %705 = vmatprep.subr.bf16.mxu0 0
    %706 = vmatpush2.bf16.msra.mxu0 0
    %707 = vmatprep.subr.bf16.mxu0 0
    %708 = vmatpush2.bf16.msra.mxu0 0
    %709 = vmatprep.subr.bf16.mxu0 0
    %710 = vmatpush2.bf16.msra.mxu0 0
    %711 = vmatprep.subr.bf16.mxu0 0
    %712 = vmatpush2.bf16.msra.mxu0 0
    %713 = vmatprep.mubr.bf16.mxu0 0
    %714 = vmatmul.mubr.bf16.gmra.mxu0 %v680
    %v715 = vpop.f32.mrf.mxu0
    %v716 = vadd.f32 0.0, %v715
    %v717 = vpop.f32.mrf.mxu0
    %v718 = vadd.f32 0.0, %v717
    %v719 = vpop.f32.mrf.mxu0
    %v720 = vpop.f32.mrf.mxu0
    %721 = vdwg.mxu0
    %722 = vmatprep.subr.bf16.mxu0 %v536
    %723 = vmatpush1.bf16.msra.mxu0 %v535
    %724 = vmatprep.subr.bf16.mxu0 %v532
    %725 = vmatpush1.bf16.msra.mxu0 %v531
    %726 = vmatprep.subr.bf16.mxu0 %v528
    %727 = vmatpush1.bf16.msra.mxu0 %v527
    %728 = vmatprep.subr.bf16.mxu0 %v524
    %729 = vmatpush1.bf16.msra.mxu0 %v523
    %730 = vmatprep.subr.bf16.mxu0 %v520
    %731 = vmatpush1.bf16.msra.mxu0 %v519
    %732 = vmatprep.subr.bf16.mxu0 %v516
    %733 = vmatpush1.bf16.msra.mxu0 %v515
    %734 = vmatprep.subr.bf16.mxu0 %v512
    %735 = vmatpush1.bf16.msra.mxu0 %v511
    %736 = vmatprep.subr.bf16.mxu0 %v508
    %737 = vmatpush1.bf16.msra.mxu0 %v507
    %738 = vmatprep.subr.bf16.mxu0 0
    %739 = vmatpush2.bf16.msra.mxu0 0
    %740 = vmatprep.subr.bf16.mxu0 0
    %741 = vmatpush2.bf16.msra.mxu0 0
    %742 = vmatprep.subr.bf16.mxu0 0
    %743 = vmatpush2.bf16.msra.mxu0 0
    %744 = vmatprep.subr.bf16.mxu0 0
    %745 = vmatpush2.bf16.msra.mxu0 0
    %746 = vmatprep.subr.bf16.mxu0 0
    %747 = vmatpush2.bf16.msra.mxu0 0
    %748 = vmatprep.subr.bf16.mxu0 0
    %749 = vmatpush2.bf16.msra.mxu0 0
    %750 = vmatprep.subr.bf16.mxu0 0
    %751 = vmatpush2.bf16.msra.mxu0 0
    %752 = vmatprep.subr.bf16.mxu0 0
    %753 = vmatpush2.bf16.msra.mxu0 0
    %754 = vmatprep.mubr.bf16.mxu0 0
    %755 = vmatmul.mubr.bf16.gmra.mxu0 %v680
    %v756 = vpop.f32.mrf.mxu0
    %v757 = vadd.f32 0.0, %v756
    %v758 = vpop.f32.mrf.mxu0
    %v759 = vadd.f32 0.0, %v758
    %v760 = vpop.f32.mrf.mxu0
    %v761 = vpop.f32.mrf.mxu0
    %762 = vdwg.mxu0
    %v763 = vadd.f32 %v302, %v716
    %v764 = vadd.f32 %v304, %v718
    %v765 = vadd.f32 %v375, %v757
    %v766 = vadd.f32 %v377, %v759
    %v767 = vxor.u32 %v763, 2147483648
    %v768 = vxor.u32 %v764, 2147483648
    %v769 = vxor.u32 %v765, 2147483648
    %v770 = vmul.f32 %v767, 1.442695
    %v771 = vpow.pop %v770
    %v772 = vmul.f32 %v768, 1.442695
    %v773 = vpow.pop %v772
    %v774 = vmul.f32 %v769, 1.442695
    %v775 = vpow.pop %v774
    %v776 = vadd.f32 %v771, 1.0
    %v777 = vadd.f32 %v773, 1.0
    %v778 = vadd.f32 %v775, 1.0
    %v779 = vrcp.pop %v776
    %v780 = vmul.f32 1.0, %v779
    %v781 = vrcp.pop %v777
    %v782 = vmul.f32 1.0, %v781
    %v783 = vrcp.pop %v778
    %v784 = vmul.f32 1.0, %v783
    %v785 = vtanh.pop %v766
    %v786 = vmul.f32 %v782, %v676
    %v787 = vmul.f32 %v780, %v785
    %v788 = vadd.f32 %v786, %v787
    %v789 = vtanh.pop %v788
    %v790 = vmul.f32 %v784, %v789
    %791 = vst [vmem:[#allocation2 + $0x8] sm:$0xff] %v790
    %v792 = vpack.c.bf16 %v790, %v790
    %793 = vmatprep.subr.bf16.mxu0 %v534
    %794 = vmatpush1.bf16.msra.mxu0 %v533
    %795 = vmatprep.subr.bf16.mxu0 %v530
    %796 = vmatpush1.bf16.msra.mxu0 %v529
    %797 = vmatprep.subr.bf16.mxu0 %v526
    %798 = vmatpush1.bf16.msra.mxu0 %v525
    %799 = vmatprep.subr.bf16.mxu0 %v522
    %800 = vmatpush1.bf16.msra.mxu0 %v521
    %801 = vmatprep.subr.bf16.mxu0 %v518
    %802 = vmatpush1.bf16.msra.mxu0 %v517
    %803 = vmatprep.subr.bf16.mxu0 %v514
    %804 = vmatpush1.bf16.msra.mxu0 %v513
    %805 = vmatprep.subr.bf16.mxu0 %v510
    %806 = vmatpush1.bf16.msra.mxu0 %v509
    %807 = vmatprep.subr.bf16.mxu0 %v506
    %808 = vmatpush1.bf16.msra.mxu0 %v505
    %809 = vmatprep.subr.bf16.mxu0 0
    %810 = vmatpush2.bf16.msra.mxu0 0
    %811 = vmatprep.subr.bf16.mxu0 0
    %812 = vmatpush2.bf16.msra.mxu0 0
    %813 = vmatprep.subr.bf16.mxu0 0
    %814 = vmatpush2.bf16.msra.mxu0 0
    %815 = vmatprep.subr.bf16.mxu0 0
    %816 = vmatpush2.bf16.msra.mxu0 0
    %817 = vmatprep.subr.bf16.mxu0 0
    %818 = vmatpush2.bf16.msra.mxu0 0
    %819 = vmatprep.subr.bf16.mxu0 0
    %820 = vmatpush2.bf16.msra.mxu0 0
    %821 = vmatprep.subr.bf16.mxu0 0
    %822 = vmatpush2.bf16.msra.mxu0 0
    %823 = vmatprep.subr.bf16.mxu0 0
    %824 = vmatpush2.bf16.msra.mxu0 0
    %825 = vmatprep.mubr.bf16.mxu0 0
    %826 = vmatmul.mubr.bf16.gmra.mxu0 %v792
    %v827 = vpop.f32.mrf.mxu0
    %v828 = vadd.f32 0.0, %v827
    %v829 = vpop.f32.mrf.mxu0
    %v830 = vadd.f32 0.0, %v829
    %v831 = vpop.f32.mrf.mxu0
    %v832 = vpop.f32.mrf.mxu0
    %833 = vdwg.mxu0
    %834 = vmatprep.subr.bf16.mxu0 %v536
    %835 = vmatpush1.bf16.msra.mxu0 %v535
    %836 = vmatprep.subr.bf16.mxu0 %v532
    %837 = vmatpush1.bf16.msra.mxu0 %v531
    %838 = vmatprep.subr.bf16.mxu0 %v528
    %839 = vmatpush1.bf16.msra.mxu0 %v527
    %840 = vmatprep.subr.bf16.mxu0 %v524
    %841 = vmatpush1.bf16.msra.mxu0 %v523
    %842 = vmatprep.subr.bf16.mxu0 %v520
    %843 = vmatpush1.bf16.msra.mxu0 %v519
    %844 = vmatprep.subr.bf16.mxu0 %v516
    %845 = vmatpush1.bf16.msra.mxu0 %v515
    %846 = vmatprep.subr.bf16.mxu0 %v512
    %847 = vmatpush1.bf16.msra.mxu0 %v511
    %848 = vmatprep.subr.bf16.mxu0 %v508
    %849 = vmatpush1.bf16.msra.mxu0 %v507
    %850 = vmatprep.subr.bf16.mxu0 0
    %851 = vmatpush2.bf16.msra.mxu0 0
    %852 = vmatprep.subr.bf16.mxu0 0
    %853 = vmatpush2.bf16.msra.mxu0 0
    %854 = vmatprep.subr.bf16.mxu0 0
    %855 = vmatpush2.bf16.msra.mxu0 0
    %856 = vmatprep.subr.bf16.mxu0 0
    %857 = vmatpush2.bf16.msra.mxu0 0
    %858 = vmatprep.subr.bf16.mxu0 0
    %859 = vmatpush2.bf16.msra.mxu0 0
    %860 = vmatprep.subr.bf16.mxu0 0
    %861 = vmatpush2.bf16.msra.mxu0 0
    %862 = vmatprep.subr.bf16.mxu0 0
    %863 = vmatpush2.bf16.msra.mxu0 0
    %864 = vmatprep.subr.bf16.mxu0 0
    %865 = vmatpush2.bf16.msra.mxu0 0
    %866 = vmatprep.mubr.bf16.mxu0 0
    %867 = vmatmul.mubr.bf16.gmra.mxu0 %v792
    %v868 = vpop.f32.mrf.mxu0
    %v869 = vadd.f32 0.0, %v868
    %v870 = vpop.f32.mrf.mxu0
    %v871 = vadd.f32 0.0, %v870
    %v872 = vpop.f32.mrf.mxu0
    %v873 = vpop.f32.mrf.mxu0
    %874 = vdwg.mxu0
    %v875 = vadd.f32 %v308, %v828
    %v876 = vadd.f32 %v310, %v830
    %v877 = vadd.f32 %v381, %v869
    %v878 = vadd.f32 %v383, %v871
    %v879 = vxor.u32 %v875, 2147483648
    %v880 = vxor.u32 %v876, 2147483648
    %v881 = vxor.u32 %v877, 2147483648
    %v882 = vmul.f32 %v879, 1.442695
    %v883 = vpow.pop %v882
    %v884 = vmul.f32 %v880, 1.442695
    %v885 = vpow.pop %v884
    %v886 = vmul.f32 %v881, 1.442695
    %v887 = vpow.pop %v886
    %v888 = vadd.f32 %v883, 1.0
    %v889 = vadd.f32 %v885, 1.0
    %v890 = vadd.f32 %v887, 1.0
    %v891 = vrcp.pop %v888
    %v892 = vmul.f32 1.0, %v891
    %v893 = vrcp.pop %v889
    %v894 = vmul.f32 1.0, %v893
    %v895 = vrcp.pop %v890
    %v896 = vmul.f32 1.0, %v895
    %v897 = vtanh.pop %v878
    %v898 = vmul.f32 %v894, %v788
    %v899 = vmul.f32 %v892, %v897
    %v900 = vadd.f32 %v898, %v899
    %v901 = vtanh.pop %v900
    %v902 = vmul.f32 %v896, %v901
    %903 = vst [vmem:[#allocation2 + $0x10] sm:$0xff] %v902
    %v904 = vpack.c.bf16 %v902, %v902
    %905 = vmatprep.subr.bf16.mxu0 %v534
    %906 = vmatpush1.bf16.msra.mxu0 %v533
    %907 = vmatprep.subr.bf16.mxu0 %v530
    %908 = vmatpush1.bf16.msra.mxu0 %v529
    %909 = vmatprep.subr.bf16.mxu0 %v526
    %910 = vmatpush1.bf16.msra.mxu0 %v525
    %911 = vmatprep.subr.bf16.mxu0 %v522
    %912 = vmatpush1.bf16.msra.mxu0 %v521
    %913 = vmatprep.subr.bf16.mxu0 %v518
    %914 = vmatpush1.bf16.msra.mxu0 %v517
    %915 = vmatprep.subr.bf16.mxu0 %v514
    %916 = vmatpush1.bf16.msra.mxu0 %v513
    %917 = vmatprep.subr.bf16.mxu0 %v510
    %918 = vmatpush1.bf16.msra.mxu0 %v509
    %919 = vmatprep.subr.bf16.mxu0 %v506
    %920 = vmatpush1.bf16.msra.mxu0 %v505
    %921 = vmatprep.subr.bf16.mxu0 0
    %922 = vmatpush2.bf16.msra.mxu0 0
    %923 = vmatprep.subr.bf16.mxu0 0
    %924 = vmatpush2.bf16.msra.mxu0 0
    %925 = vmatprep.subr.bf16.mxu0 0
    %926 = vmatpush2.bf16.msra.mxu0 0
    %927 = vmatprep.subr.bf16.mxu0 0
    %928 = vmatpush2.bf16.msra.mxu0 0
    %929 = vmatprep.subr.bf16.mxu0 0
    %930 = vmatpush2.bf16.msra.mxu0 0
    %931 = vmatprep.subr.bf16.mxu0 0
    %932 = vmatpush2.bf16.msra.mxu0 0
    %933 = vmatprep.subr.bf16.mxu0 0
    %934 = vmatpush2.bf16.msra.mxu0 0
    %935 = vmatprep.subr.bf16.mxu0 0
    %936 = vmatpush2.bf16.msra.mxu0 0
    %937 = vmatprep.mubr.bf16.mxu0 0
    %938 = vmatmul.mubr.bf16.gmra.mxu0 %v904
    %v939 = vpop.f32.mrf.mxu0
    %v940 = vadd.f32 0.0, %v939
    %v941 = vpop.f32.mrf.mxu0
    %v942 = vadd.f32 0.0, %v941
    %v943 = vpop.f32.mrf.mxu0
    %v944 = vpop.f32.mrf.mxu0
    %945 = vdwg.mxu0
    %946 = vmatprep.subr.bf16.mxu0 %v536
    %947 = vmatpush1.bf16.msra.mxu0 %v535
    %948 = vmatprep.subr.bf16.mxu0 %v532
    %949 = vmatpush1.bf16.msra.mxu0 %v531
    %950 = vmatprep.subr.bf16.mxu0 %v528
    %951 = vmatpush1.bf16.msra.mxu0 %v527
    %952 = vmatprep.subr.bf16.mxu0 %v524
    %953 = vmatpush1.bf16.msra.mxu0 %v523
    %954 = vmatprep.subr.bf16.mxu0 %v520
    %955 = vmatpush1.bf16.msra.mxu0 %v519
    %956 = vmatprep.subr.bf16.mxu0 %v516
    %957 = vmatpush1.bf16.msra.mxu0 %v515
    %958 = vmatprep.subr.bf16.mxu0 %v512
    %959 = vmatpush1.bf16.msra.mxu0 %v511
    %960 = vmatprep.subr.bf16.mxu0 %v508
    %961 = vmatpush1.bf16.msra.mxu0 %v507
    %962 = vmatprep.subr.bf16.mxu0 0
    %963 = vmatpush2.bf16.msra.mxu0 0
    %964 = vmatprep.subr.bf16.mxu0 0
    %965 = vmatpush2.bf16.msra.mxu0 0
    %966 = vmatprep.subr.bf16.mxu0 0
    %967 = vmatpush2.bf16.msra.mxu0 0
    %968 = vmatprep.subr.bf16.mxu0 0
    %969 = vmatpush2.bf16.msra.mxu0 0
    %970 = vmatprep.subr.bf16.mxu0 0
    %971 = vmatpush2.bf16.msra.mxu0 0
    %972 = vmatprep.subr.bf16.mxu0 0
    %973 = vmatpush2.bf16.msra.mxu0 0
    %974 = vmatprep.subr.bf16.mxu0 0
    %975 = vmatpush2.bf16.msra.mxu0 0
    %976 = vmatprep.subr.bf16.mxu0 0
    %977 = vmatpush2.bf16.msra.mxu0 0
    %978 = vmatprep.mubr.bf16.mxu0 0
    %979 = vmatmul.mubr.bf16.gmra.mxu0 %v904
    %v980 = vpop.f32.mrf.mxu0
    %v981 = vadd.f32 0.0, %v980
    %v982 = vpop.f32.mrf.mxu0
    %v983 = vadd.f32 0.0, %v982
    %v984 = vpop.f32.mrf.mxu0
    %v985 = vpop.f32.mrf.mxu0
    %986 = vdwg.mxu0
    %v987 = vadd.f32 %v312, %v940
    %v988 = vadd.f32 %v314, %v942
    %v989 = vadd.f32 %v385, %v981
    %v990 = vadd.f32 %v387, %v983
    %v991 = vxor.u32 %v987, 2147483648
    %v992 = vxor.u32 %v988, 2147483648
    %v993 = vxor.u32 %v989, 2147483648
    %v994 = vmul.f32 %v991, 1.442695
    %v995 = vpow.pop %v994
    %v996 = vmul.f32 %v992, 1.442695
    %v997 = vpow.pop %v996
    %v998 = vmul.f32 %v993, 1.442695
    %v999 = vpow.pop %v998
    %v1000 = vadd.f32 %v995, 1.0
    %v1001 = vadd.f32 %v997, 1.0
    %v1002 = vadd.f32 %v999, 1.0
    %v1003 = vrcp.pop %v1000
    %v1004 = vmul.f32 1.0, %v1003
    %v1005 = vrcp.pop %v1001
    %v1006 = vmul.f32 1.0, %v1005
    %v1007 = vrcp.pop %v1002
    %v1008 = vmul.f32 1.0, %v1007
    %v1009 = vtanh.pop %v990
    %v1010 = vmul.f32 %v1006, %v900
    %v1011 = vmul.f32 %v1004, %v1009
    %v1012 = vadd.f32 %v1010, %v1011
    %v1013 = vtanh.pop %v1012
    %v1014 = vmul.f32 %v1008, %v1013
    %1015 = vst [vmem:[#allocation2 + $0x18] sm:$0xff] %v1014
    %v1016 = vpack.c.bf16 %v1014, %v1014
    %1017 = vmatprep.subr.bf16.mxu0 %v534
    %1018 = vmatpush1.bf16.msra.mxu0 %v533
    %1019 = vmatprep.subr.bf16.mxu0 %v530
    %1020 = vmatpush1.bf16.msra.mxu0 %v529
    %1021 = vmatprep.subr.bf16.mxu0 %v526
    %1022 = vmatpush1.bf16.msra.mxu0 %v525
    %1023 = vmatprep.subr.bf16.mxu0 %v522
    %1024 = vmatpush1.bf16.msra.mxu0 %v521
    %1025 = vmatprep.subr.bf16.mxu0 %v518
    %1026 = vmatpush1.bf16.msra.mxu0 %v517
    %1027 = vmatprep.subr.bf16.mxu0 %v514
    %1028 = vmatpush1.bf16.msra.mxu0 %v513
    %1029 = vmatprep.subr.bf16.mxu0 %v510
    %1030 = vmatpush1.bf16.msra.mxu0 %v509
    %1031 = vmatprep.subr.bf16.mxu0 %v506
    %1032 = vmatpush1.bf16.msra.mxu0 %v505
    %1033 = vmatprep.subr.bf16.mxu0 0
    %1034 = vmatpush2.bf16.msra.mxu0 0
    %1035 = vmatprep.subr.bf16.mxu0 0
    %1036 = vmatpush2.bf16.msra.mxu0 0
    %1037 = vmatprep.subr.bf16.mxu0 0
    %1038 = vmatpush2.bf16.msra.mxu0 0
    %1039 = vmatprep.subr.bf16.mxu0 0
    %1040 = vmatpush2.bf16.msra.mxu0 0
    %1041 = vmatprep.subr.bf16.mxu0 0
    %1042 = vmatpush2.bf16.msra.mxu0 0
    %1043 = vmatprep.subr.bf16.mxu0 0
    %1044 = vmatpush2.bf16.msra.mxu0 0
    %1045 = vmatprep.subr.bf16.mxu0 0
    %1046 = vmatpush2.bf16.msra.mxu0 0
    %1047 = vmatprep.subr.bf16.mxu0 0
    %1048 = vmatpush2.bf16.msra.mxu0 0
    %1049 = vmatprep.mubr.bf16.mxu0 0
    %1050 = vmatmul.mubr.bf16.gmra.mxu0 %v1016
    %v1051 = vpop.f32.mrf.mxu0
    %v1052 = vadd.f32 0.0, %v1051
    %v1053 = vpop.f32.mrf.mxu0
    %v1054 = vadd.f32 0.0, %v1053
    %v1055 = vpop.f32.mrf.mxu0
    %v1056 = vpop.f32.mrf.mxu0
    %1057 = vdwg.mxu0
    %1058 = vmatprep.subr.bf16.mxu0 %v536
    %1059 = vmatpush1.bf16.msra.mxu0 %v535
    %1060 = vmatprep.subr.bf16.mxu0 %v532
    %1061 = vmatpush1.bf16.msra.mxu0 %v531
    %1062 = vmatprep.subr.bf16.mxu0 %v528
    %1063 = vmatpush1.bf16.msra.mxu0 %v527
    %1064 = vmatprep.subr.bf16.mxu0 %v524
    %1065 = vmatpush1.bf16.msra.mxu0 %v523
    %1066 = vmatprep.subr.bf16.mxu0 %v520
    %1067 = vmatpush1.bf16.msra.mxu0 %v519
    %1068 = vmatprep.subr.bf16.mxu0 %v516
    %1069 = vmatpush1.bf16.msra.mxu0 %v515
    %1070 = vmatprep.subr.bf16.mxu0 %v512
    %1071 = vmatpush1.bf16.msra.mxu0 %v511
    %1072 = vmatprep.subr.bf16.mxu0 %v508
    %1073 = vmatpush1.bf16.msra.mxu0 %v507
    %1074 = vmatprep.subr.bf16.mxu0 0
    %1075 = vmatpush2.bf16.msra.mxu0 0
    %1076 = vmatprep.subr.bf16.mxu0 0
    %1077 = vmatpush2.bf16.msra.mxu0 0
    %1078 = vmatprep.subr.bf16.mxu0 0
    %1079 = vmatpush2.bf16.msra.mxu0 0
    %1080 = vmatprep.subr.bf16.mxu0 0
    %1081 = vmatpush2.bf16.msra.mxu0 0
    %1082 = vmatprep.subr.bf16.mxu0 0
    %1083 = vmatpush2.bf16.msra.mxu0 0
    %1084 = vmatprep.subr.bf16.mxu0 0
    %1085 = vmatpush2.bf16.msra.mxu0 0
    %1086 = vmatprep.subr.bf16.mxu0 0
    %1087 = vmatpush2.bf16.msra.mxu0 0
    %1088 = vmatprep.subr.bf16.mxu0 0
    %1089 = vmatpush2.bf16.msra.mxu0 0
    %1090 = vmatprep.mubr.bf16.mxu0 0
    %1091 = vmatmul.mubr.bf16.gmra.mxu0 %v1016
    %v1092 = vpop.f32.mrf.mxu0
    %v1093 = vadd.f32 0.0, %v1092
    %v1094 = vpop.f32.mrf.mxu0
    %v1095 = vadd.f32 0.0, %v1094
    %v1096 = vpop.f32.mrf.mxu0
    %v1097 = vpop.f32.mrf.mxu0
    %1098 = vdwg.mxu0
    %v1099 = vadd.f32 %v318, %v1052
    %v1100 = vadd.f32 %v320, %v1054
    %v1101 = vadd.f32 %v391, %v1093
    %v1102 = vadd.f32 %v393, %v1095
    %v1103 = vxor.u32 %v1099, 2147483648
    %v1104 = vxor.u32 %v1100, 2147483648
    %v1105 = vxor.u32 %v1101, 2147483648
    %v1106 = vmul.f32 %v1103, 1.442695
    %v1107 = vpow.pop %v1106
    %v1108 = vmul.f32 %v1104, 1.442695
    %v1109 = vpow.pop %v1108
    %v1110 = vmul.f32 %v1105, 1.442695
    %v1111 = vpow.pop %v1110
    %v1112 = vadd.f32 %v1107, 1.0
    %v1113 = vadd.f32 %v1109, 1.0
    %v1114 = vadd.f32 %v1111, 1.0
    %v1115 = vrcp.pop %v1112
    %v1116 = vmul.f32 1.0, %v1115
    %v1117 = vrcp.pop %v1113
    %v1118 = vmul.f32 1.0, %v1117
    %v1119 = vrcp.pop %v1114
    %v1120 = vmul.f32 1.0, %v1119
    %v1121 = vtanh.pop %v1102
    %v1122 = vmul.f32 %v1118, %v1012
    %v1123 = vmul.f32 %v1116, %v1121
    %v1124 = vadd.f32 %v1122, %v1123
    %v1125 = vtanh.pop %v1124
    %v1126 = vmul.f32 %v1120, %v1125
    %1127 = vst [vmem:[#allocation2 + $0x20] sm:$0xff] %v1126
    %v1128 = vpack.c.bf16 %v1126, %v1126
    %1129 = vmatprep.subr.bf16.mxu0 %v534
    %1130 = vmatpush1.bf16.msra.mxu0 %v533
    %1131 = vmatprep.subr.bf16.mxu0 %v530
    %1132 = vmatpush1.bf16.msra.mxu0 %v529
    %1133 = vmatprep.subr.bf16.mxu0 %v526
    %1134 = vmatpush1.bf16.msra.mxu0 %v525
    %1135 = vmatprep.subr.bf16.mxu0 %v522
    %1136 = vmatpush1.bf16.msra.mxu0 %v521
    %1137 = vmatprep.subr.bf16.mxu0 %v518
    %1138 = vmatpush1.bf16.msra.mxu0 %v517
    %1139 = vmatprep.subr.bf16.mxu0 %v514
    %1140 = vmatpush1.bf16.msra.mxu0 %v513
    %1141 = vmatprep.subr.bf16.mxu0 %v510
    %1142 = vmatpush1.bf16.msra.mxu0 %v509
    %1143 = vmatprep.subr.bf16.mxu0 %v506
    %1144 = vmatpush1.bf16.msra.mxu0 %v505
    %1145 = vmatprep.subr.bf16.mxu0 0
    %1146 = vmatpush2.bf16.msra.mxu0 0
    %1147 = vmatprep.subr.bf16.mxu0 0
    %1148 = vmatpush2.bf16.msra.mxu0 0
    %1149 = vmatprep.subr.bf16.mxu0 0
    %1150 = vmatpush2.bf16.msra.mxu0 0
    %1151 = vmatprep.subr.bf16.mxu0 0
    %1152 = vmatpush2.bf16.msra.mxu0 0
    %1153 = vmatprep.subr.bf16.mxu0 0
    %1154 = vmatpush2.bf16.msra.mxu0 0
    %1155 = vmatprep.subr.bf16.mxu0 0
    %1156 = vmatpush2.bf16.msra.mxu0 0
    %1157 = vmatprep.subr.bf16.mxu0 0
    %1158 = vmatpush2.bf16.msra.mxu0 0
    %1159 = vmatprep.subr.bf16.mxu0 0
    %1160 = vmatpush2.bf16.msra.mxu0 0
    %1161 = vmatprep.mubr.bf16.mxu0 0
    %1162 = vmatmul.mubr.bf16.gmra.mxu0 %v1128
    %v1163 = vpop.f32.mrf.mxu0
    %v1164 = vadd.f32 0.0, %v1163
    %v1165 = vpop.f32.mrf.mxu0
    %v1166 = vadd.f32 0.0, %v1165
    %v1167 = vpop.f32.mrf.mxu0
    %v1168 = vpop.f32.mrf.mxu0
    %1169 = vdwg.mxu0
    %1170 = vmatprep.subr.bf16.mxu0 %v536
    %1171 = vmatpush1.bf16.msra.mxu0 %v535
    %1172 = vmatprep.subr.bf16.mxu0 %v532
    %1173 = vmatpush1.bf16.msra.mxu0 %v531
    %1174 = vmatprep.subr.bf16.mxu0 %v528
    %1175 = vmatpush1.bf16.msra.mxu0 %v527
    %1176 = vmatprep.subr.bf16.mxu0 %v524
    %1177 = vmatpush1.bf16.msra.mxu0 %v523
    %1178 = vmatprep.subr.bf16.mxu0 %v520
    %1179 = vmatpush1.bf16.msra.mxu0 %v519
    %1180 = vmatprep.subr.bf16.mxu0 %v516
    %1181 = vmatpush1.bf16.msra.mxu0 %v515
    %1182 = vmatprep.subr.bf16.mxu0 %v512
    %1183 = vmatpush1.bf16.msra.mxu0 %v511
    %1184 = vmatprep.subr.bf16.mxu0 %v508
    %1185 = vmatpush1.bf16.msra.mxu0 %v507
    %1186 = vmatprep.subr.bf16.mxu0 0
    %1187 = vmatpush2.bf16.msra.mxu0 0
    %1188 = vmatprep.subr.bf16.mxu0 0
    %1189 = vmatpush2.bf16.msra.mxu0 0
    %1190 = vmatprep.subr.bf16.mxu0 0
    %1191 = vmatpush2.bf16.msra.mxu0 0
    %1192 = vmatprep.subr.bf16.mxu0 0
    %1193 = vmatpush2.bf16.msra.mxu0 0
    %1194 = vmatprep.subr.bf16.mxu0 0
    %1195 = vmatpush2.bf16.msra.mxu0 0
    %1196 = vmatprep.subr.bf16.mxu0 0
    %1197 = vmatpush2.bf16.msra.mxu0 0
    %1198 = vmatprep.subr.bf16.mxu0 0
    %1199 = vmatpush2.bf16.msra.mxu0 0
    %1200 = vmatprep.subr.bf16.mxu0 0
    %1201 = vmatpush2.bf16.msra.mxu0 0
    %1202 = vmatprep.mubr.bf16.mxu0 0
    %1203 = vmatmul.mubr.bf16.gmra.mxu0 %v1128
    %v1204 = vpop.f32.mrf.mxu0
    %v1205 = vadd.f32 0.0, %v1204
    %v1206 = vpop.f32.mrf.mxu0
    %v1207 = vadd.f32 0.0, %v1206
    %v1208 = vpop.f32.mrf.mxu0
    %v1209 = vpop.f32.mrf.mxu0
    %1210 = vdwg.mxu0
    %v1211 = vadd.f32 %v322, %v1164
    %v1212 = vadd.f32 %v324, %v1166
    %v1213 = vadd.f32 %v395, %v1205
    %v1214 = vadd.f32 %v397, %v1207
    %v1215 = vxor.u32 %v1211, 2147483648
    %v1216 = vxor.u32 %v1212, 2147483648
    %v1217 = vxor.u32 %v1213, 2147483648
    %v1218 = vmul.f32 %v1215, 1.442695
    %v1219 = vpow.pop %v1218
    %v1220 = vmul.f32 %v1216, 1.442695
    %v1221 = vpow.pop %v1220
    %v1222 = vmul.f32 %v1217, 1.442695
    %v1223 = vpow.pop %v1222
    %v1224 = vadd.f32 %v1219, 1.0
    %v1225 = vadd.f32 %v1221, 1.0
    %v1226 = vadd.f32 %v1223, 1.0
    %v1227 = vrcp.pop %v1224
    %v1228 = vmul.f32 1.0, %v1227
    %v1229 = vrcp.pop %v1225
    %v1230 = vmul.f32 1.0, %v1229
    %v1231 = vrcp.pop %v1226
    %v1232 = vmul.f32 1.0, %v1231
    %v1233 = vtanh.pop %v1214
    %v1234 = vmul.f32 %v1230, %v1124
    %v1235 = vmul.f32 %v1228, %v1233
    %v1236 = vadd.f32 %v1234, %v1235
    %v1237 = vtanh.pop %v1236
    %v1238 = vmul.f32 %v1232, %v1237
    %1239 = vst [vmem:[#allocation2 + $0x28] sm:$0xff] %v1238
    %v1240 = vpack.c.bf16 %v1238, %v1238
    %1241 = vmatprep.subr.bf16.mxu0 %v534
    %1242 = vmatpush1.bf16.msra.mxu0 %v533
    %1243 = vmatprep.subr.bf16.mxu0 %v530
    %1244 = vmatpush1.bf16.msra.mxu0 %v529
    %1245 = vmatprep.subr.bf16.mxu0 %v526
    %1246 = vmatpush1.bf16.msra.mxu0 %v525
    %1247 = vmatprep.subr.bf16.mxu0 %v522
    %1248 = vmatpush1.bf16.msra.mxu0 %v521
    %1249 = vmatprep.subr.bf16.mxu0 %v518
    %1250 = vmatpush1.bf16.msra.mxu0 %v517
    %1251 = vmatprep.subr.bf16.mxu0 %v514
    %1252 = vmatpush1.bf16.msra.mxu0 %v513
    %1253 = vmatprep.subr.bf16.mxu0 %v510
    %1254 = vmatpush1.bf16.msra.mxu0 %v509
    %1255 = vmatprep.subr.bf16.mxu0 %v506
    %1256 = vmatpush1.bf16.msra.mxu0 %v505
    %1257 = vmatprep.subr.bf16.mxu0 0
    %1258 = vmatpush2.bf16.msra.mxu0 0
    %1259 = vmatprep.subr.bf16.mxu0 0
    %1260 = vmatpush2.bf16.msra.mxu0 0
    %1261 = vmatprep.subr.bf16.mxu0 0
    %1262 = vmatpush2.bf16.msra.mxu0 0
    %1263 = vmatprep.subr.bf16.mxu0 0
    %1264 = vmatpush2.bf16.msra.mxu0 0
    %1265 = vmatprep.subr.bf16.mxu0 0
    %1266 = vmatpush2.bf16.msra.mxu0 0
    %1267 = vmatprep.subr.bf16.mxu0 0
    %1268 = vmatpush2.bf16.msra.mxu0 0
    %1269 = vmatprep.subr.bf16.mxu0 0
    %1270 = vmatpush2.bf16.msra.mxu0 0
    %1271 = vmatprep.subr.bf16.mxu0 0
    %1272 = vmatpush2.bf16.msra.mxu0 0
    %1273 = vmatprep.mubr.bf16.mxu0 0
    %1274 = vmatmul.mubr.bf16.gmra.mxu0 %v1240
    %v1275 = vpop.f32.mrf.mxu0
    %v1276 = vadd.f32 0.0, %v1275
    %v1277 = vpop.f32.mrf.mxu0
    %v1278 = vadd.f32 0.0, %v1277
    %v1279 = vpop.f32.mrf.mxu0
    %v1280 = vpop.f32.mrf.mxu0
    %1281 = vdwg.mxu0
    %1282 = vmatprep.subr.bf16.mxu0 %v536
    %1283 = vmatpush1.bf16.msra.mxu0 %v535
    %1284 = vmatprep.subr.bf16.mxu0 %v532
    %1285 = vmatpush1.bf16.msra.mxu0 %v531
    %1286 = vmatprep.subr.bf16.mxu0 %v528
    %1287 = vmatpush1.bf16.msra.mxu0 %v527
    %1288 = vmatprep.subr.bf16.mxu0 %v524
    %1289 = vmatpush1.bf16.msra.mxu0 %v523
    %1290 = vmatprep.subr.bf16.mxu0 %v520
    %1291 = vmatpush1.bf16.msra.mxu0 %v519
    %1292 = vmatprep.subr.bf16.mxu0 %v516
    %1293 = vmatpush1.bf16.msra.mxu0 %v515
    %1294 = vmatprep.subr.bf16.mxu0 %v512
    %1295 = vmatpush1.bf16.msra.mxu0 %v511
    %1296 = vmatprep.subr.bf16.mxu0 %v508
    %1297 = vmatpush1.bf16.msra.mxu0 %v507
    %1298 = vmatprep.subr.bf16.mxu0 0
    %1299 = vmatpush2.bf16.msra.mxu0 0
    %1300 = vmatprep.subr.bf16.mxu0 0
    %1301 = vmatpush2.bf16.msra.mxu0 0
    %1302 = vmatprep.subr.bf16.mxu0 0
    %1303 = vmatpush2.bf16.msra.mxu0 0
    %1304 = vmatprep.subr.bf16.mxu0 0
    %1305 = vmatpush2.bf16.msra.mxu0 0
    %1306 = vmatprep.subr.bf16.mxu0 0
    %1307 = vmatpush2.bf16.msra.mxu0 0
    %1308 = vmatprep.subr.bf16.mxu0 0
    %1309 = vmatpush2.bf16.msra.mxu0 0
    %1310 = vmatprep.subr.bf16.mxu0 0
    %1311 = vmatpush2.bf16.msra.mxu0 0
    %1312 = vmatprep.subr.bf16.mxu0 0
    %1313 = vmatpush2.bf16.msra.mxu0 0
    %1314 = vmatprep.mubr.bf16.mxu0 0
    %1315 = vmatmul.mubr.bf16.gmra.mxu0 %v1240
    %v1316 = vpop.f32.mrf.mxu0
    %v1317 = vadd.f32 0.0, %v1316
    %v1318 = vpop.f32.mrf.mxu0
    %v1319 = vadd.f32 0.0, %v1318
    %v1320 = vpop.f32.mrf.mxu0
    %v1321 = vpop.f32.mrf.mxu0
    %1322 = vdwg.mxu0
    %v1323 = vadd.f32 %v328, %v1276
    %v1324 = vadd.f32 %v330, %v1278
    %v1325 = vadd.f32 %v401, %v1317
    %v1326 = vadd.f32 %v403, %v1319
    %v1327 = vxor.u32 %v1323, 2147483648
    %v1328 = vxor.u32 %v1324, 2147483648
    %v1329 = vxor.u32 %v1325, 2147483648
    %v1330 = vmul.f32 %v1327, 1.442695
    %v1331 = vpow.pop %v1330
    %v1332 = vmul.f32 %v1328, 1.442695
    %v1333 = vpow.pop %v1332
    %v1334 = vmul.f32 %v1329, 1.442695
    %v1335 = vpow.pop %v1334
    %v1336 = vadd.f32 %v1331, 1.0
    %v1337 = vadd.f32 %v1333, 1.0
    %v1338 = vadd.f32 %v1335, 1.0
    %v1339 = vrcp.pop %v1336
    %v1340 = vmul.f32 1.0, %v1339
    %v1341 = vrcp.pop %v1337
    %v1342 = vmul.f32 1.0, %v1341
    %v1343 = vrcp.pop %v1338
    %v1344 = vmul.f32 1.0, %v1343
    %v1345 = vtanh.pop %v1326
    %v1346 = vmul.f32 %v1342, %v1236
    %v1347 = vmul.f32 %v1340, %v1345
    %v1348 = vadd.f32 %v1346, %v1347
    %v1349 = vtanh.pop %v1348
    %v1350 = vmul.f32 %v1344, %v1349
    %1351 = vst [vmem:[#allocation2 + $0x30] sm:$0xff] %v1350
    %v1352 = vpack.c.bf16 %v1350, %v1350
    %1353 = vmatprep.subr.bf16.mxu0 %v534
    %1354 = vmatpush1.bf16.msra.mxu0 %v533
    %1355 = vmatprep.subr.bf16.mxu0 %v530
    %1356 = vmatpush1.bf16.msra.mxu0 %v529
    %1357 = vmatprep.subr.bf16.mxu0 %v526
    %1358 = vmatpush1.bf16.msra.mxu0 %v525
    %1359 = vmatprep.subr.bf16.mxu0 %v522
    %1360 = vmatpush1.bf16.msra.mxu0 %v521
    %1361 = vmatprep.subr.bf16.mxu0 %v518
    %1362 = vmatpush1.bf16.msra.mxu0 %v517
    %1363 = vmatprep.subr.bf16.mxu0 %v514
    %1364 = vmatpush1.bf16.msra.mxu0 %v513
    %1365 = vmatprep.subr.bf16.mxu0 %v510
    %1366 = vmatpush1.bf16.msra.mxu0 %v509
    %1367 = vmatprep.subr.bf16.mxu0 %v506
    %1368 = vmatpush1.bf16.msra.mxu0 %v505
    %1369 = vmatprep.subr.bf16.mxu0 0
    %1370 = vmatpush2.bf16.msra.mxu0 0
    %1371 = vmatprep.subr.bf16.mxu0 0
    %1372 = vmatpush2.bf16.msra.mxu0 0
    %1373 = vmatprep.subr.bf16.mxu0 0
    %1374 = vmatpush2.bf16.msra.mxu0 0
    %1375 = vmatprep.subr.bf16.mxu0 0
    %1376 = vmatpush2.bf16.msra.mxu0 0
    %1377 = vmatprep.subr.bf16.mxu0 0
    %1378 = vmatpush2.bf16.msra.mxu0 0
    %1379 = vmatprep.subr.bf16.mxu0 0
    %1380 = vmatpush2.bf16.msra.mxu0 0
    %1381 = vmatprep.subr.bf16.mxu0 0
    %1382 = vmatpush2.bf16.msra.mxu0 0
    %1383 = vmatprep.subr.bf16.mxu0 0
    %1384 = vmatpush2.bf16.msra.mxu0 0
    %1385 = vmatprep.mubr.bf16.mxu0 0
    %1386 = vmatmul.mubr.bf16.gmra.mxu0 %v1352
    %v1387 = vpop.f32.mrf.mxu0
    %v1388 = vadd.f32 0.0, %v1387
    %v1389 = vpop.f32.mrf.mxu0
    %v1390 = vadd.f32 0.0, %v1389
    %v1391 = vpop.f32.mrf.mxu0
    %v1392 = vpop.f32.mrf.mxu0
    %1393 = vdwg.mxu0
    %1394 = vmatprep.subr.bf16.mxu0 %v536
    %1395 = vmatpush1.bf16.msra.mxu0 %v535
    %1396 = vmatprep.subr.bf16.mxu0 %v532
    %1397 = vmatpush1.bf16.msra.mxu0 %v531
    %1398 = vmatprep.subr.bf16.mxu0 %v528
    %1399 = vmatpush1.bf16.msra.mxu0 %v527
    %1400 = vmatprep.subr.bf16.mxu0 %v524
    %1401 = vmatpush1.bf16.msra.mxu0 %v523
    %1402 = vmatprep.subr.bf16.mxu0 %v520
    %1403 = vmatpush1.bf16.msra.mxu0 %v519
    %1404 = vmatprep.subr.bf16.mxu0 %v516
    %1405 = vmatpush1.bf16.msra.mxu0 %v515
    %1406 = vmatprep.subr.bf16.mxu0 %v512
    %1407 = vmatpush1.bf16.msra.mxu0 %v511
    %1408 = vmatprep.subr.bf16.mxu0 %v508
    %1409 = vmatpush1.bf16.msra.mxu0 %v507
    %1410 = vmatprep.subr.bf16.mxu0 0
    %1411 = vmatpush2.bf16.msra.mxu0 0
    %1412 = vmatprep.subr.bf16.mxu0 0
    %1413 = vmatpush2.bf16.msra.mxu0 0
    %1414 = vmatprep.subr.bf16.mxu0 0
    %1415 = vmatpush2.bf16.msra.mxu0 0
    %1416 = vmatprep.subr.bf16.mxu0 0
    %1417 = vmatpush2.bf16.msra.mxu0 0
    %1418 = vmatprep.subr.bf16.mxu0 0
    %1419 = vmatpush2.bf16.msra.mxu0 0
    %1420 = vmatprep.subr.bf16.mxu0 0
    %1421 = vmatpush2.bf16.msra.mxu0 0
    %1422 = vmatprep.subr.bf16.mxu0 0
    %1423 = vmatpush2.bf16.msra.mxu0 0
    %1424 = vmatprep.subr.bf16.mxu0 0
    %1425 = vmatpush2.bf16.msra.mxu0 0
    %1426 = vmatprep.mubr.bf16.mxu0 0
    %1427 = vmatmul.mubr.bf16.gmra.mxu0 %v1352
    %v1428 = vpop.f32.mrf.mxu0
    %v1429 = vadd.f32 0.0, %v1428
    %v1430 = vpop.f32.mrf.mxu0
    %v1431 = vadd.f32 0.0, %v1430
    %v1432 = vpop.f32.mrf.mxu0
    %v1433 = vpop.f32.mrf.mxu0
    %1434 = vdwg.mxu0
    %v1435 = vadd.f32 %v332, %v1388
    %v1436 = vadd.f32 %v334, %v1390
    %v1437 = vadd.f32 %v405, %v1429
    %v1438 = vadd.f32 %v407, %v1431
    %v1439 = vxor.u32 %v1435, 2147483648
    %v1440 = vxor.u32 %v1436, 2147483648
    %v1441 = vxor.u32 %v1437, 2147483648
    %v1442 = vmul.f32 %v1439, 1.442695
    %v1443 = vpow.pop %v1442
    %v1444 = vmul.f32 %v1440, 1.442695
    %v1445 = vpow.pop %v1444
    %v1446 = vmul.f32 %v1441, 1.442695
    %v1447 = vpow.pop %v1446
    %v1448 = vadd.f32 %v1443, 1.0
    %v1449 = vadd.f32 %v1445, 1.0
    %v1450 = vadd.f32 %v1447, 1.0
    %v1451 = vrcp.pop %v1448
    %v1452 = vmul.f32 1.0, %v1451
    %v1453 = vrcp.pop %v1449
    %v1454 = vmul.f32 1.0, %v1453
    %v1455 = vrcp.pop %v1450
    %v1456 = vmul.f32 1.0, %v1455
    %v1457 = vtanh.pop %v1438
    %v1458 = vmul.f32 %v1454, %v1348
    %v1459 = vmul.f32 %v1452, %v1457
    %v1460 = vadd.f32 %v1458, %v1459
    %v1461 = vtanh.pop %v1460
    %v1462 = vmul.f32 %v1456, %v1461
    %1463 = vst [vmem:[#allocation2 + $0x38] sm:$0xff] %v1462
    %v1464 = vld [vmem:[#allocation2] sm:$0xff]
    %v1465 = vld [vmem:[#allocation2 + $0x8] sm:$0xff]
    %v1466 = vld [vmem:[#allocation2 + $0x10] sm:$0xff]
    %v1467 = vld [vmem:[#allocation2 + $0x18] sm:$0xff]
    %v1468 = vld [vmem:[#allocation2 + $0x20] sm:$0xff]
    %v1469 = vld [vmem:[#allocation2 + $0x28] sm:$0xff]
    %v1470 = vld [vmem:[#allocation2 + $0x30] sm:$0xff]
    %v1471 = vld [vmem:[#allocation2 + $0x38] sm:$0xff]
    %s1472 = smul.u32 4, 16
    %s1473 = smul.u32 %s1472, 4
    %s1474 = sshll.u32 %s1473, 4
    %1475 = dma.done [#allocation5], %s1474
    %s1476 = sshll.u32 %s1473, 4
    %1477 = dma.done %s60, %s1476
    %v1478 = vpack.c.bf16 %v1465, %v1464
    %v1479 = vpack.c.bf16 %v1467, %v1466
    %v1480 = vpack.c.bf16 %v1469, %v1468
    %v1481 = vpack.c.bf16 %v1471, %v1470
    %v1482 = vld [vmem:[#allocation3] sm:$0xff]
    %v1483 = vld [vmem:[#allocation3 + $0x8] sm:$0xff]
    %v1484 = vld [vmem:[#allocation3 + $0x10] sm:$0xff]
    %v1485 = vld [vmem:[#allocation3 + $0x18] sm:$0xff]
    %v1486 = vld [vmem:[#allocation3 + $0x20] sm:$0xff]
    %v1487 = vld [vmem:[#allocation3 + $0x28] sm:$0xff]
    %v1488 = vld [vmem:[#allocation3 + $0x30] sm:$0xff]
    %v1489 = vld [vmem:[#allocation3 + $0x38] sm:$0xff]
    %v1490 = vld [vmem:[#allocation3 + $0x40] sm:$0xff]
    %v1491 = vld [vmem:[#allocation3 + $0x48] sm:$0xff]
    %v1492 = vld [vmem:[#allocation3 + $0x50] sm:$0xff]
    %v1493 = vld [vmem:[#allocation3 + $0x58] sm:$0xff]
    %v1494 = vld [vmem:[#allocation3 + $0x60] sm:$0xff]
    %v1495 = vld [vmem:[#allocation3 + $0x68] sm:$0xff]
    %v1496 = vld [vmem:[#allocation3 + $0x70] sm:$0xff]
    %v1497 = vld [vmem:[#allocation3 + $0x78] sm:$0xff]
    %v1498 = vld [vmem:[#allocation3 + $0x80] sm:$0xff]
    %v1499 = vld [vmem:[#allocation3 + $0x88] sm:$0xff]
    %v1500 = vld [vmem:[#allocation3 + $0x90] sm:$0xff]
    %v1501 = vld [vmem:[#allocation3 + $0x98] sm:$0xff]
    %v1502 = vld [vmem:[#allocation3 + $0xa0] sm:$0xff]
    %v1503 = vld [vmem:[#allocation3 + $0xa8] sm:$0xff]
    %v1504 = vld [vmem:[#allocation3 + $0xb0] sm:$0xff]
    %v1505 = vld [vmem:[#allocation3 + $0xb8] sm:$0xff]
    %v1506 = vld [vmem:[#allocation3 + $0xc0] sm:$0xff]
    %v1507 = vld [vmem:[#allocation3 + $0xc8] sm:$0xff]
    %v1508 = vld [vmem:[#allocation3 + $0xd0] sm:$0xff]
    %v1509 = vld [vmem:[#allocation3 + $0xd8] sm:$0xff]
    %v1510 = vld [vmem:[#allocation3 + $0xe0] sm:$0xff]
    %v1511 = vld [vmem:[#allocation3 + $0xe8] sm:$0xff]
    %v1512 = vld [vmem:[#allocation3 + $0xf0] sm:$0xff]
    %v1513 = vld [vmem:[#allocation3 + $0xf8] sm:$0xff]
    %v1514 = vld [vmem:[#allocation4] sm:$0xff]
    %v1515 = vld [vmem:[#allocation4 + $0x8] sm:$0xff]
    %v1516 = vld [vmem:[#allocation4 + $0x10] sm:$0xff]
    %v1517 = vld [vmem:[#allocation4 + $0x18] sm:$0xff]
    %v1518 = vld [vmem:[#allocation4 + $0x20] sm:$0xff]
    %v1519 = vld [vmem:[#allocation4 + $0x28] sm:$0xff]
    %v1520 = vld [vmem:[#allocation4 + $0x30] sm:$0xff]
    %v1521 = vld [vmem:[#allocation4 + $0x38] sm:$0xff]
    %v1522 = vld [vmem:[#allocation4 + $0x40] sm:$0xff]
    %v1523 = vld [vmem:[#allocation4 + $0x48] sm:$0xff]
    %v1524 = vld [vmem:[#allocation4 + $0x50] sm:$0xff]
    %v1525 = vld [vmem:[#allocation4 + $0x58] sm:$0xff]
    %v1526 = vld [vmem:[#allocation4 + $0x60] sm:$0xff]
    %v1527 = vld [vmem:[#allocation4 + $0x68] sm:$0xff]
    %v1528 = vld [vmem:[#allocation4 + $0x70] sm:$0xff]
    %v1529 = vld [vmem:[#allocation4 + $0x78] sm:$0xff]
    %v1530 = vld [vmem:[#allocation4 + $0x80] sm:$0xff]
    %v1531 = vld [vmem:[#allocation4 + $0x88] sm:$0xff]
    %v1532 = vld [vmem:[#allocation4 + $0x90] sm:$0xff]
    %v1533 = vld [vmem:[#allocation4 + $0x98] sm:$0xff]
    %v1534 = vld [vmem:[#allocation4 + $0xa0] sm:$0xff]
    %v1535 = vld [vmem:[#allocation4 + $0xa8] sm:$0xff]
    %v1536 = vld [vmem:[#allocation4 + $0xb0] sm:$0xff]
    %v1537 = vld [vmem:[#allocation4 + $0xb8] sm:$0xff]
    %v1538 = vld [vmem:[#allocation4 + $0xc0] sm:$0xff]
    %v1539 = vld [vmem:[#allocation4 + $0xc8] sm:$0xff]
    %v1540 = vld [vmem:[#allocation4 + $0xd0] sm:$0xff]
    %v1541 = vld [vmem:[#allocation4 + $0xd8] sm:$0xff]
    %v1542 = vld [vmem:[#allocation4 + $0xe0] sm:$0xff]
    %v1543 = vld [vmem:[#allocation4 + $0xe8] sm:$0xff]
    %v1544 = vld [vmem:[#allocation4 + $0xf0] sm:$0xff]
    %v1545 = vld [vmem:[#allocation4 + $0xf8] sm:$0xff]
    %v1546 = vld [vmem:[%s4] sm:$0xf]
    %v1548 = vlaneseq
    %v1549 = vshrl.u32 %v1548, 7
    %v1550 = vsub.s32 0, %v1549
    %v1551 = vrot.slane %v1546, %v1550
    %v1552 = vlaneseq
    %v1553 = vshrl.u32 %v1552, 7
    %v1554 = vsub.s32 1, %v1553
    %v1555 = vrot.slane %v1546, %v1554
    %v1556 = vlaneseq
    %v1557 = vshrl.u32 %v1556, 7
    %v1558 = vsub.s32 2, %v1557
    %v1559 = vrot.slane %v1546, %v1558
    %v1560 = vlaneseq
    %v1561 = vshrl.u32 %v1560, 7
    %v1562 = vsub.s32 3, %v1561
    %v1563 = vrot.slane %v1546, %v1562
    %v1600 = vunpack.c.l.b16 %v1482
    %v1601 = vunpack.c.h.b16 %v1482
    %v1602 = vunpack.c.l.b16 %v1483
    %v1603 = vunpack.c.h.b16 %v1483
    %v1604 = vunpack.c.l.b16 %v1484
    %v1605 = vunpack.c.h.b16 %v1484
    %v1606 = vunpack.c.l.b16 %v1485
    %v1607 = vunpack.c.h.b16 %v1485
    %v1608 = vunpack.c.l.b16 %v1486
    %v1609 = vunpack.c.h.b16 %v1486
    %v1610 = vunpack.c.l.b16 %v1487
    %v1611 = vunpack.c.h.b16 %v1487
    %v1612 = vunpack.c.l.b16 %v1488
    %v1613 = vunpack.c.h.b16 %v1488
    %v1614 = vunpack.c.l.b16 %v1489
    %v1615 = vunpack.c.h.b16 %v1489
    %v1616 = vunpack.c.l.b16 %v1490
    %v1617 = vunpack.c.h.b16 %v1490
    %v1618 = vunpack.c.l.b16 %v1491
    %v1619 = vunpack.c.h.b16 %v1491
    %v1620 = vunpack.c.l.b16 %v1492
    %v1621 = vunpack.c.h.b16 %v1492
    %v1622 = vunpack.c.l.b16 %v1493
    %v1623 = vunpack.c.h.b16 %v1493
    %v1624 = vunpack.c.l.b16 %v1494
    %v1625 = vunpack.c.h.b16 %v1494
    %v1626 = vunpack.c.l.b16 %v1495
    %v1627 = vunpack.c.h.b16 %v1495
    %v1628 = vunpack.c.l.b16 %v1496
    %v1629 = vunpack.c.h.b16 %v1496
    %v1630 = vunpack.c.l.b16 %v1497
    %v1631 = vunpack.c.h.b16 %v1497
    %v1632 = vunpack.c.l.b16 %v1498
    %v1633 = vunpack.c.h.b16 %v1498
    %v1634 = vunpack.c.l.b16 %v1499
    %v1635 = vunpack.c.h.b16 %v1499
    %v1636 = vunpack.c.l.b16 %v1500
    %v1637 = vunpack.c.h.b16 %v1500
    %v1638 = vunpack.c.l.b16 %v1501
    %v1639 = vunpack.c.h.b16 %v1501
    %v1640 = vunpack.c.l.b16 %v1502
    %v1641 = vunpack.c.h.b16 %v1502
    %v1642 = vunpack.c.l.b16 %v1503
    %v1643 = vunpack.c.h.b16 %v1503
    %v1644 = vunpack.c.l.b16 %v1504
    %v1645 = vunpack.c.h.b16 %v1504
    %v1646 = vunpack.c.l.b16 %v1505
    %v1647 = vunpack.c.h.b16 %v1505
    %v1648 = vunpack.c.l.b16 %v1506
    %v1649 = vunpack.c.h.b16 %v1506
    %v1650 = vunpack.c.l.b16 %v1507
    %v1651 = vunpack.c.h.b16 %v1507
    %v1652 = vunpack.c.l.b16 %v1508
    %v1653 = vunpack.c.h.b16 %v1508
    %v1654 = vunpack.c.l.b16 %v1509
    %v1655 = vunpack.c.h.b16 %v1509
    %v1656 = vunpack.c.l.b16 %v1510
    %v1657 = vunpack.c.h.b16 %v1510
    %v1658 = vunpack.c.l.b16 %v1511
    %v1659 = vunpack.c.h.b16 %v1511
    %v1660 = vunpack.c.l.b16 %v1512
    %v1661 = vunpack.c.h.b16 %v1512
    %v1662 = vunpack.c.l.b16 %v1513
    %v1663 = vunpack.c.h.b16 %v1513
    %v1664 = vpack.c.b16 %v1604, %v1600
    %v1665 = vpack.c.b16 %v1605, %v1601
    %v1666 = vpack.c.b16 %v1606, %v1602
    %v1667 = vpack.c.b16 %v1607, %v1603
    %v1668 = vpack.c.b16 %v1612, %v1608
    %v1669 = vpack.c.b16 %v1613, %v1609
    %v1670 = vpack.c.b16 %v1614, %v1610
    %v1671 = vpack.c.b16 %v1615, %v1611
    %v1672 = vpack.c.b16 %v1620, %v1616
    %v1673 = vpack.c.b16 %v1621, %v1617
    %v1674 = vpack.c.b16 %v1622, %v1618
    %v1675 = vpack.c.b16 %v1623, %v1619
    %v1676 = vpack.c.b16 %v1628, %v1624
    %v1677 = vpack.c.b16 %v1629, %v1625
    %v1678 = vpack.c.b16 %v1630, %v1626
    %v1679 = vpack.c.b16 %v1631, %v1627
    %v1680 = vpack.c.b16 %v1636, %v1632
    %v1681 = vpack.c.b16 %v1637, %v1633
    %v1682 = vpack.c.b16 %v1638, %v1634
    %v1683 = vpack.c.b16 %v1639, %v1635
    %v1684 = vpack.c.b16 %v1644, %v1640
    %v1685 = vpack.c.b16 %v1645, %v1641
    %v1686 = vpack.c.b16 %v1646, %v1642
    %v1687 = vpack.c.b16 %v1647, %v1643
    %v1688 = vpack.c.b16 %v1652, %v1648
    %v1689 = vpack.c.b16 %v1653, %v1649
    %v1690 = vpack.c.b16 %v1654, %v1650
    %v1691 = vpack.c.b16 %v1655, %v1651
    %v1692 = vpack.c.b16 %v1660, %v1656
    %v1693 = vpack.c.b16 %v1661, %v1657
    %v1694 = vpack.c.b16 %v1662, %v1658
    %v1695 = vpack.c.b16 %v1663, %v1659
    %1728 = vmatprep.subr.bf16.mxu0 %v1693
    %1729 = vmatpush1.bf16.msra.mxu0 %v1692
    %1730 = vmatprep.subr.bf16.mxu0 %v1689
    %1731 = vmatpush1.bf16.msra.mxu0 %v1688
    %1732 = vmatprep.subr.bf16.mxu0 %v1685
    %1733 = vmatpush1.bf16.msra.mxu0 %v1684
    %1734 = vmatprep.subr.bf16.mxu0 %v1681
    %1735 = vmatpush1.bf16.msra.mxu0 %v1680
    %1736 = vmatprep.subr.bf16.mxu0 %v1677
    %1737 = vmatpush1.bf16.msra.mxu0 %v1676
    %1738 = vmatprep.subr.bf16.mxu0 %v1673
    %1739 = vmatpush1.bf16.msra.mxu0 %v1672
    %1740 = vmatprep.subr.bf16.mxu0 %v1669
    %1741 = vmatpush1.bf16.msra.mxu0 %v1668
    %1742 = vmatprep.subr.bf16.mxu0 %v1665
    %1743 = vmatpush1.bf16.msra.mxu0 %v1664
    %1744 = vmatprep.subr.bf16.mxu0 0
    %1745 = vmatpush2.bf16.msra.mxu0 0
    %1746 = vmatprep.subr.bf16.mxu0 0
    %1747 = vmatpush2.bf16.msra.mxu0 0
    %1748 = vmatprep.subr.bf16.mxu0 0
    %1749 = vmatpush2.bf16.msra.mxu0 0
    %1750 = vmatprep.subr.bf16.mxu0 0
    %1751 = vmatpush2.bf16.msra.mxu0 0
    %1752 = vmatprep.subr.bf16.mxu0 0
    %1753 = vmatpush2.bf16.msra.mxu0 0
    %1754 = vmatprep.subr.bf16.mxu0 0
    %1755 = vmatpush2.bf16.msra.mxu0 0
    %1756 = vmatprep.subr.bf16.mxu0 0
    %1757 = vmatpush2.bf16.msra.mxu0 0
    %1758 = vmatprep.subr.bf16.mxu0 0
    %1759 = vmatpush2.bf16.msra.mxu0 0
    %1760 = vmatprep.mubr.bf16.mxu0 0
    %1761 = vmatmul.mubr.bf16.gmra.mxu0 %v1478
    %v1762 = vpop.f32.mrf.mxu0
    %v1763 = vadd.f32 %v1551, %v1762
    %v1764 = vpop.f32.mrf.mxu0
    %v1765 = vadd.f32 %v1555, %v1764
    %v1766 = vpop.f32.mrf.mxu0
    %v1767 = vadd.f32 %v1551, %v1766
    %v1768 = vpop.f32.mrf.mxu0
    %v1769 = vadd.f32 %v1555, %v1768
    %1770 = vmatprep.mubr.bf16.mxu0 0
    %1771 = vmatmul.mubr.bf16.gmra.mxu0 %v1479
    %v1772 = vpop.f32.mrf.mxu0
    %v1773 = vadd.f32 %v1551, %v1772
    %v1774 = vpop.f32.mrf.mxu0
    %v1775 = vadd.f32 %v1555, %v1774
    %v1776 = vpop.f32.mrf.mxu0
    %v1777 = vadd.f32 %v1551, %v1776
    %v1778 = vpop.f32.mrf.mxu0
    %v1779 = vadd.f32 %v1555, %v1778
    %1780 = vmatprep.mubr.bf16.mxu0 0
    %1781 = vmatmul.mubr.bf16.gmra.mxu0 %v1480
    %v1782 = vpop.f32.mrf.mxu0
    %v1783 = vadd.f32 %v1551, %v1782
    %v1784 = vpop.f32.mrf.mxu0
    %v1785 = vadd.f32 %v1555, %v1784
    %v1786 = vpop.f32.mrf.mxu0
    %v1787 = vadd.f32 %v1551, %v1786
    %v1788 = vpop.f32.mrf.mxu0
    %v1789 = vadd.f32 %v1555, %v1788
    %1790 = vmatprep.mubr.bf16.mxu0 0
    %1791 = vmatmul.mubr.bf16.gmra.mxu0 %v1481
    %v1792 = vpop.f32.mrf.mxu0
    %v1793 = vadd.f32 %v1551, %v1792
    %v1794 = vpop.f32.mrf.mxu0
    %v1795 = vadd.f32 %v1555, %v1794
    %v1796 = vpop.f32.mrf.mxu0
    %v1797 = vadd.f32 %v1551, %v1796
    %v1798 = vpop.f32.mrf.mxu0
    %v1799 = vadd.f32 %v1555, %v1798
    %1800 = vdwg.mxu0
    %1801 = vmatprep.subr.bf16.mxu0 %v1695
    %1802 = vmatpush1.bf16.msra.mxu0 %v1694
    %1803 = vmatprep.subr.bf16.mxu0 %v1691
    %1804 = vmatpush1.bf16.msra.mxu0 %v1690
    %1805 = vmatprep.subr.bf16.mxu0 %v1687
    %1806 = vmatpush1.bf16.msra.mxu0 %v1686
    %1807 = vmatprep.subr.bf16.mxu0 %v1683
    %1808 = vmatpush1.bf16.msra.mxu0 %v1682
    %1809 = vmatprep.subr.bf16.mxu0 %v1679
    %1810 = vmatpush1.bf16.msra.mxu0 %v1678
    %1811 = vmatprep.subr.bf16.mxu0 %v1675
    %1812 = vmatpush1.bf16.msra.mxu0 %v1674
    %1813 = vmatprep.subr.bf16.mxu0 %v1671
    %1814 = vmatpush1.bf16.msra.mxu0 %v1670
    %1815 = vmatprep.subr.bf16.mxu0 %v1667
    %1816 = vmatpush1.bf16.msra.mxu0 %v1666
    %1817 = vmatprep.subr.bf16.mxu0 0
    %1818 = vmatpush2.bf16.msra.mxu0 0
    %1819 = vmatprep.subr.bf16.mxu0 0
    %1820 = vmatpush2.bf16.msra.mxu0 0
    %1821 = vmatprep.subr.bf16.mxu0 0
    %1822 = vmatpush2.bf16.msra.mxu0 0
    %1823 = vmatprep.subr.bf16.mxu0 0
    %1824 = vmatpush2.bf16.msra.mxu0 0
    %1825 = vmatprep.subr.bf16.mxu0 0
    %1826 = vmatpush2.bf16.msra.mxu0 0
    %1827 = vmatprep.subr.bf16.mxu0 0
    %1828 = vmatpush2.bf16.msra.mxu0 0
    %1829 = vmatprep.subr.bf16.mxu0 0
    %1830 = vmatpush2.bf16.msra.mxu0 0
    %1831 = vmatprep.subr.bf16.mxu0 0
    %1832 = vmatpush2.bf16.msra.mxu0 0
    %1833 = vmatprep.mubr.bf16.mxu0 0
    %1834 = vmatmul.mubr.bf16.gmra.mxu0 %v1478
    %v1835 = vpop.f32.mrf.mxu0
    %v1836 = vadd.f32 %v1559, %v1835
    %v1837 = vpop.f32.mrf.mxu0
    %v1838 = vadd.f32 %v1563, %v1837
    %v1839 = vpop.f32.mrf.mxu0
    %v1840 = vadd.f32 %v1559, %v1839
    %v1841 = vpop.f32.mrf.mxu0
    %v1842 = vadd.f32 %v1563, %v1841
    %1843 = vmatprep.mubr.bf16.mxu0 0
    %1844 = vmatmul.mubr.bf16.gmra.mxu0 %v1479
    %v1845 = vpop.f32.mrf.mxu0
    %v1846 = vadd.f32 %v1559, %v1845
    %v1847 = vpop.f32.mrf.mxu0
    %v1848 = vadd.f32 %v1563, %v1847
    %v1849 = vpop.f32.mrf.mxu0
    %v1850 = vadd.f32 %v1559, %v1849
    %v1851 = vpop.f32.mrf.mxu0
    %v1852 = vadd.f32 %v1563, %v1851
    %1853 = vmatprep.mubr.bf16.mxu0 0
    %1854 = vmatmul.mubr.bf16.gmra.mxu0 %v1480
    %v1855 = vpop.f32.mrf.mxu0
    %v1856 = vadd.f32 %v1559, %v1855
    %v1857 = vpop.f32.mrf.mxu0
    %v1858 = vadd.f32 %v1563, %v1857
    %v1859 = vpop.f32.mrf.mxu0
    %v1860 = vadd.f32 %v1559, %v1859
    %v1861 = vpop.f32.mrf.mxu0
    %v1862 = vadd.f32 %v1563, %v1861
    %1863 = vmatprep.mubr.bf16.mxu0 0
    %1864 = vmatmul.mubr.bf16.gmra.mxu0 %v1481
    %v1865 = vpop.f32.mrf.mxu0
    %v1866 = vadd.f32 %v1559, %v1865
    %v1867 = vpop.f32.mrf.mxu0
    %v1868 = vadd.f32 %v1563, %v1867
    %v1869 = vpop.f32.mrf.mxu0
    %v1870 = vadd.f32 %v1559, %v1869
    %v1871 = vpop.f32.mrf.mxu0
    %v1872 = vadd.f32 %v1563, %v1871
    %1873 = vdwg.mxu0
    %v1906 = vunpack.c.l.b16 %v1514
    %v1907 = vunpack.c.h.b16 %v1514
    %v1908 = vunpack.c.l.b16 %v1515
    %v1909 = vunpack.c.h.b16 %v1515
    %v1910 = vunpack.c.l.b16 %v1516
    %v1911 = vunpack.c.h.b16 %v1516
    %v1912 = vunpack.c.l.b16 %v1517
    %v1913 = vunpack.c.h.b16 %v1517
    %v1914 = vunpack.c.l.b16 %v1518
    %v1915 = vunpack.c.h.b16 %v1518
    %v1916 = vunpack.c.l.b16 %v1519
    %v1917 = vunpack.c.h.b16 %v1519
    %v1918 = vunpack.c.l.b16 %v1520
    %v1919 = vunpack.c.h.b16 %v1520
    %v1920 = vunpack.c.l.b16 %v1521
    %v1921 = vunpack.c.h.b16 %v1521
    %v1922 = vunpack.c.l.b16 %v1522
    %v1923 = vunpack.c.h.b16 %v1522
    %v1924 = vunpack.c.l.b16 %v1523
    %v1925 = vunpack.c.h.b16 %v1523
    %v1926 = vunpack.c.l.b16 %v1524
    %v1927 = vunpack.c.h.b16 %v1524
    %v1928 = vunpack.c.l.b16 %v1525
    %v1929 = vunpack.c.h.b16 %v1525
    %v1930 = vunpack.c.l.b16 %v1526
    %v1931 = vunpack.c.h.b16 %v1526
    %v1932 = vunpack.c.l.b16 %v1527
    %v1933 = vunpack.c.h.b16 %v1527
    %v1934 = vunpack.c.l.b16 %v1528
    %v1935 = vunpack.c.h.b16 %v1528
    %v1936 = vunpack.c.l.b16 %v1529
    %v1937 = vunpack.c.h.b16 %v1529
    %v1938 = vunpack.c.l.b16 %v1530
    %v1939 = vunpack.c.h.b16 %v1530
    %v1940 = vunpack.c.l.b16 %v1531
    %v1941 = vunpack.c.h.b16 %v1531
    %v1942 = vunpack.c.l.b16 %v1532
    %v1943 = vunpack.c.h.b16 %v1532
    %v1944 = vunpack.c.l.b16 %v1533
    %v1945 = vunpack.c.h.b16 %v1533
    %v1946 = vunpack.c.l.b16 %v1534
    %v1947 = vunpack.c.h.b16 %v1534
    %v1948 = vunpack.c.l.b16 %v1535
    %v1949 = vunpack.c.h.b16 %v1535
    %v1950 = vunpack.c.l.b16 %v1536
    %v1951 = vunpack.c.h.b16 %v1536
    %v1952 = vunpack.c.l.b16 %v1537
    %v1953 = vunpack.c.h.b16 %v1537
    %v1954 = vunpack.c.l.b16 %v1538
    %v1955 = vunpack.c.h.b16 %v1538
    %v1956 = vunpack.c.l.b16 %v1539
    %v1957 = vunpack.c.h.b16 %v1539
    %v1958 = vunpack.c.l.b16 %v1540
    %v1959 = vunpack.c.h.b16 %v1540
    %v1960 = vunpack.c.l.b16 %v1541
    %v1961 = vunpack.c.h.b16 %v1541
    %v1962 = vunpack.c.l.b16 %v1542
    %v1963 = vunpack.c.h.b16 %v1542
    %v1964 = vunpack.c.l.b16 %v1543
    %v1965 = vunpack.c.h.b16 %v1543
    %v1966 = vunpack.c.l.b16 %v1544
    %v1967 = vunpack.c.h.b16 %v1544
    %v1968 = vunpack.c.l.b16 %v1545
    %v1969 = vunpack.c.h.b16 %v1545
    %v1970 = vpack.c.b16 %v1910, %v1906
    %v1971 = vpack.c.b16 %v1911, %v1907
    %v1972 = vpack.c.b16 %v1912, %v1908
    %v1973 = vpack.c.b16 %v1913, %v1909
    %v1974 = vpack.c.b16 %v1918, %v1914
    %v1975 = vpack.c.b16 %v1919, %v1915
    %v1976 = vpack.c.b16 %v1920, %v1916
    %v1977 = vpack.c.b16 %v1921, %v1917
    %v1978 = vpack.c.b16 %v1926, %v1922
    %v1979 = vpack.c.b16 %v1927, %v1923
    %v1980 = vpack.c.b16 %v1928, %v1924
    %v1981 = vpack.c.b16 %v1929, %v1925
    %v1982 = vpack.c.b16 %v1934, %v1930
    %v1983 = vpack.c.b16 %v1935, %v1931
    %v1984 = vpack.c.b16 %v1936, %v1932
    %v1985 = vpack.c.b16 %v1937, %v1933
    %v1986 = vpack.c.b16 %v1942, %v1938
    %v1987 = vpack.c.b16 %v1943, %v1939
    %v1988 = vpack.c.b16 %v1944, %v1940
    %v1989 = vpack.c.b16 %v1945, %v1941
    %v1990 = vpack.c.b16 %v1950, %v1946
    %v1991 = vpack.c.b16 %v1951, %v1947
    %v1992 = vpack.c.b16 %v1952, %v1948
    %v1993 = vpack.c.b16 %v1953, %v1949
    %v1994 = vpack.c.b16 %v1958, %v1954
    %v1995 = vpack.c.b16 %v1959, %v1955
    %v1996 = vpack.c.b16 %v1960, %v1956
    %v1997 = vpack.c.b16 %v1961, %v1957
    %v1998 = vpack.c.b16 %v1966, %v1962
    %v1999 = vpack.c.b16 %v1967, %v1963
    %v2000 = vpack.c.b16 %v1968, %v1964
    %v2001 = vpack.c.b16 %v1969, %v1965
    %2034 = vmatprep.subr.bf16.mxu0 %v1999
    %2035 = vmatpush1.bf16.msra.mxu0 %v1998
    %2036 = vmatprep.subr.bf16.mxu0 %v1995
    %2037 = vmatpush1.bf16.msra.mxu0 %v1994
    %2038 = vmatprep.subr.bf16.mxu0 %v1991
    %2039 = vmatpush1.bf16.msra.mxu0 %v1990
    %2040 = vmatprep.subr.bf16.mxu0 %v1987
    %2041 = vmatpush1.bf16.msra.mxu0 %v1986
    %2042 = vmatprep.subr.bf16.mxu0 %v1983
    %2043 = vmatpush1.bf16.msra.mxu0 %v1982
    %2044 = vmatprep.subr.bf16.mxu0 %v1979
    %2045 = vmatpush1.bf16.msra.mxu0 %v1978
    %2046 = vmatprep.subr.bf16.mxu0 %v1975
    %2047 = vmatpush1.bf16.msra.mxu0 %v1974
    %2048 = vmatprep.subr.bf16.mxu0 %v1971
    %2049 = vmatpush1.bf16.msra.mxu0 %v1970
    %2050 = vmatprep.subr.bf16.mxu0 0
    %2051 = vmatpush2.bf16.msra.mxu0 0
    %2052 = vmatprep.subr.bf16.mxu0 0
    %2053 = vmatpush2.bf16.msra.mxu0 0
    %2054 = vmatprep.subr.bf16.mxu0 0
    %2055 = vmatpush2.bf16.msra.mxu0 0
    %2056 = vmatprep.subr.bf16.mxu0 0
    %2057 = vmatpush2.bf16.msra.mxu0 0
    %2058 = vmatprep.subr.bf16.mxu0 0
    %2059 = vmatpush2.bf16.msra.mxu0 0
    %2060 = vmatprep.subr.bf16.mxu0 0
    %2061 = vmatpush2.bf16.msra.mxu0 0
    %2062 = vmatprep.subr.bf16.mxu0 0
    %2063 = vmatpush2.bf16.msra.mxu0 0
    %2064 = vmatprep.subr.bf16.mxu0 0
    %2065 = vmatpush2.bf16.msra.mxu0 0
    %2066 = vmatprep.mubr.bf16.mxu0 0
    %2067 = vmatmul.mubr.bf16.gmra.mxu0 0
    %v2068 = vpop.f32.mrf.mxu0
    %v2069 = vadd.f32 0.0, %v2068
    %v2070 = vpop.f32.mrf.mxu0
    %v2071 = vadd.f32 0.0, %v2070
    %v2072 = vpop.f32.mrf.mxu0
    %v2073 = vpop.f32.mrf.mxu0
    %2074 = vdwg.mxu0
    %2075 = vmatprep.subr.bf16.mxu0 %v2001
    %2076 = vmatpush1.bf16.msra.mxu0 %v2000
    %2077 = vmatprep.subr.bf16.mxu0 %v1997
    %2078 = vmatpush1.bf16.msra.mxu0 %v1996
    %2079 = vmatprep.subr.bf16.mxu0 %v1993
    %2080 = vmatpush1.bf16.msra.mxu0 %v1992
    %2081 = vmatprep.subr.bf16.mxu0 %v1989
    %2082 = vmatpush1.bf16.msra.mxu0 %v1988
    %2083 = vmatprep.subr.bf16.mxu0 %v1985
    %2084 = vmatpush1.bf16.msra.mxu0 %v1984
    %2085 = vmatprep.subr.bf16.mxu0 %v1981
    %2086 = vmatpush1.bf16.msra.mxu0 %v1980
    %2087 = vmatprep.subr.bf16.mxu0 %v1977
    %2088 = vmatpush1.bf16.msra.mxu0 %v1976
    %2089 = vmatprep.subr.bf16.mxu0 %v1973
    %2090 = vmatpush1.bf16.msra.mxu0 %v1972
    %2091 = vmatprep.subr.bf16.mxu0 0
    %2092 = vmatpush2.bf16.msra.mxu0 0
    %2093 = vmatprep.subr.bf16.mxu0 0
    %2094 = vmatpush2.bf16.msra.mxu0 0
    %2095 = vmatprep.subr.bf16.mxu0 0
    %2096 = vmatpush2.bf16.msra.mxu0 0
    %2097 = vmatprep.subr.bf16.mxu0 0
    %2098 = vmatpush2.bf16.msra.mxu0 0
    %2099 = vmatprep.subr.bf16.mxu0 0
    %2100 = vmatpush2.bf16.msra.mxu0 0
    %2101 = vmatprep.subr.bf16.mxu0 0
    %2102 = vmatpush2.bf16.msra.mxu0 0
    %2103 = vmatprep.subr.bf16.mxu0 0
    %2104 = vmatpush2.bf16.msra.mxu0 0
    %2105 = vmatprep.subr.bf16.mxu0 0
    %2106 = vmatpush2.bf16.msra.mxu0 0
    %2107 = vmatprep.mubr.bf16.mxu0 0
    %2108 = vmatmul.mubr.bf16.gmra.mxu0 0
    %v2109 = vpop.f32.mrf.mxu0
    %v2110 = vadd.f32 0.0, %v2109
    %v2111 = vpop.f32.mrf.mxu0
    %v2112 = vadd.f32 0.0, %v2111
    %v2113 = vpop.f32.mrf.mxu0
    %v2114 = vpop.f32.mrf.mxu0
    %2115 = vdwg.mxu0
    %v2116 = vadd.f32 %v1763, %v2069
    %v2117 = vadd.f32 %v1765, %v2071
    %v2118 = vadd.f32 %v1836, %v2110
    %v2119 = vadd.f32 %v1838, %v2112
    %v2120 = vxor.u32 %v2116, 2147483648
    %v2121 = vxor.u32 %v2117, 2147483648
    %v2122 = vxor.u32 %v2118, 2147483648
    %v2123 = vmul.f32 %v2120, 1.442695
    %v2124 = vpow.pop %v2123
    %v2125 = vmul.f32 %v2121, 1.442695
    %v2126 = vpow.pop %v2125
    %v2127 = vmul.f32 %v2122, 1.442695
    %v2128 = vpow.pop %v2127
    %v2129 = vadd.f32 %v2124, 1.0
    %v2130 = vadd.f32 %v2126, 1.0
    %v2131 = vadd.f32 %v2128, 1.0
    %v2132 = vrcp.pop %v2129
    %v2133 = vmul.f32 1.0, %v2132
    %v2134 = vrcp.pop %v2130
    %v2135 = vmul.f32 1.0, %v2134
    %v2136 = vrcp.pop %v2131
    %v2137 = vmul.f32 1.0, %v2136
    %v2138 = vtanh.pop %v2119
    %v2139 = vmul.f32 %v2135, 0.0
    %v2140 = vmul.f32 %v2133, %v2138
    %v2141 = vadd.f32 %v2139, %v2140
    %v2142 = vtanh.pop %v2141
    %v2143 = vmul.f32 %v2137, %v2142
    %2144 = vst [vmem:[#allocation2] sm:$0xff] %v2143
    %v2145 = vpack.c.bf16 %v2143, %v2143
    %2146 = vmatprep.subr.bf16.mxu0 %v1999
    %2147 = vmatpush1.bf16.msra.mxu0 %v1998
    %2148 = vmatprep.subr.bf16.mxu0 %v1995
    %2149 = vmatpush1.bf16.msra.mxu0 %v1994
    %2150 = vmatprep.subr.bf16.mxu0 %v1991
    %2151 = vmatpush1.bf16.msra.mxu0 %v1990
    %2152 = vmatprep.subr.bf16.mxu0 %v1987
    %2153 = vmatpush1.bf16.msra.mxu0 %v1986
    %2154 = vmatprep.subr.bf16.mxu0 %v1983
    %2155 = vmatpush1.bf16.msra.mxu0 %v1982
    %2156 = vmatprep.subr.bf16.mxu0 %v1979
    %2157 = vmatpush1.bf16.msra.mxu0 %v1978
    %2158 = vmatprep.subr.bf16.mxu0 %v1975
    %2159 = vmatpush1.bf16.msra.mxu0 %v1974
    %2160 = vmatprep.subr.bf16.mxu0 %v1971
    %2161 = vmatpush1.bf16.msra.mxu0 %v1970
    %2162 = vmatprep.subr.bf16.mxu0 0
    %2163 = vmatpush2.bf16.msra.mxu0 0
    %2164 = vmatprep.subr.bf16.mxu0 0
    %2165 = vmatpush2.bf16.msra.mxu0 0
    %2166 = vmatprep.subr.bf16.mxu0 0
    %2167 = vmatpush2.bf16.msra.mxu0 0
    %2168 = vmatprep.subr.bf16.mxu0 0
    %2169 = vmatpush2.bf16.msra.mxu0 0
    %2170 = vmatprep.subr.bf16.mxu0 0
    %2171 = vmatpush2.bf16.msra.mxu0 0
    %2172 = vmatprep.subr.bf16.mxu0 0
    %2173 = vmatpush2.bf16.msra.mxu0 0
    %2174 = vmatprep.subr.bf16.mxu0 0
    %2175 = vmatpush2.bf16.msra.mxu0 0
    %2176 = vmatprep.subr.bf16.mxu0 0
    %2177 = vmatpush2.bf16.msra.mxu0 0
    %2178 = vmatprep.mubr.bf16.mxu0 0
    %2179 = vmatmul.mubr.bf16.gmra.mxu0 %v2145
    %v2180 = vpop.f32.mrf.mxu0
    %v2181 = vadd.f32 0.0, %v2180
    %v2182 = vpop.f32.mrf.mxu0
    %v2183 = vadd.f32 0.0, %v2182
    %v2184 = vpop.f32.mrf.mxu0
    %v2185 = vpop.f32.mrf.mxu0
    %2186 = vdwg.mxu0
    %2187 = vmatprep.subr.bf16.mxu0 %v2001
    %2188 = vmatpush1.bf16.msra.mxu0 %v2000
    %2189 = vmatprep.subr.bf16.mxu0 %v1997
    %2190 = vmatpush1.bf16.msra.mxu0 %v1996
    %2191 = vmatprep.subr.bf16.mxu0 %v1993
    %2192 = vmatpush1.bf16.msra.mxu0 %v1992
    %2193 = vmatprep.subr.bf16.mxu0 %v1989
    %2194 = vmatpush1.bf16.msra.mxu0 %v1988
    %2195 = vmatprep.subr.bf16.mxu0 %v1985
    %2196 = vmatpush1.bf16.msra.mxu0 %v1984
    %2197 = vmatprep.subr.bf16.mxu0 %v1981
    %2198 = vmatpush1.bf16.msra.mxu0 %v1980
    %2199 = vmatprep.subr.bf16.mxu0 %v1977
    %2200 = vmatpush1.bf16.msra.mxu0 %v1976
    %2201 = vmatprep.subr.bf16.mxu0 %v1973
    %2202 = vmatpush1.bf16.msra.mxu0 %v1972
    %2203 = vmatprep.subr.bf16.mxu0 0
    %2204 = vmatpush2.bf16.msra.mxu0 0
    %2205 = vmatprep.subr.bf16.mxu0 0
    %2206 = vmatpush2.bf16.msra.mxu0 0
    %2207 = vmatprep.subr.bf16.mxu0 0
    %2208 = vmatpush2.bf16.msra.mxu0 0
    %2209 = vmatprep.subr.bf16.mxu0 0
    %2210 = vmatpush2.bf16.msra.mxu0 0
    %2211 = vmatprep.subr.bf16.mxu0 0
    %2212 = vmatpush2.bf16.msra.mxu0 0
    %2213 = vmatprep.subr.bf16.mxu0 0
    %2214 = vmatpush2.bf16.msra.mxu0 0
    %2215 = vmatprep.subr.bf16.mxu0 0
    %2216 = vmatpush2.bf16.msra.mxu0 0
    %2217 = vmatprep.subr.bf16.mxu0 0
    %2218 = vmatpush2.bf16.msra.mxu0 0
    %2219 = vmatprep.mubr.bf16.mxu0 0
    %2220 = vmatmul.mubr.bf16.gmra.mxu0 %v2145
    %v2221 = vpop.f32.mrf.mxu0
    %v2222 = vadd.f32 0.0, %v2221
    %v2223 = vpop.f32.mrf.mxu0
    %v2224 = vadd.f32 0.0, %v2223
    %v2225 = vpop.f32.mrf.mxu0
    %v2226 = vpop.f32.mrf.mxu0
    %2227 = vdwg.mxu0
    %v2228 = vadd.f32 %v1767, %v2181
    %v2229 = vadd.f32 %v1769, %v2183
    %v2230 = vadd.f32 %v1840, %v2222
    %v2231 = vadd.f32 %v1842, %v2224
    %v2232 = vxor.u32 %v2228, 2147483648
    %v2233 = vxor.u32 %v2229, 2147483648
    %v2234 = vxor.u32 %v2230, 2147483648
    %v2235 = vmul.f32 %v2232, 1.442695
    %v2236 = vpow.pop %v2235
    %v2237 = vmul.f32 %v2233, 1.442695
    %v2238 = vpow.pop %v2237
    %v2239 = vmul.f32 %v2234, 1.442695
    %v2240 = vpow.pop %v2239
    %v2241 = vadd.f32 %v2236, 1.0
    %v2242 = vadd.f32 %v2238, 1.0
    %v2243 = vadd.f32 %v2240, 1.0
    %v2244 = vrcp.pop %v2241
    %v2245 = vmul.f32 1.0, %v2244
    %v2246 = vrcp.pop %v2242
    %v2247 = vmul.f32 1.0, %v2246
    %v2248 = vrcp.pop %v2243
    %v2249 = vmul.f32 1.0, %v2248
    %v2250 = vtanh.pop %v2231
    %v2251 = vmul.f32 %v2247, %v2141
    %v2252 = vmul.f32 %v2245, %v2250
    %v2253 = vadd.f32 %v2251, %v2252
    %v2254 = vtanh.pop %v2253
    %v2255 = vmul.f32 %v2249, %v2254
    %2256 = vst [vmem:[#allocation2 + $0x8] sm:$0xff] %v2255
    %v2257 = vpack.c.bf16 %v2255, %v2255
    %2258 = vmatprep.subr.bf16.mxu0 %v1999
    %2259 = vmatpush1.bf16.msra.mxu0 %v1998
    %2260 = vmatprep.subr.bf16.mxu0 %v1995
    %2261 = vmatpush1.bf16.msra.mxu0 %v1994
    %2262 = vmatprep.subr.bf16.mxu0 %v1991
    %2263 = vmatpush1.bf16.msra.mxu0 %v1990
    %2264 = vmatprep.subr.bf16.mxu0 %v1987
    %2265 = vmatpush1.bf16.msra.mxu0 %v1986
    %2266 = vmatprep.subr.bf16.mxu0 %v1983
    %2267 = vmatpush1.bf16.msra.mxu0 %v1982
    %2268 = vmatprep.subr.bf16.mxu0 %v1979
    %2269 = vmatpush1.bf16.msra.mxu0 %v1978
    %2270 = vmatprep.subr.bf16.mxu0 %v1975
    %2271 = vmatpush1.bf16.msra.mxu0 %v1974
    %2272 = vmatprep.subr.bf16.mxu0 %v1971
    %2273 = vmatpush1.bf16.msra.mxu0 %v1970
    %2274 = vmatprep.subr.bf16.mxu0 0
    %2275 = vmatpush2.bf16.msra.mxu0 0
    %2276 = vmatprep.subr.bf16.mxu0 0
    %2277 = vmatpush2.bf16.msra.mxu0 0
    %2278 = vmatprep.subr.bf16.mxu0 0
    %2279 = vmatpush2.bf16.msra.mxu0 0
    %2280 = vmatprep.subr.bf16.mxu0 0
    %2281 = vmatpush2.bf16.msra.mxu0 0
    %2282 = vmatprep.subr.bf16.mxu0 0
    %2283 = vmatpush2.bf16.msra.mxu0 0
    %2284 = vmatprep.subr.bf16.mxu0 0
    %2285 = vmatpush2.bf16.msra.mxu0 0
    %2286 = vmatprep.subr.bf16.mxu0 0
    %2287 = vmatpush2.bf16.msra.mxu0 0
    %2288 = vmatprep.subr.bf16.mxu0 0
    %2289 = vmatpush2.bf16.msra.mxu0 0
    %2290 = vmatprep.mubr.bf16.mxu0 0
    %2291 = vmatmul.mubr.bf16.gmra.mxu0 %v2257
    %v2292 = vpop.f32.mrf.mxu0
    %v2293 = vadd.f32 0.0, %v2292
    %v2294 = vpop.f32.mrf.mxu0
    %v2295 = vadd.f32 0.0, %v2294
    %v2296 = vpop.f32.mrf.mxu0
    %v2297 = vpop.f32.mrf.mxu0
    %2298 = vdwg.mxu0
    %2299 = vmatprep.subr.bf16.mxu0 %v2001
    %2300 = vmatpush1.bf16.msra.mxu0 %v2000
    %2301 = vmatprep.subr.bf16.mxu0 %v1997
    %2302 = vmatpush1.bf16.msra.mxu0 %v1996
    %2303 = vmatprep.subr.bf16.mxu0 %v1993
    %2304 = vmatpush1.bf16.msra.mxu0 %v1992
    %2305 = vmatprep.subr.bf16.mxu0 %v1989
    %2306 = vmatpush1.bf16.msra.mxu0 %v1988
    %2307 = vmatprep.subr.bf16.mxu0 %v1985
    %2308 = vmatpush1.bf16.msra.mxu0 %v1984
    %2309 = vmatprep.subr.bf16.mxu0 %v1981
    %2310 = vmatpush1.bf16.msra.mxu0 %v1980
    %2311 = vmatprep.subr.bf16.mxu0 %v1977
    %2312 = vmatpush1.bf16.msra.mxu0 %v1976
    %2313 = vmatprep.subr.bf16.mxu0 %v1973
    %2314 = vmatpush1.bf16.msra.mxu0 %v1972
    %2315 = vmatprep.subr.bf16.mxu0 0
    %2316 = vmatpush2.bf16.msra.mxu0 0
    %2317 = vmatprep.subr.bf16.mxu0 0
    %2318 = vmatpush2.bf16.msra.mxu0 0
    %2319 = vmatprep.subr.bf16.mxu0 0
    %2320 = vmatpush2.bf16.msra.mxu0 0
    %2321 = vmatprep.subr.bf16.mxu0 0
    %2322 = vmatpush2.bf16.msra.mxu0 0
    %2323 = vmatprep.subr.bf16.mxu0 0
    %2324 = vmatpush2.bf16.msra.mxu0 0
    %2325 = vmatprep.subr.bf16.mxu0 0
    %2326 = vmatpush2.bf16.msra.mxu0 0
    %2327 = vmatprep.subr.bf16.mxu0 0
    %2328 = vmatpush2.bf16.msra.mxu0 0
    %2329 = vmatprep.subr.bf16.mxu0 0
    %2330 = vmatpush2.bf16.msra.mxu0 0
    %2331 = vmatprep.mubr.bf16.mxu0 0
    %2332 = vmatmul.mubr.bf16.gmra.mxu0 %v2257
    %v2333 = vpop.f32.mrf.mxu0
    %v2334 = vadd.f32 0.0, %v2333
    %v2335 = vpop.f32.mrf.mxu0
    %v2336 = vadd.f32 0.0, %v2335
    %v2337 = vpop.f32.mrf.mxu0
    %v2338 = vpop.f32.mrf.mxu0
    %2339 = vdwg.mxu0
    %v2340 = vadd.f32 %v1773, %v2293
    %v2341 = vadd.f32 %v1775, %v2295
    %v2342 = vadd.f32 %v1846, %v2334
    %v2343 = vadd.f32 %v1848, %v2336
    %v2344 = vxor.u32 %v2340, 2147483648
    %v2345 = vxor.u32 %v2341, 2147483648
    %v2346 = vxor.u32 %v2342, 2147483648
    %v2347 = vmul.f32 %v2344, 1.442695
    %v2348 = vpow.pop %v2347
    %v2349 = vmul.f32 %v2345, 1.442695
    %v2350 = vpow.pop %v2349
    %v2351 = vmul.f32 %v2346, 1.442695
    %v2352 = vpow.pop %v2351
    %v2353 = vadd.f32 %v2348, 1.0
    %v2354 = vadd.f32 %v2350, 1.0
    %v2355 = vadd.f32 %v2352, 1.0
    %v2356 = vrcp.pop %v2353
    %v2357 = vmul.f32 1.0, %v2356
    %v2358 = vrcp.pop %v2354
    %v2359 = vmul.f32 1.0, %v2358
    %v2360 = vrcp.pop %v2355
    %v2361 = vmul.f32 1.0, %v2360
    %v2362 = vtanh.pop %v2343
    %v2363 = vmul.f32 %v2359, %v2253
    %v2364 = vmul.f32 %v2357, %v2362
    %v2365 = vadd.f32 %v2363, %v2364
    %v2366 = vtanh.pop %v2365
    %v2367 = vmul.f32 %v2361, %v2366
    %2368 = vst [vmem:[#allocation2 + $0x10] sm:$0xff] %v2367
    %v2369 = vpack.c.bf16 %v2367, %v2367
    %2370 = vmatprep.subr.bf16.mxu0 %v1999
    %2371 = vmatpush1.bf16.msra.mxu0 %v1998
    %2372 = vmatprep.subr.bf16.mxu0 %v1995
    %2373 = vmatpush1.bf16.msra.mxu0 %v1994
    %2374 = vmatprep.subr.bf16.mxu0 %v1991
    %2375 = vmatpush1.bf16.msra.mxu0 %v1990
    %2376 = vmatprep.subr.bf16.mxu0 %v1987
    %2377 = vmatpush1.bf16.msra.mxu0 %v1986
    %2378 = vmatprep.subr.bf16.mxu0 %v1983
    %2379 = vmatpush1.bf16.msra.mxu0 %v1982
    %2380 = vmatprep.subr.bf16.mxu0 %v1979
    %2381 = vmatpush1.bf16.msra.mxu0 %v1978
    %2382 = vmatprep.subr.bf16.mxu0 %v1975
    %2383 = vmatpush1.bf16.msra.mxu0 %v1974
    %2384 = vmatprep.subr.bf16.mxu0 %v1971
    %2385 = vmatpush1.bf16.msra.mxu0 %v1970
    %2386 = vmatprep.subr.bf16.mxu0 0
    %2387 = vmatpush2.bf16.msra.mxu0 0
    %2388 = vmatprep.subr.bf16.mxu0 0
    %2389 = vmatpush2.bf16.msra.mxu0 0
    %2390 = vmatprep.subr.bf16.mxu0 0
    %2391 = vmatpush2.bf16.msra.mxu0 0
    %2392 = vmatprep.subr.bf16.mxu0 0
    %2393 = vmatpush2.bf16.msra.mxu0 0
    %2394 = vmatprep.subr.bf16.mxu0 0
    %2395 = vmatpush2.bf16.msra.mxu0 0
    %2396 = vmatprep.subr.bf16.mxu0 0
    %2397 = vmatpush2.bf16.msra.mxu0 0
    %2398 = vmatprep.subr.bf16.mxu0 0
    %2399 = vmatpush2.bf16.msra.mxu0 0
    %2400 = vmatprep.subr.bf16.mxu0 0
    %2401 = vmatpush2.bf16.msra.mxu0 0
    %2402 = vmatprep.mubr.bf16.mxu0 0
    %2403 = vmatmul.mubr.bf16.gmra.mxu0 %v2369
    %v2404 = vpop.f32.mrf.mxu0
    %v2405 = vadd.f32 0.0, %v2404
    %v2406 = vpop.f32.mrf.mxu0
    %v2407 = vadd.f32 0.0, %v2406
    %v2408 = vpop.f32.mrf.mxu0
    %v2409 = vpop.f32.mrf.mxu0
    %2410 = vdwg.mxu0
    %2411 = vmatprep.subr.bf16.mxu0 %v2001
    %2412 = vmatpush1.bf16.msra.mxu0 %v2000
    %2413 = vmatprep.subr.bf16.mxu0 %v1997
    %2414 = vmatpush1.bf16.msra.mxu0 %v1996
    %2415 = vmatprep.subr.bf16.mxu0 %v1993
    %2416 = vmatpush1.bf16.msra.mxu0 %v1992
    %2417 = vmatprep.subr.bf16.mxu0 %v1989
    %2418 = vmatpush1.bf16.msra.mxu0 %v1988
    %2419 = vmatprep.subr.bf16.mxu0 %v1985
    %2420 = vmatpush1.bf16.msra.mxu0 %v1984
    %2421 = vmatprep.subr.bf16.mxu0 %v1981
    %2422 = vmatpush1.bf16.msra.mxu0 %v1980
    %2423 = vmatprep.subr.bf16.mxu0 %v1977
    %2424 = vmatpush1.bf16.msra.mxu0 %v1976
    %2425 = vmatprep.subr.bf16.mxu0 %v1973
    %2426 = vmatpush1.bf16.msra.mxu0 %v1972
    %2427 = vmatprep.subr.bf16.mxu0 0
    %2428 = vmatpush2.bf16.msra.mxu0 0
    %2429 = vmatprep.subr.bf16.mxu0 0
    %2430 = vmatpush2.bf16.msra.mxu0 0
    %2431 = vmatprep.subr.bf16.mxu0 0
    %2432 = vmatpush2.bf16.msra.mxu0 0
    %2433 = vmatprep.subr.bf16.mxu0 0
    %2434 = vmatpush2.bf16.msra.mxu0 0
    %2435 = vmatprep.subr.bf16.mxu0 0
    %2436 = vmatpush2.bf16.msra.mxu0 0
    %2437 = vmatprep.subr.bf16.mxu0 0
    %2438 = vmatpush2.bf16.msra.mxu0 0
    %2439 = vmatprep.subr.bf16.mxu0 0
    %2440 = vmatpush2.bf16.msra.mxu0 0
    %2441 = vmatprep.subr.bf16.mxu0 0
    %2442 = vmatpush2.bf16.msra.mxu0 0
    %2443 = vmatprep.mubr.bf16.mxu0 0
    %2444 = vmatmul.mubr.bf16.gmra.mxu0 %v2369
    %v2445 = vpop.f32.mrf.mxu0
    %v2446 = vadd.f32 0.0, %v2445
    %v2447 = vpop.f32.mrf.mxu0
    %v2448 = vadd.f32 0.0, %v2447
    %v2449 = vpop.f32.mrf.mxu0
    %v2450 = vpop.f32.mrf.mxu0
    %2451 = vdwg.mxu0
    %v2452 = vadd.f32 %v1777, %v2405
    %v2453 = vadd.f32 %v1779, %v2407
    %v2454 = vadd.f32 %v1850, %v2446
    %v2455 = vadd.f32 %v1852, %v2448
    %v2456 = vxor.u32 %v2452, 2147483648
    %v2457 = vxor.u32 %v2453, 2147483648
    %v2458 = vxor.u32 %v2454, 2147483648
    %v2459 = vmul.f32 %v2456, 1.442695
    %v2460 = vpow.pop %v2459
    %v2461 = vmul.f32 %v2457, 1.442695
    %v2462 = vpow.pop %v2461
    %v2463 = vmul.f32 %v2458, 1.442695
    %v2464 = vpow.pop %v2463
    %v2465 = vadd.f32 %v2460, 1.0
    %v2466 = vadd.f32 %v2462, 1.0
    %v2467 = vadd.f32 %v2464, 1.0
    %v2468 = vrcp.pop %v2465
    %v2469 = vmul.f32 1.0, %v2468
    %v2470 = vrcp.pop %v2466
    %v2471 = vmul.f32 1.0, %v2470
    %v2472 = vrcp.pop %v2467
    %v2473 = vmul.f32 1.0, %v2472
    %v2474 = vtanh.pop %v2455
    %v2475 = vmul.f32 %v2471, %v2365
    %v2476 = vmul.f32 %v2469, %v2474
    %v2477 = vadd.f32 %v2475, %v2476
    %v2478 = vtanh.pop %v2477
    %v2479 = vmul.f32 %v2473, %v2478
    %2480 = vst [vmem:[#allocation2 + $0x18] sm:$0xff] %v2479
    %v2481 = vpack.c.bf16 %v2479, %v2479
    %2482 = vmatprep.subr.bf16.mxu0 %v1999
    %2483 = vmatpush1.bf16.msra.mxu0 %v1998
    %2484 = vmatprep.subr.bf16.mxu0 %v1995
    %2485 = vmatpush1.bf16.msra.mxu0 %v1994
    %2486 = vmatprep.subr.bf16.mxu0 %v1991
    %2487 = vmatpush1.bf16.msra.mxu0 %v1990
    %2488 = vmatprep.subr.bf16.mxu0 %v1987
    %2489 = vmatpush1.bf16.msra.mxu0 %v1986
    %2490 = vmatprep.subr.bf16.mxu0 %v1983
    %2491 = vmatpush1.bf16.msra.mxu0 %v1982
    %2492 = vmatprep.subr.bf16.mxu0 %v1979
    %2493 = vmatpush1.bf16.msra.mxu0 %v1978
    %2494 = vmatprep.subr.bf16.mxu0 %v1975
    %2495 = vmatpush1.bf16.msra.mxu0 %v1974
    %2496 = vmatprep.subr.bf16.mxu0 %v1971
    %2497 = vmatpush1.bf16.msra.mxu0 %v1970
    %2498 = vmatprep.subr.bf16.mxu0 0
    %2499 = vmatpush2.bf16.msra.mxu0 0
    %2500 = vmatprep.subr.bf16.mxu0 0
    %2501 = vmatpush2.bf16.msra.mxu0 0
    %2502 = vmatprep.subr.bf16.mxu0 0
    %2503 = vmatpush2.bf16.msra.mxu0 0
    %2504 = vmatprep.subr.bf16.mxu0 0
    %2505 = vmatpush2.bf16.msra.mxu0 0
    %2506 = vmatprep.subr.bf16.mxu0 0
    %2507 = vmatpush2.bf16.msra.mxu0 0
    %2508 = vmatprep.subr.bf16.mxu0 0
    %2509 = vmatpush2.bf16.msra.mxu0 0
    %2510 = vmatprep.subr.bf16.mxu0 0
    %2511 = vmatpush2.bf16.msra.mxu0 0
    %2512 = vmatprep.subr.bf16.mxu0 0
    %2513 = vmatpush2.bf16.msra.mxu0 0
    %2514 = vmatprep.mubr.bf16.mxu0 0
    %2515 = vmatmul.mubr.bf16.gmra.mxu0 %v2481
    %v2516 = vpop.f32.mrf.mxu0
    %v2517 = vadd.f32 0.0, %v2516
    %v2518 = vpop.f32.mrf.mxu0
    %v2519 = vadd.f32 0.0, %v2518
    %v2520 = vpop.f32.mrf.mxu0
    %v2521 = vpop.f32.mrf.mxu0
    %2522 = vdwg.mxu0
    %2523 = vmatprep.subr.bf16.mxu0 %v2001
    %2524 = vmatpush1.bf16.msra.mxu0 %v2000
    %2525 = vmatprep.subr.bf16.mxu0 %v1997
    %2526 = vmatpush1.bf16.msra.mxu0 %v1996
    %2527 = vmatprep.subr.bf16.mxu0 %v1993
    %2528 = vmatpush1.bf16.msra.mxu0 %v1992
    %2529 = vmatprep.subr.bf16.mxu0 %v1989
    %2530 = vmatpush1.bf16.msra.mxu0 %v1988
    %2531 = vmatprep.subr.bf16.mxu0 %v1985
    %2532 = vmatpush1.bf16.msra.mxu0 %v1984
    %2533 = vmatprep.subr.bf16.mxu0 %v1981
    %2534 = vmatpush1.bf16.msra.mxu0 %v1980
    %2535 = vmatprep.subr.bf16.mxu0 %v1977
    %2536 = vmatpush1.bf16.msra.mxu0 %v1976
    %2537 = vmatprep.subr.bf16.mxu0 %v1973
    %2538 = vmatpush1.bf16.msra.mxu0 %v1972
    %2539 = vmatprep.subr.bf16.mxu0 0
    %2540 = vmatpush2.bf16.msra.mxu0 0
    %2541 = vmatprep.subr.bf16.mxu0 0
    %2542 = vmatpush2.bf16.msra.mxu0 0
    %2543 = vmatprep.subr.bf16.mxu0 0
    %2544 = vmatpush2.bf16.msra.mxu0 0
    %2545 = vmatprep.subr.bf16.mxu0 0
    %2546 = vmatpush2.bf16.msra.mxu0 0
    %2547 = vmatprep.subr.bf16.mxu0 0
    %2548 = vmatpush2.bf16.msra.mxu0 0
    %2549 = vmatprep.subr.bf16.mxu0 0
    %2550 = vmatpush2.bf16.msra.mxu0 0
    %2551 = vmatprep.subr.bf16.mxu0 0
    %2552 = vmatpush2.bf16.msra.mxu0 0
    %2553 = vmatprep.subr.bf16.mxu0 0
    %2554 = vmatpush2.bf16.msra.mxu0 0
    %2555 = vmatprep.mubr.bf16.mxu0 0
    %2556 = vmatmul.mubr.bf16.gmra.mxu0 %v2481
    %v2557 = vpop.f32.mrf.mxu0
    %v2558 = vadd.f32 0.0, %v2557
    %v2559 = vpop.f32.mrf.mxu0
    %v2560 = vadd.f32 0.0, %v2559
    %v2561 = vpop.f32.mrf.mxu0
    %v2562 = vpop.f32.mrf.mxu0
    %2563 = vdwg.mxu0
    %v2564 = vadd.f32 %v1783, %v2517
    %v2565 = vadd.f32 %v1785, %v2519
    %v2566 = vadd.f32 %v1856, %v2558
    %v2567 = vadd.f32 %v1858, %v2560
    %v2568 = vxor.u32 %v2564, 2147483648
    %v2569 = vxor.u32 %v2565, 2147483648
    %v2570 = vxor.u32 %v2566, 2147483648
    %v2571 = vmul.f32 %v2568, 1.442695
    %v2572 = vpow.pop %v2571
    %v2573 = vmul.f32 %v2569, 1.442695
    %v2574 = vpow.pop %v2573
    %v2575 = vmul.f32 %v2570, 1.442695
    %v2576 = vpow.pop %v2575
    %v2577 = vadd.f32 %v2572, 1.0
    %v2578 = vadd.f32 %v2574, 1.0
    %v2579 = vadd.f32 %v2576, 1.0
    %v2580 = vrcp.pop %v2577
    %v2581 = vmul.f32 1.0, %v2580
    %v2582 = vrcp.pop %v2578
    %v2583 = vmul.f32 1.0, %v2582
    %v2584 = vrcp.pop %v2579
    %v2585 = vmul.f32 1.0, %v2584
    %v2586 = vtanh.pop %v2567
    %v2587 = vmul.f32 %v2583, %v2477
    %v2588 = vmul.f32 %v2581, %v2586
    %v2589 = vadd.f32 %v2587, %v2588
    %v2590 = vtanh.pop %v2589
    %v2591 = vmul.f32 %v2585, %v2590
    %2592 = vst [vmem:[#allocation2 + $0x20] sm:$0xff] %v2591
    %v2593 = vpack.c.bf16 %v2591, %v2591
    %2594 = vmatprep.subr.bf16.mxu0 %v1999
    %2595 = vmatpush1.bf16.msra.mxu0 %v1998
    %2596 = vmatprep.subr.bf16.mxu0 %v1995
    %2597 = vmatpush1.bf16.msra.mxu0 %v1994
    %2598 = vmatprep.subr.bf16.mxu0 %v1991
    %2599 = vmatpush1.bf16.msra.mxu0 %v1990
    %2600 = vmatprep.subr.bf16.mxu0 %v1987
    %2601 = vmatpush1.bf16.msra.mxu0 %v1986
    %2602 = vmatprep.subr.bf16.mxu0 %v1983
    %2603 = vmatpush1.bf16.msra.mxu0 %v1982
    %2604 = vmatprep.subr.bf16.mxu0 %v1979
    %2605 = vmatpush1.bf16.msra.mxu0 %v1978
    %2606 = vmatprep.subr.bf16.mxu0 %v1975
    %2607 = vmatpush1.bf16.msra.mxu0 %v1974
    %2608 = vmatprep.subr.bf16.mxu0 %v1971
    %2609 = vmatpush1.bf16.msra.mxu0 %v1970
    %2610 = vmatprep.subr.bf16.mxu0 0
    %2611 = vmatpush2.bf16.msra.mxu0 0
    %2612 = vmatprep.subr.bf16.mxu0 0
    %2613 = vmatpush2.bf16.msra.mxu0 0
    %2614 = vmatprep.subr.bf16.mxu0 0
    %2615 = vmatpush2.bf16.msra.mxu0 0
    %2616 = vmatprep.subr.bf16.mxu0 0
    %2617 = vmatpush2.bf16.msra.mxu0 0
    %2618 = vmatprep.subr.bf16.mxu0 0
    %2619 = vmatpush2.bf16.msra.mxu0 0
    %2620 = vmatprep.subr.bf16.mxu0 0
    %2621 = vmatpush2.bf16.msra.mxu0 0
    %2622 = vmatprep.subr.bf16.mxu0 0
    %2623 = vmatpush2.bf16.msra.mxu0 0
    %2624 = vmatprep.subr.bf16.mxu0 0
    %2625 = vmatpush2.bf16.msra.mxu0 0
    %2626 = vmatprep.mubr.bf16.mxu0 0
    %2627 = vmatmul.mubr.bf16.gmra.mxu0 %v2593
    %v2628 = vpop.f32.mrf.mxu0
    %v2629 = vadd.f32 0.0, %v2628
    %v2630 = vpop.f32.mrf.mxu0
    %v2631 = vadd.f32 0.0, %v2630
    %v2632 = vpop.f32.mrf.mxu0
    %v2633 = vpop.f32.mrf.mxu0
    %2634 = vdwg.mxu0
    %2635 = vmatprep.subr.bf16.mxu0 %v2001
    %2636 = vmatpush1.bf16.msra.mxu0 %v2000
    %2637 = vmatprep.subr.bf16.mxu0 %v1997
    %2638 = vmatpush1.bf16.msra.mxu0 %v1996
    %2639 = vmatprep.subr.bf16.mxu0 %v1993
    %2640 = vmatpush1.bf16.msra.mxu0 %v1992
    %2641 = vmatprep.subr.bf16.mxu0 %v1989
    %2642 = vmatpush1.bf16.msra.mxu0 %v1988
    %2643 = vmatprep.subr.bf16.mxu0 %v1985
    %2644 = vmatpush1.bf16.msra.mxu0 %v1984
    %2645 = vmatprep.subr.bf16.mxu0 %v1981
    %2646 = vmatpush1.bf16.msra.mxu0 %v1980
    %2647 = vmatprep.subr.bf16.mxu0 %v1977
    %2648 = vmatpush1.bf16.msra.mxu0 %v1976
    %2649 = vmatprep.subr.bf16.mxu0 %v1973
    %2650 = vmatpush1.bf16.msra.mxu0 %v1972
    %2651 = vmatprep.subr.bf16.mxu0 0
    %2652 = vmatpush2.bf16.msra.mxu0 0
    %2653 = vmatprep.subr.bf16.mxu0 0
    %2654 = vmatpush2.bf16.msra.mxu0 0
    %2655 = vmatprep.subr.bf16.mxu0 0
    %2656 = vmatpush2.bf16.msra.mxu0 0
    %2657 = vmatprep.subr.bf16.mxu0 0
    %2658 = vmatpush2.bf16.msra.mxu0 0
    %2659 = vmatprep.subr.bf16.mxu0 0
    %2660 = vmatpush2.bf16.msra.mxu0 0
    %2661 = vmatprep.subr.bf16.mxu0 0
    %2662 = vmatpush2.bf16.msra.mxu0 0
    %2663 = vmatprep.subr.bf16.mxu0 0
    %2664 = vmatpush2.bf16.msra.mxu0 0
    %2665 = vmatprep.subr.bf16.mxu0 0
    %2666 = vmatpush2.bf16.msra.mxu0 0
    %2667 = vmatprep.mubr.bf16.mxu0 0
    %2668 = vmatmul.mubr.bf16.gmra.mxu0 %v2593
    %v2669 = vpop.f32.mrf.mxu0
    %v2670 = vadd.f32 0.0, %v2669
    %v2671 = vpop.f32.mrf.mxu0
    %v2672 = vadd.f32 0.0, %v2671
    %v2673 = vpop.f32.mrf.mxu0
    %v2674 = vpop.f32.mrf.mxu0
    %2675 = vdwg.mxu0
    %v2676 = vadd.f32 %v1787, %v2629
    %v2677 = vadd.f32 %v1789, %v2631
    %v2678 = vadd.f32 %v1860, %v2670
    %v2679 = vadd.f32 %v1862, %v2672
    %v2680 = vxor.u32 %v2676, 2147483648
    %v2681 = vxor.u32 %v2677, 2147483648
    %v2682 = vxor.u32 %v2678, 2147483648
    %v2683 = vmul.f32 %v2680, 1.442695
    %v2684 = vpow.pop %v2683
    %v2685 = vmul.f32 %v2681, 1.442695
    %v2686 = vpow.pop %v2685
    %v2687 = vmul.f32 %v2682, 1.442695
    %v2688 = vpow.pop %v2687
    %v2689 = vadd.f32 %v2684, 1.0
    %v2690 = vadd.f32 %v2686, 1.0
    %v2691 = vadd.f32 %v2688, 1.0
    %v2692 = vrcp.pop %v2689
    %v2693 = vmul.f32 1.0, %v2692
    %v2694 = vrcp.pop %v2690
    %v2695 = vmul.f32 1.0, %v2694
    %v2696 = vrcp.pop %v2691
    %v2697 = vmul.f32 1.0, %v2696
    %v2698 = vtanh.pop %v2679
    %v2699 = vmul.f32 %v2695, %v2589
    %v2700 = vmul.f32 %v2693, %v2698
    %v2701 = vadd.f32 %v2699, %v2700
    %v2702 = vtanh.pop %v2701
    %v2703 = vmul.f32 %v2697, %v2702
    %2704 = vst [vmem:[#allocation2 + $0x28] sm:$0xff] %v2703
    %v2705 = vpack.c.bf16 %v2703, %v2703
    %2706 = vmatprep.subr.bf16.mxu0 %v1999
    %2707 = vmatpush1.bf16.msra.mxu0 %v1998
    %2708 = vmatprep.subr.bf16.mxu0 %v1995
    %2709 = vmatpush1.bf16.msra.mxu0 %v1994
    %2710 = vmatprep.subr.bf16.mxu0 %v1991
    %2711 = vmatpush1.bf16.msra.mxu0 %v1990
    %2712 = vmatprep.subr.bf16.mxu0 %v1987
    %2713 = vmatpush1.bf16.msra.mxu0 %v1986
    %2714 = vmatprep.subr.bf16.mxu0 %v1983
    %2715 = vmatpush1.bf16.msra.mxu0 %v1982
    %2716 = vmatprep.subr.bf16.mxu0 %v1979
    %2717 = vmatpush1.bf16.msra.mxu0 %v1978
    %2718 = vmatprep.subr.bf16.mxu0 %v1975
    %2719 = vmatpush1.bf16.msra.mxu0 %v1974
    %2720 = vmatprep.subr.bf16.mxu0 %v1971
    %2721 = vmatpush1.bf16.msra.mxu0 %v1970
    %2722 = vmatprep.subr.bf16.mxu0 0
    %2723 = vmatpush2.bf16.msra.mxu0 0
    %2724 = vmatprep.subr.bf16.mxu0 0
    %2725 = vmatpush2.bf16.msra.mxu0 0
    %2726 = vmatprep.subr.bf16.mxu0 0
    %2727 = vmatpush2.bf16.msra.mxu0 0
    %2728 = vmatprep.subr.bf16.mxu0 0
    %2729 = vmatpush2.bf16.msra.mxu0 0
    %2730 = vmatprep.subr.bf16.mxu0 0
    %2731 = vmatpush2.bf16.msra.mxu0 0
    %2732 = vmatprep.subr.bf16.mxu0 0
    %2733 = vmatpush2.bf16.msra.mxu0 0
    %2734 = vmatprep.subr.bf16.mxu0 0
    %2735 = vmatpush2.bf16.msra.mxu0 0
    %2736 = vmatprep.subr.bf16.mxu0 0
    %2737 = vmatpush2.bf16.msra.mxu0 0
    %2738 = vmatprep.mubr.bf16.mxu0 0
    %2739 = vmatmul.mubr.bf16.gmra.mxu0 %v2705
    %v2740 = vpop.f32.mrf.mxu0
    %v2741 = vadd.f32 0.0, %v2740
    %v2742 = vpop.f32.mrf.mxu0
    %v2743 = vadd.f32 0.0, %v2742
    %v2744 = vpop.f32.mrf.mxu0
    %v2745 = vpop.f32.mrf.mxu0
    %2746 = vdwg.mxu0
    %2747 = vmatprep.subr.bf16.mxu0 %v2001
    %2748 = vmatpush1.bf16.msra.mxu0 %v2000
    %2749 = vmatprep.subr.bf16.mxu0 %v1997
    %2750 = vmatpush1.bf16.msra.mxu0 %v1996
    %2751 = vmatprep.subr.bf16.mxu0 %v1993
    %2752 = vmatpush1.bf16.msra.mxu0 %v1992
    %2753 = vmatprep.subr.bf16.mxu0 %v1989
    %2754 = vmatpush1.bf16.msra.mxu0 %v1988
    %2755 = vmatprep.subr.bf16.mxu0 %v1985
    %2756 = vmatpush1.bf16.msra.mxu0 %v1984
    %2757 = vmatprep.subr.bf16.mxu0 %v1981
    %2758 = vmatpush1.bf16.msra.mxu0 %v1980
    %2759 = vmatprep.subr.bf16.mxu0 %v1977
    %2760 = vmatpush1.bf16.msra.mxu0 %v1976
    %2761 = vmatprep.subr.bf16.mxu0 %v1973
    %2762 = vmatpush1.bf16.msra.mxu0 %v1972
    %2763 = vmatprep.subr.bf16.mxu0 0
    %2764 = vmatpush2.bf16.msra.mxu0 0
    %2765 = vmatprep.subr.bf16.mxu0 0
    %2766 = vmatpush2.bf16.msra.mxu0 0
    %2767 = vmatprep.subr.bf16.mxu0 0
    %2768 = vmatpush2.bf16.msra.mxu0 0
    %2769 = vmatprep.subr.bf16.mxu0 0
    %2770 = vmatpush2.bf16.msra.mxu0 0
    %2771 = vmatprep.subr.bf16.mxu0 0
    %2772 = vmatpush2.bf16.msra.mxu0 0
    %2773 = vmatprep.subr.bf16.mxu0 0
    %2774 = vmatpush2.bf16.msra.mxu0 0
    %2775 = vmatprep.subr.bf16.mxu0 0
    %2776 = vmatpush2.bf16.msra.mxu0 0
    %2777 = vmatprep.subr.bf16.mxu0 0
    %2778 = vmatpush2.bf16.msra.mxu0 0
    %2779 = vmatprep.mubr.bf16.mxu0 0
    %2780 = vmatmul.mubr.bf16.gmra.mxu0 %v2705
    %v2781 = vpop.f32.mrf.mxu0
    %v2782 = vadd.f32 0.0, %v2781
    %v2783 = vpop.f32.mrf.mxu0
    %v2784 = vadd.f32 0.0, %v2783
    %v2785 = vpop.f32.mrf.mxu0
    %v2786 = vpop.f32.mrf.mxu0
    %2787 = vdwg.mxu0
    %v2788 = vadd.f32 %v1793, %v2741
    %v2789 = vadd.f32 %v1795, %v2743
    %v2790 = vadd.f32 %v1866, %v2782
    %v2791 = vadd.f32 %v1868, %v2784
    %v2792 = vxor.u32 %v2788, 2147483648
    %v2793 = vxor.u32 %v2789, 2147483648
    %v2794 = vxor.u32 %v2790, 2147483648
    %v2795 = vmul.f32 %v2792, 1.442695
    %v2796 = vpow.pop %v2795
    %v2797 = vmul.f32 %v2793, 1.442695
    %v2798 = vpow.pop %v2797
    %v2799 = vmul.f32 %v2794, 1.442695
    %v2800 = vpow.pop %v2799
    %v2801 = vadd.f32 %v2796, 1.0
    %v2802 = vadd.f32 %v2798, 1.0
    %v2803 = vadd.f32 %v2800, 1.0
    %v2804 = vrcp.pop %v2801
    %v2805 = vmul.f32 1.0, %v2804
    %v2806 = vrcp.pop %v2802
    %v2807 = vmul.f32 1.0, %v2806
    %v2808 = vrcp.pop %v2803
    %v2809 = vmul.f32 1.0, %v2808
    %v2810 = vtanh.pop %v2791
    %v2811 = vmul.f32 %v2807, %v2701
    %v2812 = vmul.f32 %v2805, %v2810
    %v2813 = vadd.f32 %v2811, %v2812
    %v2814 = vtanh.pop %v2813
    %v2815 = vmul.f32 %v2809, %v2814
    %2816 = vst [vmem:[#allocation2 + $0x30] sm:$0xff] %v2815
    %v2817 = vpack.c.bf16 %v2815, %v2815
    %2818 = vmatprep.subr.bf16.mxu0 %v1999
    %2819 = vmatpush1.bf16.msra.mxu0 %v1998
    %2820 = vmatprep.subr.bf16.mxu0 %v1995
    %2821 = vmatpush1.bf16.msra.mxu0 %v1994
    %2822 = vmatprep.subr.bf16.mxu0 %v1991
    %2823 = vmatpush1.bf16.msra.mxu0 %v1990
    %2824 = vmatprep.subr.bf16.mxu0 %v1987
    %2825 = vmatpush1.bf16.msra.mxu0 %v1986
    %2826 = vmatprep.subr.bf16.mxu0 %v1983
    %2827 = vmatpush1.bf16.msra.mxu0 %v1982
    %2828 = vmatprep.subr.bf16.mxu0 %v1979
    %2829 = vmatpush1.bf16.msra.mxu0 %v1978
    %2830 = vmatprep.subr.bf16.mxu0 %v1975
    %2831 = vmatpush1.bf16.msra.mxu0 %v1974
    %2832 = vmatprep.subr.bf16.mxu0 %v1971
    %2833 = vmatpush1.bf16.msra.mxu0 %v1970
    %2834 = vmatprep.subr.bf16.mxu0 0
    %2835 = vmatpush2.bf16.msra.mxu0 0
    %2836 = vmatprep.subr.bf16.mxu0 0
    %2837 = vmatpush2.bf16.msra.mxu0 0
    %2838 = vmatprep.subr.bf16.mxu0 0
    %2839 = vmatpush2.bf16.msra.mxu0 0
    %2840 = vmatprep.subr.bf16.mxu0 0
    %2841 = vmatpush2.bf16.msra.mxu0 0
    %2842 = vmatprep.subr.bf16.mxu0 0
    %2843 = vmatpush2.bf16.msra.mxu0 0
    %2844 = vmatprep.subr.bf16.mxu0 0
    %2845 = vmatpush2.bf16.msra.mxu0 0
    %2846 = vmatprep.subr.bf16.mxu0 0
    %2847 = vmatpush2.bf16.msra.mxu0 0
    %2848 = vmatprep.subr.bf16.mxu0 0
    %2849 = vmatpush2.bf16.msra.mxu0 0
    %2850 = vmatprep.mubr.bf16.mxu0 0
    %2851 = vmatmul.mubr.bf16.gmra.mxu0 %v2817
    %v2852 = vpop.f32.mrf.mxu0
    %v2853 = vadd.f32 0.0, %v2852
    %v2854 = vpop.f32.mrf.mxu0
    %v2855 = vadd.f32 0.0, %v2854
    %v2856 = vpop.f32.mrf.mxu0
    %v2857 = vpop.f32.mrf.mxu0
    %2858 = vdwg.mxu0
    %2859 = vmatprep.subr.bf16.mxu0 %v2001
    %2860 = vmatpush1.bf16.msra.mxu0 %v2000
    %2861 = vmatprep.subr.bf16.mxu0 %v1997
    %2862 = vmatpush1.bf16.msra.mxu0 %v1996
    %2863 = vmatprep.subr.bf16.mxu0 %v1993
    %2864 = vmatpush1.bf16.msra.mxu0 %v1992
    %2865 = vmatprep.subr.bf16.mxu0 %v1989
    %2866 = vmatpush1.bf16.msra.mxu0 %v1988
    %2867 = vmatprep.subr.bf16.mxu0 %v1985
    %2868 = vmatpush1.bf16.msra.mxu0 %v1984
    %2869 = vmatprep.subr.bf16.mxu0 %v1981
    %2870 = vmatpush1.bf16.msra.mxu0 %v1980
    %2871 = vmatprep.subr.bf16.mxu0 %v1977
    %2872 = vmatpush1.bf16.msra.mxu0 %v1976
    %2873 = vmatprep.subr.bf16.mxu0 %v1973
    %2874 = vmatpush1.bf16.msra.mxu0 %v1972
    %2875 = vmatprep.subr.bf16.mxu0 0
    %2876 = vmatpush2.bf16.msra.mxu0 0
    %2877 = vmatprep.subr.bf16.mxu0 0
    %2878 = vmatpush2.bf16.msra.mxu0 0
    %2879 = vmatprep.subr.bf16.mxu0 0
    %2880 = vmatpush2.bf16.msra.mxu0 0
    %2881 = vmatprep.subr.bf16.mxu0 0
    %2882 = vmatpush2.bf16.msra.mxu0 0
    %2883 = vmatprep.subr.bf16.mxu0 0
    %2884 = vmatpush2.bf16.msra.mxu0 0
    %2885 = vmatprep.subr.bf16.mxu0 0
    %2886 = vmatpush2.bf16.msra.mxu0 0
    %2887 = vmatprep.subr.bf16.mxu0 0
    %2888 = vmatpush2.bf16.msra.mxu0 0
    %2889 = vmatprep.subr.bf16.mxu0 0
    %2890 = vmatpush2.bf16.msra.mxu0 0
    %2891 = vmatprep.mubr.bf16.mxu0 0
    %2892 = vmatmul.mubr.bf16.gmra.mxu0 %v2817
    %v2893 = vpop.f32.mrf.mxu0
    %v2894 = vadd.f32 0.0, %v2893
    %v2895 = vpop.f32.mrf.mxu0
    %v2896 = vadd.f32 0.0, %v2895
    %v2897 = vpop.f32.mrf.mxu0
    %v2898 = vpop.f32.mrf.mxu0
    %2899 = vdwg.mxu0
    %v2900 = vadd.f32 %v1797, %v2853
    %v2901 = vadd.f32 %v1799, %v2855
    %v2902 = vadd.f32 %v1870, %v2894
    %v2903 = vadd.f32 %v1872, %v2896
    %v2904 = vxor.u32 %v2900, 2147483648
    %v2905 = vxor.u32 %v2901, 2147483648
    %v2906 = vxor.u32 %v2902, 2147483648
    %v2907 = vmul.f32 %v2904, 1.442695
    %v2908 = vpow.pop %v2907
    %v2909 = vmul.f32 %v2905, 1.442695
    %v2910 = vpow.pop %v2909
    %v2911 = vmul.f32 %v2906, 1.442695
    %v2912 = vpow.pop %v2911
    %v2913 = vadd.f32 %v2908, 1.0
    %v2914 = vadd.f32 %v2910, 1.0
    %v2915 = vadd.f32 %v2912, 1.0
    %v2916 = vrcp.pop %v2913
    %v2917 = vmul.f32 1.0, %v2916
    %v2918 = vrcp.pop %v2914
    %v2919 = vmul.f32 1.0, %v2918
    %v2920 = vrcp.pop %v2915
    %v2921 = vmul.f32 1.0, %v2920
    %v2922 = vtanh.pop %v2903
    %v2923 = vmul.f32 %v2919, %v2813
    %v2924 = vmul.f32 %v2917, %v2922
    %v2925 = vadd.f32 %v2923, %v2924
    %v2926 = vtanh.pop %v2925
    %v2927 = vmul.f32 %v2921, %v2926
    %2928 = vst [vmem:[#allocation2 + $0x38] sm:$0xff] %v2927
    %v2929 = vld [vmem:[#allocation2] sm:$0xff]
    %v2930 = vld [vmem:[#allocation2 + $0x8] sm:$0xff]
    %v2931 = vld [vmem:[#allocation2 + $0x10] sm:$0xff]
    %v2932 = vld [vmem:[#allocation2 + $0x18] sm:$0xff]
    %v2933 = vld [vmem:[#allocation2 + $0x20] sm:$0xff]
    %v2934 = vld [vmem:[#allocation2 + $0x28] sm:$0xff]
    %v2935 = vld [vmem:[#allocation2 + $0x30] sm:$0xff]
    %v2936 = vld [vmem:[#allocation2 + $0x38] sm:$0xff]
    %v2937 = vpack.c.bf16 %v2930, %v2929
    %v2938 = vpack.c.bf16 %v2932, %v2931
    %v2939 = vpack.c.bf16 %v2934, %v2933
    %v2940 = vpack.c.bf16 %v2936, %v2935
    %v2941 = vld [vmem:[%s5] sm:$0xf]
    %v2942 = vld [vmem:[%s5 + $0x4] sm:$0xf]
    %v2943 = vld [vmem:[%s5 + $0x8] sm:$0xf]
    %v2944 = vld [vmem:[%s5 + $0xc] sm:$0xf]
    %v2945 = vld [vmem:[%s5 + $0x10] sm:$0xf]
    %v2946 = vld [vmem:[%s5 + $0x14] sm:$0xf]
    %v2947 = vld [vmem:[%s5 + $0x18] sm:$0xf]
    %v2948 = vld [vmem:[%s5 + $0x1c] sm:$0xf]
    %v2949 = vld [vmem:[%s5 + $0x20] sm:$0xf]
    %v2950 = vld [vmem:[%s5 + $0x24] sm:$0xf]
    %v2951 = vld [vmem:[%s5 + $0x28] sm:$0xf]
    %v2952 = vld [vmem:[%s5 + $0x2c] sm:$0xf]
    %v2953 = vld [vmem:[%s5 + $0x30] sm:$0xf]
    %v2954 = vld [vmem:[%s5 + $0x34] sm:$0xf]
    %v2955 = vld [vmem:[%s5 + $0x38] sm:$0xf]
    %v2956 = vld [vmem:[%s5 + $0x3c] sm:$0xf]
    %v2957 = vld [vmem:[%s6] sm:$0x1]
    %v2959 = vlaneseq
    %v2960 = vshrl.u32 %v2959, 7
    %v2961 = vsub.s32 0, %v2960
    %v2962 = vrot.slane %v2957, %v2961
    %v2980 = vunpack.c.l.b16 %v2941
    %v2981 = vunpack.c.l.b16 %v2942
    %v2982 = vunpack.c.l.b16 %v2943
    %v2983 = vunpack.c.l.b16 %v2944
    %v2984 = vunpack.c.l.b16 %v2945
    %v2985 = vunpack.c.l.b16 %v2946
    %v2986 = vunpack.c.l.b16 %v2947
    %v2987 = vunpack.c.l.b16 %v2948
    %v2988 = vunpack.c.l.b16 %v2949
    %v2989 = vunpack.c.l.b16 %v2950
    %v2990 = vunpack.c.l.b16 %v2951
    %v2991 = vunpack.c.l.b16 %v2952
    %v2992 = vunpack.c.l.b16 %v2953
    %v2993 = vunpack.c.l.b16 %v2954
    %v2994 = vunpack.c.l.b16 %v2955
    %v2995 = vunpack.c.l.b16 %v2956
    %v2996 = vpack.c.b16 %v2981, %v2980
    %v2997 = vpack.c.b16 %v2983, %v2982
    %v2998 = vpack.c.b16 %v2985, %v2984
    %v2999 = vpack.c.b16 %v2987, %v2986
    %v3000 = vpack.c.b16 %v2989, %v2988
    %v3001 = vpack.c.b16 %v2991, %v2990
    %v3002 = vpack.c.b16 %v2993, %v2992
    %v3003 = vpack.c.b16 %v2995, %v2994
    %3012 = vmatprep.subr.bf16.mxu0 0
    %3013 = vmatpush1.bf16.msra.mxu0 %v3003
    %3014 = vmatprep.subr.bf16.mxu0 0
    %3015 = vmatpush1.bf16.msra.mxu0 %v3002
    %3016 = vmatprep.subr.bf16.mxu0 0
    %3017 = vmatpush1.bf16.msra.mxu0 %v3001
    %3018 = vmatprep.subr.bf16.mxu0 0
    %3019 = vmatpush1.bf16.msra.mxu0 %v3000
    %3020 = vmatprep.subr.bf16.mxu0 0
    %3021 = vmatpush1.bf16.msra.mxu0 %v2999
    %3022 = vmatprep.subr.bf16.mxu0 0
    %3023 = vmatpush1.bf16.msra.mxu0 %v2998
    %3024 = vmatprep.subr.bf16.mxu0 0
    %3025 = vmatpush1.bf16.msra.mxu0 %v2997
    %3026 = vmatprep.subr.bf16.mxu0 0
    %3027 = vmatpush1.bf16.msra.mxu0 %v2996
    %3028 = vmatprep.subr.bf16.mxu0 0
    %3029 = vmatpush2.bf16.msra.mxu0 0
    %3030 = vmatprep.subr.bf16.mxu0 0
    %3031 = vmatpush2.bf16.msra.mxu0 0
    %3032 = vmatprep.subr.bf16.mxu0 0
    %3033 = vmatpush2.bf16.msra.mxu0 0
    %3034 = vmatprep.subr.bf16.mxu0 0
    %3035 = vmatpush2.bf16.msra.mxu0 0
    %3036 = vmatprep.subr.bf16.mxu0 0
    %3037 = vmatpush2.bf16.msra.mxu0 0
    %3038 = vmatprep.subr.bf16.mxu0 0
    %3039 = vmatpush2.bf16.msra.mxu0 0
    %3040 = vmatprep.subr.bf16.mxu0 0
    %3041 = vmatpush2.bf16.msra.mxu0 0
    %3042 = vmatprep.subr.bf16.mxu0 0
    %3043 = vmatpush2.bf16.msra.mxu0 0
    %3044 = vmatprep.mubr.bf16.mxu0 0
    %3045 = vmatmul.mubr.bf16.gmra.mxu0 %v2937
    %v3046 = vpop.f32.mrf.mxu0
    %v3047 = vadd.f32 %v2962, %v3046
    %v3048 = vpop.f32.mrf.mxu0
    %v3049 = vpop.f32.mrf.mxu0
    %v3050 = vadd.f32 %v2962, %v3049
    %v3051 = vpop.f32.mrf.mxu0
    %3052 = vmatprep.mubr.bf16.mxu0 0
    %3053 = vmatmul.mubr.bf16.gmra.mxu0 %v2938
    %v3054 = vpop.f32.mrf.mxu0
    %v3055 = vadd.f32 %v2962, %v3054
    %v3056 = vpop.f32.mrf.mxu0
    %v3057 = vpop.f32.mrf.mxu0
    %v3058 = vadd.f32 %v2962, %v3057
    %v3059 = vpop.f32.mrf.mxu0
    %3060 = vmatprep.mubr.bf16.mxu0 0
    %3061 = vmatmul.mubr.bf16.gmra.mxu0 %v2939
    %v3062 = vpop.f32.mrf.mxu0
    %v3063 = vadd.f32 %v2962, %v3062
    %v3064 = vpop.f32.mrf.mxu0
    %v3065 = vpop.f32.mrf.mxu0
    %v3066 = vadd.f32 %v2962, %v3065
    %v3067 = vpop.f32.mrf.mxu0
    %3068 = vmatprep.mubr.bf16.mxu0 0
    %3069 = vmatmul.mubr.bf16.gmra.mxu0 %v2940
    %v3070 = vpop.f32.mrf.mxu0
    %v3071 = vadd.f32 %v2962, %v3070
    %v3072 = vpop.f32.mrf.mxu0
    %v3073 = vpop.f32.mrf.mxu0
    %v3074 = vadd.f32 %v2962, %v3073
    %v3075 = vpop.f32.mrf.mxu0
    %3076 = vdwg.mxu0
    %v3077 = vmax.f32 %v3047, 0.0
    %v3078 = vmax.f32 %v3050, 0.0
    %v3079 = vmax.f32 %v3055, 0.0
    %v3080 = vmax.f32 %v3058, 0.0
    %v3081 = vmax.f32 %v3063, 0.0
    %v3082 = vmax.f32 %v3066, 0.0
    %v3083 = vmax.f32 %v3071, 0.0
    %v3084 = vmax.f32 %v3074, 0.0
    %v3085 = vpack.c.bf16 %v3078, %v3077
    %v3086 = vpack.c.bf16 %v3080, %v3079
    %v3087 = vpack.c.bf16 %v3082, %v3081
    %v3088 = vpack.c.bf16 %v3084, %v3083
    %v3089 = vld [vmem:[%s7] sm:$0xf]
    %v3090 = vld [vmem:[%s7 + $0x4] sm:$0xf]
    %v3091 = vld [vmem:[%s7 + $0x8] sm:$0xf]
    %v3092 = vld [vmem:[%s7 + $0xc] sm:$0xf]
    %v3093 = vld [vmem:[%s8] sm:$0x1]
    %v3095 = vlaneseq
    %v3096 = vshrl.u32 %v3095, 7
    %v3097 = vsub.s32 0, %v3096
    %v3098 = vrot.slane %v3093, %v3097
    %v3104 = vunpack.c.l.b16 %v3089
    %v3105 = vunpack.c.l.b16 %v3090
    %v3106 = vunpack.c.l.b16 %v3091
    %v3107 = vunpack.c.l.b16 %v3092
    %v3108 = vpack.c.b16 %v3105, %v3104
    %v3109 = vpack.c.b16 %v3107, %v3106
    %vm3112 = vcmask 261120
    %v3114 = vsel %vm3112, %v3085, 0
    %v3117 = vsel %vm3112, %v3086, 0
    %v3120 = vsel %vm3112, %v3087, 0
    %v3123 = vsel %vm3112, %v3088, 0
    %3125 = vmatprep.subr.bf16.mxu0 0
    %3126 = vmatpush1.bf16.msra.mxu0 0
    %3127 = vmatprep.subr.bf16.mxu0 0
    %3128 = vmatpush1.bf16.msra.mxu0 0
    %3129 = vmatprep.subr.bf16.mxu0 0
    %3130 = vmatpush1.bf16.msra.mxu0 0
    %3131 = vmatprep.subr.bf16.mxu0 0
    %3132 = vmatpush1.bf16.msra.mxu0 0
    %3133 = vmatprep.subr.bf16.mxu0 0
    %3134 = vmatpush1.bf16.msra.mxu0 0
    %3135 = vmatprep.subr.bf16.mxu0 0
    %3136 = vmatpush1.bf16.msra.mxu0 0
    %3137 = vmatprep.subr.bf16.mxu0 0
    %3138 = vmatpush1.bf16.msra.mxu0 %v3109
    %3139 = vmatprep.subr.bf16.mxu0 0
    %3140 = vmatpush1.bf16.msra.mxu0 %v3108
    %3141 = vmatprep.subr.bf16.mxu0 0
    %3142 = vmatpush2.bf16.msra.mxu0 0
    %3143 = vmatprep.subr.bf16.mxu0 0
    %3144 = vmatpush2.bf16.msra.mxu0 0
    %3145 = vmatprep.subr.bf16.mxu0 0
    %3146 = vmatpush2.bf16.msra.mxu0 0
    %3147 = vmatprep.subr.bf16.mxu0 0
    %3148 = vmatpush2.bf16.msra.mxu0 0
    %3149 = vmatprep.subr.bf16.mxu0 0
    %3150 = vmatpush2.bf16.msra.mxu0 0
    %3151 = vmatprep.subr.bf16.mxu0 0
    %3152 = vmatpush2.bf16.msra.mxu0 0
    %3153 = vmatprep.subr.bf16.mxu0 0
    %3154 = vmatpush2.bf16.msra.mxu0 0
    %3155 = vmatprep.subr.bf16.mxu0 0
    %3156 = vmatpush2.bf16.msra.mxu0 0
    %3157 = vmatprep.mubr.bf16.mxu0 0
    %3158 = vmatmul.mubr.bf16.gmra.mxu0 %v3114
    %v3159 = vpop.f32.mrf.mxu0
    %v3160 = vadd.f32 %v3098, %v3159
    %v3161 = vpop.f32.mrf.mxu0
    %v3162 = vpop.f32.mrf.mxu0
    %v3163 = vadd.f32 %v3098, %v3162
    %v3164 = vpop.f32.mrf.mxu0
    %3165 = vmatprep.mubr.bf16.mxu0 0
    %3166 = vmatmul.mubr.bf16.gmra.mxu0 %v3117
    %v3167 = vpop.f32.mrf.mxu0
    %v3168 = vadd.f32 %v3098, %v3167
    %v3169 = vpop.f32.mrf.mxu0
    %v3170 = vpop.f32.mrf.mxu0
    %v3171 = vadd.f32 %v3098, %v3170
    %v3172 = vpop.f32.mrf.mxu0
    %3173 = vmatprep.mubr.bf16.mxu0 0
    %3174 = vmatmul.mubr.bf16.gmra.mxu0 %v3120
    %v3175 = vpop.f32.mrf.mxu0
    %v3176 = vadd.f32 %v3098, %v3175
    %v3177 = vpop.f32.mrf.mxu0
    %v3178 = vpop.f32.mrf.mxu0
    %v3179 = vadd.f32 %v3098, %v3178
    %v3180 = vpop.f32.mrf.mxu0
    %3181 = vmatprep.mubr.bf16.mxu0 0
    %3182 = vmatmul.mubr.bf16.gmra.mxu0 %v3123
    %v3183 = vpop.f32.mrf.mxu0
    %v3184 = vadd.f32 %v3098, %v3183
    %v3185 = vpop.f32.mrf.mxu0
    %v3186 = vpop.f32.mrf.mxu0
    %v3187 = vadd.f32 %v3098, %v3186
    %v3188 = vpop.f32.mrf.mxu0
    %3189 = vdwg.mxu0
    %vm3190 = vcmask 15360
    %3191 = vst.msk [vmem:[%s11] sm:$0xff] %vm3190, %v3160
    %3192 = vst.msk [vmem:[%s11 + $0x8] sm:$0xff] %vm3190, %v3163
    %3193 = vst.msk [vmem:[%s11 + $0x10] sm:$0xff] %vm3190, %v3168
    %3194 = vst.msk [vmem:[%s11 + $0x18] sm:$0xff] %vm3190, %v3171
    %3195 = vst.msk [vmem:[%s11 + $0x20] sm:$0xff] %vm3190, %v3176
    %3196 = vst.msk [vmem:[%s11 + $0x28] sm:$0xff] %vm3190, %v3179
    %3197 = vst.msk [vmem:[%s11 + $0x30] sm:$0xff] %vm3190, %v3184
    %3198 = vst.msk [vmem:[%s11 + $0x38] sm:$0xff] %vm3190, %v3187
    // Predicated region
    $region50: #{rnn_decoder_forward.1} parent=1 // pred_check
      _
    $region51: #{rnn_decoder_forward.1} parent=1 // pred_check_branch
      %3200 = sbr.rel (0) target = $region53
    $region52: #{rnn_decoder_forward.1} parent=1 // pred_region
      _
    $region53: #{rnn_decoder_forward.1} parent=1 // pred_fallthru
      _
    // Predicated region
    $region54: #{rnn_decoder_forward.1} parent=1 // pred_check
      _
    $region55: #{rnn_decoder_forward.1} parent=1 // pred_check_branch
      %3202 = sbr.rel (0) target = $region57
    $region56: #{rnn_decoder_forward.1} parent=1 // pred_region
      _
    $region57: #{rnn_decoder_forward.1} parent=1 // pred_fallthru
      _
    %3203 = vsyncpa [#allocation7], 1
  %3204 = vsyncmov [#allocation5]
  %s3205 = vpop.sfrf %3204
  %p3206 = scmp.eq.s32.totalorder %s3205, 0
  %p3207 = pneg %p3206
  %3209 = shalt.err (%p3207)
  %s3210 = scalar_lea.sflag [#allocation5], 1
  %3211 = vsyncmov %s3210
  %s3212 = vpop.sfrf %3211
  %p3213 = scmp.eq.s32.totalorder %s3212, 0
  %p3214 = pneg %p3213
  %3216 = shalt.err (%p3214)

</llo_original>
